<compile_context>
chip_gen: v6e
topology: v6e:2x2x1
jax: 0.10.0
libtpu: 0.0.40
codegen_flags: <defaults>
</compile_context>

<pallas_src>
import functools
import math

import jax
import jax.numpy as jnp
from jax.experimental import pallas as pl
from jax.experimental.pallas import tpu as pltpu


CFG = dict(vocab=100, max_pos=16, type_vocab=2, hidden=32, heads=4,
           num_layers=2, intermediate=64, fc1_dim=256, num_classes=3)


# --------------------------- in-kernel math helpers --------------------------

def _layernorm(x, g, b, eps=1e-12):
    mean = jnp.mean(x, axis=-1, keepdims=True)
    var = jnp.mean(jnp.square(x - mean), axis=-1, keepdims=True)
    return (x - mean) * jax.lax.rsqrt(var + eps) * g + b


def _erf(x):
    # Abramowitz & Stegun 7.1.26 (max abs err ~1.5e-7); exp + VPU arithmetic only.
    p = 0.3275911
    a1, a2, a3, a4, a5 = (0.254829592, -0.284496736, 1.421413741,
                          -1.453152027, 1.061405429)
    sgn = jnp.where(x >= 0.0, 1.0, -1.0)
    ax = jnp.abs(x)
    t = 1.0 / (1.0 + p * ax)
    poly = ((((a5 * t + a4) * t + a3) * t + a2) * t + a1) * t
    return sgn * (1.0 - poly * jnp.exp(-ax * ax))


def _gelu_exact(x):
    return 0.5 * x * (1.0 + _erf(x * 0.7071067811865476))


# ------------------------------- fused kernel --------------------------------

def _bert_fused_kernel(ids_ref, mask_ref, mat32_ref, mat96_ref, vec_ref, out_ref,
                       *, B, S, H, nH, L, I, vocab, nc, F1, off32, off96, vrow):
    """Whole BertSentimentClassifier forward, fully VMEM/register resident.

    ids_ref  : [B*S, 1]    int32 token ids
    mask_ref : [B*S, B*S]  f32 additive attention mask (block-diagonal over
               batch; padding keys already -1e9)
    mat32_ref: [R32, H]    width-H slab (word emb, pos+type rows, Wo, Wp, Wo2, Wfc2)
    mat96_ref: [R96, 3H]   width-3H slab (fused QKV with 1/sqrt(D) folded, Wi)
    vec_ref  : [RV, F1]    bias / LayerNorm vector rows + Wfc1
    out_ref  : [B, nc]
    """
    D = H // nH
    N = B * S
    f32 = jnp.float32

    def vec(row, w):
        return vec_ref[row:row + 1, 0:w]

    def m32(off, rows):
        return mat32_ref[off:off + rows, :]

    # ---- embeddings: one-hot gather (MXU) + pos/type add + LayerNorm ----
    ids = ids_ref[...]                                             # [N, 1]
    iota = jax.lax.broadcasted_iota(jnp.int32, (N, vocab), 1)
    one_hot = (iota == ids).astype(f32)                            # [N, vocab]
    h = jnp.dot(one_hot, m32(off32["word_emb"], vocab),
                preferred_element_type=f32)
    h = h + m32(off32["pos_type"], N)
    h = _layernorm(h, vec(vrow["emb_ln_g"], H), vec(vrow["emb_ln_b"], H))

    add_mask = mask_ref[...]                                       # [N, N]

    # ---- transformer encoder layers (no scratch, batch-fused attention) ----
    for l in range(L):
        x = h
        wqkv = mat96_ref[off96[f"wqkv{l}"]:off96[f"wqkv{l}"] + H, :]
        qkv = jnp.dot(x, wqkv, preferred_element_type=f32) + vec(vrow[f"bqkv{l}"], 3 * H)

        ctx_heads = []
        for hd in range(nH):
            c = hd * D
            q = qkv[:, c:c + D]                    # scale already folded into W/bq
            k = qkv[:, H + c:H + c + D]
            v = qkv[:, 2 * H + c:2 * H + c + D]
            s = jax.lax.dot_general(q, k, (((1,), (1,)), ((), ())),
                                    preferred_element_type=f32)    # [N, N]
            s = s + add_mask
            s = s - jnp.max(s, axis=-1, keepdims=True)
            p = jnp.exp(s)
            p = p / jnp.sum(p, axis=-1, keepdims=True)
            ctx_heads.append(jnp.dot(p, v, preferred_element_type=f32))
        ctx = jnp.concatenate(ctx_heads, axis=-1)                  # [N, H]

        attn = jnp.dot(ctx, m32(off32[f"wo{l}"], H),
                       preferred_element_type=f32) + vec(vrow[f"bo{l}"], H)
        h1 = _layernorm(x + attn, vec(vrow[f"ln1_g{l}"], H),
                        vec(vrow[f"ln1_b{l}"], H))

        wi = mat96_ref[off96[f"wi{l}"]:off96[f"wi{l}"] + H, 0:I]
        ff = _gelu_exact(jnp.dot(h1, wi, preferred_element_type=f32)
                         + vec(vrow[f"bi{l}"], I))
        ff = jnp.dot(ff, m32(off32[f"wo2{l}"], I),
                     preferred_element_type=f32) + vec(vrow[f"bo2{l}"], H)
        h = _layernorm(h1 + ff, vec(vrow[f"ln2_g{l}"], H),
                       vec(vrow[f"ln2_b{l}"], H))

    # ---- CLS selection via a tiny selection matmul (no masked stores) ----
    brow = jax.lax.broadcasted_iota(jnp.int32, (B, N), 0)
    bcol = jax.lax.broadcasted_iota(jnp.int32, (B, N), 1)
    sel = (bcol == brow * S).astype(f32)                           # [B, N]
    cls = jnp.dot(sel, h, preferred_element_type=f32)              # [B, H]

    pooled = jnp.tanh(jnp.dot(cls, m32(off32["wp"], H),
                              preferred_element_type=f32) + vec(vrow["bp"], H))

    # ---- classification head (dropout1 / dropout2 = identity, eval mode) ----
    w_fc1 = vec_ref[vrow["w_fc1"]:vrow["w_fc1"] + H, :]            # [H, F1]
    x1 = jnp.dot(pooled, w_fc1, preferred_element_type=f32) + vec(vrow["b_fc1"], F1)
    w_fc2 = m32(off32["w_fc2"], F1)                                # [F1, H] (cols >= nc zero)
    logits = jnp.dot(x1, w_fc2, preferred_element_type=f32) + vec(vrow["b_fc2"], H)
    out_ref[...] = logits[:, 0:nc]


# ----------------------------- parameter packing -----------------------------

def _pack_rows(entries, width):
    """Pad each 2-D array to `width` lanes and a multiple-of-8 row count, stack
    along rows. Returns (slab, {name: row_offset}) with Python-int offsets."""
    slabs, offs, r = [], {}, 0
    for name, a in entries:
        a = jnp.asarray(a, jnp.float32)
        a = jnp.pad(a, ((0, (-a.shape[0]) % 8), (0, width - a.shape[1])))
        offs[name] = r
        slabs.append(a)
        r += a.shape[0]
    return jnp.concatenate(slabs, axis=0), offs


def prepare_packed_params(params, cfg, B, S):
    H, nH = cfg["hidden"], cfg["heads"]
    D = H // nH
    F1 = cfg["fc1_dim"]
    scale = 1.0 / math.sqrt(D)

    # position + token-type rows (token_type_ids assumed all-zero), pre-tiled.
    pos_type = jnp.tile(params["pos_emb"][:S] + params["type_emb"][0][None, :],
                        (B, 1))                                    # [B*S, H]

    # width-H matrix slab
    m32_entries = [("word_emb", params["word_emb"]), ("pos_type", pos_type)]
    for l, lyr in enumerate(params["layers"]):
        m32_entries.append((f"wo{l}", lyr["wo"]))
    m32_entries.append(("wp", params["wp"]))
    for l, lyr in enumerate(params["layers"]):
        m32_entries.append((f"wo2{l}", lyr["wo2"]))
    m32_entries.append(("w_fc2", params["w_fc2"]))                 # [F1, nc] -> pad to H
    mat32, off32 = _pack_rows(m32_entries, H)

    # width-3H matrix slab (fused QKV with attention scale folded into Q)
    m96_entries = []
    for l, lyr in enumerate(params["layers"]):
        wqkv = jnp.concatenate([lyr["wq"] * scale, lyr["wk"], lyr["wv"]], axis=1)
        m96_entries.append((f"wqkv{l}", wqkv))
    for l, lyr in enumerate(params["layers"]):
        m96_entries.append((f"wi{l}", lyr["wi"]))                  # [H, I] -> pad to 3H
    mat96, off96 = _pack_rows(m96_entries, 3 * H)

    # bias / LayerNorm vector rows + fc1 weight, one width-F1 slab
    names, vals = [], []

    def addvec(name, v):
        names.append(name)
        vals.append(jnp.asarray(v, jnp.float32))

    addvec("emb_ln_g", params["emb_ln_g"])
    addvec("emb_ln_b", params["emb_ln_b"])
    for l, lyr in enumerate(params["layers"]):
        addvec(f"bqkv{l}", jnp.concatenate([lyr["bq"] * scale, lyr["bk"], lyr["bv"]]))
        addvec(f"bo{l}", lyr["bo"])
        addvec(f"ln1_g{l}", lyr["ln1_g"])
        addvec(f"ln1_b{l}", lyr["ln1_b"])
        addvec(f"bi{l}", lyr["bi"])
        addvec(f"bo2{l}", lyr["bo2"])
        addvec(f"ln2_g{l}", lyr["ln2_g"])
        addvec(f"ln2_b{l}", lyr["ln2_b"])
    addvec("bp", params["bp"])
    addvec("b_fc1", params["b_fc1"])
    addvec("b_fc2", params["b_fc2"])
    bias_block = jnp.concatenate(
        [jnp.pad(v.reshape(1, -1), ((0, 0), (0, F1 - v.size))) for v in vals], axis=0)

    vec256, offv = _pack_rows([("bias", bias_block), ("w_fc1", params["w_fc1"])], F1)
    vrow = {name: offv["bias"] + i for i, name in enumerate(names)}
    vrow["w_fc1"] = offv["w_fc1"]

    return dict(mat32=mat32, mat96=mat96, vec256=vec256,
                off32=off32, off96=off96, vrow=vrow)


# ------------------------------- model wrapper --------------------------------

def init_params(key, cfg):
    H, I = cfg["hidden"], cfg["intermediate"]
    keys = iter(jax.random.split(key, 64))

    def nrm(shape):
        return 0.02 * jax.random.normal(next(keys), shape, jnp.float32)

    zeros = lambda n: jnp.zeros((n,), jnp.float32)
    ones = lambda n: jnp.ones((n,), jnp.float32)

    params = {
        "word_emb": nrm((cfg["vocab"], H)),
        "pos_emb": nrm((cfg["max_pos"], H)),
        "type_emb": nrm((cfg["type_vocab"], H)),
        "emb_ln_g": ones(H), "emb_ln_b": zeros(H),
        "layers": [],
        "wp": nrm((H, H)), "bp": zeros(H),
        "w_fc1": nrm((H, cfg["fc1_dim"])), "b_fc1": zeros(cfg["fc1_dim"]),
        "w_fc2": nrm((cfg["fc1_dim"], cfg["num_classes"])),
        "b_fc2": zeros(cfg["num_classes"]),
    }
    for _ in range(cfg["num_layers"]):
        params["layers"].append({
            "wq": nrm((H, H)), "bq": zeros(H),
            "wk": nrm((H, H)), "bk": zeros(H),
            "wv": nrm((H, H)), "bv": zeros(H),
            "wo": nrm((H, H)), "bo": zeros(H),
            "ln1_g": ones(H), "ln1_b": zeros(H),
            "wi": nrm((H, I)), "bi": zeros(I),
            "wo2": nrm((I, H)), "bo2": zeros(H),
            "ln2_g": ones(H), "ln2_b": zeros(H),
        })
    return params


def make_forward(cfg, off32, off96, vrow, B, S):
    H, nH, L = cfg["hidden"], cfg["heads"], cfg["num_layers"]
    I, F1, nc = cfg["intermediate"], cfg["fc1_dim"], cfg["num_classes"]
    vocab = cfg["vocab"]

    kernel = functools.partial(
        _bert_fused_kernel, B=B, S=S, H=H, nH=nH, L=L, I=I, vocab=vocab,
        nc=nc, F1=F1, off32=off32, off96=off96, vrow=vrow)

    vmem = pl.BlockSpec(memory_space=pltpu.MemorySpace.VMEM)
    call = pl.pallas_call(
        kernel,
        out_shape=jax.ShapeDtypeStruct((B, nc), jnp.float32),
        in_specs=[vmem] * 5,
        out_specs=vmem,
    )

    @jax.jit
    def forward(mat32, mat96, vec256, input_ids, attention_mask):
        N = B * S
        ids = input_ids.reshape(N, 1).astype(jnp.int32)
        # Additive attention mask: block-diagonal over batch + padding keys.
        keep = attention_mask.reshape(N)
        batch_id = jnp.arange(N, dtype=jnp.int32) // S
        same = batch_id[:, None] == batch_id[None, :]
        add_mask = jnp.where(same & (keep[None, :] > 0), 0.0, -1e9).astype(jnp.float32)
        return call(ids, add_mask, mat32, mat96, vec256)

    return forward


if __name__ == "__main__":
    key = jax.random.PRNGKey(0)
    pkey, ikey = jax.random.split(key)

    B, S = 2, 8
    params = init_params(pkey, CFG)
    packed = prepare_packed_params(params, CFG, B, S)      # one-time, outside jit
    fwd = make_forward(CFG, packed["off32"], packed["off96"], packed["vrow"], B, S)

    input_ids = jax.random.randint(ikey, (B, S), 0, CFG["vocab"], dtype=jnp.int32)
    attention_mask = jnp.array([[1, 1, 1, 1, 1, 1, 1, 1],
                                [1, 1, 1, 1, 1, 1, 0, 0]], dtype=jnp.int32)

    logits = fwd(packed["mat32"], packed["mat96"], packed["vec256"],
                 input_ids, attention_mask)
    jax.block_until_ready(logits)
    assert logits.shape == (B, CFG["num_classes"]), logits.shape
    assert bool(jnp.all(jnp.isfinite(logits)))
    print("KERNEL_OK")
</pallas_src>

<mosaic_0001>
module attributes {stable_mosaic.version = 11 : i64} {
  func.func @_bert_fused_kernel(%arg0: memref<16x1xi32, #tpu.memory_space<vmem>>, %arg1: memref<16x16xf32, #tpu.memory_space<vmem>>, %arg2: memref<600x32xf32, #tpu.memory_space<vmem>>, %arg3: memref<128x96xf32, #tpu.memory_space<vmem>>, %arg4: memref<56x256xf32, #tpu.memory_space<vmem>>, %arg5: memref<2x3xf32, #tpu.memory_space<vmem>>) attributes {dimension_semantics = [], scalar_prefetch = 0 : i64, scratch_operands = 0 : i64, tpu.core_type = #tpu.core_type<tc>} {
    %c0 = arith.constant 0 : index
    %c0_0 = arith.constant 0 : index
    %0 = vector.load %arg0[%c0, %c0_0] : memref<16x1xi32, #tpu.memory_space<vmem>>, vector<16x1xi32>
    %1 = tpu.iota {dimensions = array<i32: 1>} : vector<16x100xi32>
    %2 = vector.broadcast %0 : vector<16x1xi32> to vector<16x100xi32>
    %3 = arith.cmpi eq, %1, %2 : vector<16x100xi32>
    %4 = arith.extui %3 : vector<16x100xi1> to vector<16x100xi32>
    %5 = arith.sitofp %4 : vector<16x100xi32> to vector<16x100xf32>
    %c0_1 = arith.constant 0 : index
    %c0_2 = arith.constant 0 : index
    %6 = vector.load %arg2[%c0_1, %c0_2] : memref<600x32xf32, #tpu.memory_space<vmem>>, vector<100x32xf32>
    %cst = arith.constant dense<0.000000e+00> : vector<16x32xf32>
    %7 = tpu.matmul %5, %6, %cst {dimension_numbers = #tpu.dot_dimension_numbers<[1], [0], [0], [1], [0, 0, 1, 1], [], []>} : vector<16x100xf32>, vector<100x32xf32>, vector<16x32xf32> -> vector<16x32xf32>
    %c104 = arith.constant 104 : index
    %c0_3 = arith.constant 0 : index
    %8 = vector.load %arg2[%c104, %c0_3] : memref<600x32xf32, #tpu.memory_space<vmem>>, vector<16x32xf32>
    %9 = arith.addf %7, %8 : vector<16x32xf32>
    %c0_4 = arith.constant 0 : index
    %c0_5 = arith.constant 0 : index
    %10 = vector.load %arg4[%c0_4, %c0_5] : memref<56x256xf32, #tpu.memory_space<vmem>>, vector<1x32xf32>
    %c1 = arith.constant 1 : index
    %c0_6 = arith.constant 0 : index
    %11 = vector.load %arg4[%c1, %c0_6] : memref<56x256xf32, #tpu.memory_space<vmem>>, vector<1x32xf32>
    %cst_7 = arith.constant dense<0.000000e+00> : vector<16xf32>
    %12 = vector.multi_reduction <add>, %9, %cst_7 [1] : vector<16x32xf32> to vector<16xf32>
    %13 = vector.shape_cast %12 : vector<16xf32> to vector<16x1xf32>
    %cst_8 = arith.constant 3.200000e+01 : f32
    %14 = vector.broadcast %cst_8 : f32 to vector<16x1xf32>
    %15 = arith.divf %13, %14 : vector<16x1xf32>
    %16 = vector.broadcast %15 : vector<16x1xf32> to vector<16x32xf32>
    %17 = arith.subf %9, %16 : vector<16x32xf32>
    %18 = arith.mulf %17, %17 : vector<16x32xf32>
    %cst_9 = arith.constant dense<0.000000e+00> : vector<16xf32>
    %19 = vector.multi_reduction <add>, %18, %cst_9 [1] : vector<16x32xf32> to vector<16xf32>
    %20 = vector.shape_cast %19 : vector<16xf32> to vector<16x1xf32>
    %cst_10 = arith.constant 3.200000e+01 : f32
    %21 = vector.broadcast %cst_10 : f32 to vector<16x1xf32>
    %22 = arith.divf %20, %21 : vector<16x1xf32>
    %23 = vector.broadcast %15 : vector<16x1xf32> to vector<16x32xf32>
    %24 = arith.subf %9, %23 : vector<16x32xf32>
    %cst_11 = arith.constant 9.99999996E-13 : f32
    %25 = vector.broadcast %cst_11 : f32 to vector<16x1xf32>
    %26 = arith.addf %22, %25 : vector<16x1xf32>
    %27 = math.rsqrt %26 : vector<16x1xf32>
    %28 = vector.broadcast %27 : vector<16x1xf32> to vector<16x32xf32>
    %29 = arith.mulf %24, %28 : vector<16x32xf32>
    %30 = vector.broadcast %10 : vector<1x32xf32> to vector<16x32xf32>
    %31 = arith.mulf %29, %30 : vector<16x32xf32>
    %32 = vector.broadcast %11 : vector<1x32xf32> to vector<16x32xf32>
    %33 = arith.addf %31, %32 : vector<16x32xf32>
    %c0_12 = arith.constant 0 : index
    %c0_13 = arith.constant 0 : index
    %34 = vector.load %arg1[%c0_12, %c0_13] : memref<16x16xf32, #tpu.memory_space<vmem>>, vector<16x16xf32>
    %c0_14 = arith.constant 0 : index
    %c0_15 = arith.constant 0 : index
    %35 = vector.load %arg3[%c0_14, %c0_15] : memref<128x96xf32, #tpu.memory_space<vmem>>, vector<32x96xf32>
    %cst_16 = arith.constant dense<0.000000e+00> : vector<16x96xf32>
    %36 = tpu.matmul %33, %35, %cst_16 {dimension_numbers = #tpu.dot_dimension_numbers<[1], [0], [0], [1], [0, 0, 1, 1], [], []>} : vector<16x32xf32>, vector<32x96xf32>, vector<16x96xf32> -> vector<16x96xf32>
    %c2 = arith.constant 2 : index
    %c0_17 = arith.constant 0 : index
    %37 = vector.load %arg4[%c2, %c0_17] : memref<56x256xf32, #tpu.memory_space<vmem>>, vector<1x96xf32>
    %38 = vector.broadcast %37 : vector<1x96xf32> to vector<16x96xf32>
    %39 = arith.addf %36, %38 : vector<16x96xf32>
    %40 = vector.extract_strided_slice %39 {offsets = [0, 0], sizes = [16, 8], strides = [1, 1]} : vector<16x96xf32> to vector<16x8xf32>
    %41 = vector.extract_strided_slice %39 {offsets = [0, 32], sizes = [16, 8], strides = [1, 1]} : vector<16x96xf32> to vector<16x8xf32>
    %42 = vector.extract_strided_slice %39 {offsets = [0, 64], sizes = [16, 8], strides = [1, 1]} : vector<16x96xf32> to vector<16x8xf32>
    %cst_18 = arith.constant dense<0.000000e+00> : vector<16x16xf32>
    %43 = tpu.matmul %40, %41, %cst_18 {dimension_numbers = #tpu.dot_dimension_numbers<[1], [1], [0], [0], [0, 0, 1, 0], [], []>} : vector<16x8xf32>, vector<16x8xf32>, vector<16x16xf32> -> vector<16x16xf32>
    %44 = arith.addf %43, %34 : vector<16x16xf32>
    %cst_19 = arith.constant dense<0xFF800000> : vector<16xf32>
    %45 = vector.multi_reduction <maximumf>, %44, %cst_19 [1] : vector<16x16xf32> to vector<16xf32>
    %46 = vector.shape_cast %45 : vector<16xf32> to vector<16x1xf32>
    %47 = vector.broadcast %46 : vector<16x1xf32> to vector<16x16xf32>
    %48 = arith.subf %44, %47 : vector<16x16xf32>
    %49 = math.exp %48 : vector<16x16xf32>
    %cst_20 = arith.constant dense<0.000000e+00> : vector<16xf32>
    %50 = vector.multi_reduction <add>, %49, %cst_20 [1] : vector<16x16xf32> to vector<16xf32>
    %51 = vector.shape_cast %50 : vector<16xf32> to vector<16x1xf32>
    %52 = vector.broadcast %51 : vector<16x1xf32> to vector<16x16xf32>
    %53 = arith.divf %49, %52 : vector<16x16xf32>
    %cst_21 = arith.constant dense<0.000000e+00> : vector<16x8xf32>
    %54 = tpu.matmul %53, %42, %cst_21 {dimension_numbers = #tpu.dot_dimension_numbers<[1], [0], [0], [1], [0, 0, 1, 1], [], []>} : vector<16x16xf32>, vector<16x8xf32>, vector<16x8xf32> -> vector<16x8xf32>
    %55 = vector.extract_strided_slice %39 {offsets = [0, 8], sizes = [16, 8], strides = [1, 1]} : vector<16x96xf32> to vector<16x8xf32>
    %56 = vector.extract_strided_slice %39 {offsets = [0, 40], sizes = [16, 8], strides = [1, 1]} : vector<16x96xf32> to vector<16x8xf32>
    %57 = vector.extract_strided_slice %39 {offsets = [0, 72], sizes = [16, 8], strides = [1, 1]} : vector<16x96xf32> to vector<16x8xf32>
    %cst_22 = arith.constant dense<0.000000e+00> : vector<16x16xf32>
    %58 = tpu.matmul %55, %56, %cst_22 {dimension_numbers = #tpu.dot_dimension_numbers<[1], [1], [0], [0], [0, 0, 1, 0], [], []>} : vector<16x8xf32>, vector<16x8xf32>, vector<16x16xf32> -> vector<16x16xf32>
    %59 = arith.addf %58, %34 : vector<16x16xf32>
    %cst_23 = arith.constant dense<0xFF800000> : vector<16xf32>
    %60 = vector.multi_reduction <maximumf>, %59, %cst_23 [1] : vector<16x16xf32> to vector<16xf32>
    %61 = vector.shape_cast %60 : vector<16xf32> to vector<16x1xf32>
    %62 = vector.broadcast %61 : vector<16x1xf32> to vector<16x16xf32>
    %63 = arith.subf %59, %62 : vector<16x16xf32>
    %64 = math.exp %63 : vector<16x16xf32>
    %cst_24 = arith.constant dense<0.000000e+00> : vector<16xf32>
    %65 = vector.multi_reduction <add>, %64, %cst_24 [1] : vector<16x16xf32> to vector<16xf32>
    %66 = vector.shape_cast %65 : vector<16xf32> to vector<16x1xf32>
    %67 = vector.broadcast %66 : vector<16x1xf32> to vector<16x16xf32>
    %68 = arith.divf %64, %67 : vector<16x16xf32>
    %cst_25 = arith.constant dense<0.000000e+00> : vector<16x8xf32>
    %69 = tpu.matmul %68, %57, %cst_25 {dimension_numbers = #tpu.dot_dimension_numbers<[1], [0], [0], [1], [0, 0, 1, 1], [], []>} : vector<16x16xf32>, vector<16x8xf32>, vector<16x8xf32> -> vector<16x8xf32>
    %70 = vector.extract_strided_slice %39 {offsets = [0, 16], sizes = [16, 8], strides = [1, 1]} : vector<16x96xf32> to vector<16x8xf32>
    %71 = vector.extract_strided_slice %39 {offsets = [0, 48], sizes = [16, 8], strides = [1, 1]} : vector<16x96xf32> to vector<16x8xf32>
    %72 = vector.extract_strided_slice %39 {offsets = [0, 80], sizes = [16, 8], strides = [1, 1]} : vector<16x96xf32> to vector<16x8xf32>
    %cst_26 = arith.constant dense<0.000000e+00> : vector<16x16xf32>
    %73 = tpu.matmul %70, %71, %cst_26 {dimension_numbers = #tpu.dot_dimension_numbers<[1], [1], [0], [0], [0, 0, 1, 0], [], []>} : vector<16x8xf32>, vector<16x8xf32>, vector<16x16xf32> -> vector<16x16xf32>
    %74 = arith.addf %73, %34 : vector<16x16xf32>
    %cst_27 = arith.constant dense<0xFF800000> : vector<16xf32>
    %75 = vector.multi_reduction <maximumf>, %74, %cst_27 [1] : vector<16x16xf32> to vector<16xf32>
    %76 = vector.shape_cast %75 : vector<16xf32> to vector<16x1xf32>
    %77 = vector.broadcast %76 : vector<16x1xf32> to vector<16x16xf32>
    %78 = arith.subf %74, %77 : vector<16x16xf32>
    %79 = math.exp %78 : vector<16x16xf32>
    %cst_28 = arith.constant dense<0.000000e+00> : vector<16xf32>
    %80 = vector.multi_reduction <add>, %79, %cst_28 [1] : vector<16x16xf32> to vector<16xf32>
    %81 = vector.shape_cast %80 : vector<16xf32> to vector<16x1xf32>
    %82 = vector.broadcast %81 : vector<16x1xf32> to vector<16x16xf32>
    %83 = arith.divf %79, %82 : vector<16x16xf32>
    %cst_29 = arith.constant dense<0.000000e+00> : vector<16x8xf32>
    %84 = tpu.matmul %83, %72, %cst_29 {dimension_numbers = #tpu.dot_dimension_numbers<[1], [0], [0], [1], [0, 0, 1, 1], [], []>} : vector<16x16xf32>, vector<16x8xf32>, vector<16x8xf32> -> vector<16x8xf32>
    %85 = vector.extract_strided_slice %39 {offsets = [0, 24], sizes = [16, 8], strides = [1, 1]} : vector<16x96xf32> to vector<16x8xf32>
    %86 = vector.extract_strided_slice %39 {offsets = [0, 56], sizes = [16, 8], strides = [1, 1]} : vector<16x96xf32> to vector<16x8xf32>
    %87 = vector.extract_strided_slice %39 {offsets = [0, 88], sizes = [16, 8], strides = [1, 1]} : vector<16x96xf32> to vector<16x8xf32>
    %cst_30 = arith.constant dense<0.000000e+00> : vector<16x16xf32>
    %88 = tpu.matmul %85, %86, %cst_30 {dimension_numbers = #tpu.dot_dimension_numbers<[1], [1], [0], [0], [0, 0, 1, 0], [], []>} : vector<16x8xf32>, vector<16x8xf32>, vector<16x16xf32> -> vector<16x16xf32>
    %89 = arith.addf %88, %34 : vector<16x16xf32>
    %cst_31 = arith.constant dense<0xFF800000> : vector<16xf32>
    %90 = vector.multi_reduction <maximumf>, %89, %cst_31 [1] : vector<16x16xf32> to vector<16xf32>
    %91 = vector.shape_cast %90 : vector<16xf32> to vector<16x1xf32>
    %92 = vector.broadcast %91 : vector<16x1xf32> to vector<16x16xf32>
    %93 = arith.subf %89, %92 : vector<16x16xf32>
    %94 = math.exp %93 : vector<16x16xf32>
    %cst_32 = arith.constant dense<0.000000e+00> : vector<16xf32>
    %95 = vector.multi_reduction <add>, %94, %cst_32 [1] : vector<16x16xf32> to vector<16xf32>
    %96 = vector.shape_cast %95 : vector<16xf32> to vector<16x1xf32>
    %97 = vector.broadcast %96 : vector<16x1xf32> to vector<16x16xf32>
    %98 = arith.divf %94, %97 : vector<16x16xf32>
    %cst_33 = arith.constant dense<0.000000e+00> : vector<16x8xf32>
    %99 = tpu.matmul %98, %87, %cst_33 {dimension_numbers = #tpu.dot_dimension_numbers<[1], [0], [0], [1], [0, 0, 1, 1], [], []>} : vector<16x16xf32>, vector<16x8xf32>, vector<16x8xf32> -> vector<16x8xf32>
    %100 = tpu.concatenate %54, %69, %84, %99 in 1 : vector<16x8xf32>, vector<16x8xf32>, vector<16x8xf32>, vector<16x8xf32> -> vector<16x32xf32>
    %c120 = arith.constant 120 : index
    %c0_34 = arith.constant 0 : index
    %101 = vector.load %arg2[%c120, %c0_34] : memref<600x32xf32, #tpu.memory_space<vmem>>, vector<32x32xf32>
    %cst_35 = arith.constant dense<0.000000e+00> : vector<16x32xf32>
    %102 = tpu.matmul %100, %101, %cst_35 {dimension_numbers = #tpu.dot_dimension_numbers<[1], [0], [0], [1], [0, 0, 1, 1], [], []>} : vector<16x32xf32>, vector<32x32xf32>, vector<16x32xf32> -> vector<16x32xf32>
    %c3 = arith.constant 3 : index
    %c0_36 = arith.constant 0 : index
    %103 = vector.load %arg4[%c3, %c0_36] : memref<56x256xf32, #tpu.memory_space<vmem>>, vector<1x32xf32>
    %104 = vector.broadcast %103 : vector<1x32xf32> to vector<16x32xf32>
    %105 = arith.addf %102, %104 : vector<16x32xf32>
    %106 = arith.addf %33, %105 : vector<16x32xf32>
    %c4 = arith.constant 4 : index
    %c0_37 = arith.constant 0 : index
    %107 = vector.load %arg4[%c4, %c0_37] : memref<56x256xf32, #tpu.memory_space<vmem>>, vector<1x32xf32>
    %c5 = arith.constant 5 : index
    %c0_38 = arith.constant 0 : index
    %108 = vector.load %arg4[%c5, %c0_38] : memref<56x256xf32, #tpu.memory_space<vmem>>, vector<1x32xf32>
    %cst_39 = arith.constant dense<0.000000e+00> : vector<16xf32>
    %109 = vector.multi_reduction <add>, %106, %cst_39 [1] : vector<16x32xf32> to vector<16xf32>
    %110 = vector.shape_cast %109 : vector<16xf32> to vector<16x1xf32>
    %cst_40 = arith.constant 3.200000e+01 : f32
    %111 = vector.broadcast %cst_40 : f32 to vector<16x1xf32>
    %112 = arith.divf %110, %111 : vector<16x1xf32>
    %113 = vector.broadcast %112 : vector<16x1xf32> to vector<16x32xf32>
    %114 = arith.subf %106, %113 : vector<16x32xf32>
    %115 = arith.mulf %114, %114 : vector<16x32xf32>
    %cst_41 = arith.constant dense<0.000000e+00> : vector<16xf32>
    %116 = vector.multi_reduction <add>, %115, %cst_41 [1] : vector<16x32xf32> to vector<16xf32>
    %117 = vector.shape_cast %116 : vector<16xf32> to vector<16x1xf32>
    %cst_42 = arith.constant 3.200000e+01 : f32
    %118 = vector.broadcast %cst_42 : f32 to vector<16x1xf32>
    %119 = arith.divf %117, %118 : vector<16x1xf32>
    %120 = vector.broadcast %112 : vector<16x1xf32> to vector<16x32xf32>
    %121 = arith.subf %106, %120 : vector<16x32xf32>
    %cst_43 = arith.constant 9.99999996E-13 : f32
    %122 = vector.broadcast %cst_43 : f32 to vector<16x1xf32>
    %123 = arith.addf %119, %122 : vector<16x1xf32>
    %124 = math.rsqrt %123 : vector<16x1xf32>
    %125 = vector.broadcast %124 : vector<16x1xf32> to vector<16x32xf32>
    %126 = arith.mulf %121, %125 : vector<16x32xf32>
    %127 = vector.broadcast %107 : vector<1x32xf32> to vector<16x32xf32>
    %128 = arith.mulf %126, %127 : vector<16x32xf32>
    %129 = vector.broadcast %108 : vector<1x32xf32> to vector<16x32xf32>
    %130 = arith.addf %128, %129 : vector<16x32xf32>
    %c64 = arith.constant 64 : index
    %c0_44 = arith.constant 0 : index
    %131 = vector.load %arg3[%c64, %c0_44] : memref<128x96xf32, #tpu.memory_space<vmem>>, vector<32x64xf32>
    %cst_45 = arith.constant dense<0.000000e+00> : vector<16x64xf32>
    %132 = tpu.matmul %130, %131, %cst_45 {dimension_numbers = #tpu.dot_dimension_numbers<[1], [0], [0], [1], [0, 0, 1, 1], [], []>} : vector<16x32xf32>, vector<32x64xf32>, vector<16x64xf32> -> vector<16x64xf32>
    %c6 = arith.constant 6 : index
    %c0_46 = arith.constant 0 : index
    %133 = vector.load %arg4[%c6, %c0_46] : memref<56x256xf32, #tpu.memory_space<vmem>>, vector<1x64xf32>
    %134 = vector.broadcast %133 : vector<1x64xf32> to vector<16x64xf32>
    %135 = arith.addf %132, %134 : vector<16x64xf32>
    %cst_47 = arith.constant 5.000000e-01 : f32
    %136 = vector.broadcast %cst_47 : f32 to vector<16x64xf32>
    %137 = arith.mulf %136, %135 : vector<16x64xf32>
    %cst_48 = arith.constant 0.707106769 : f32
    %138 = vector.broadcast %cst_48 : f32 to vector<16x64xf32>
    %139 = arith.mulf %135, %138 : vector<16x64xf32>
    %cst_49 = arith.constant 0.000000e+00 : f32
    %140 = vector.broadcast %cst_49 : f32 to vector<16x64xf32>
    %141 = arith.cmpf oge, %139, %140 : vector<16x64xf32>
    %cst_50 = arith.constant 1.000000e+00 : f32
    %cst_51 = arith.constant -1.000000e+00 : f32
    %142 = vector.broadcast %cst_50 : f32 to vector<16x64xf32>
    %143 = vector.broadcast %cst_51 : f32 to vector<16x64xf32>
    %144 = arith.select %141, %142, %143 : vector<16x64xi1>, vector<16x64xf32>
    %145 = math.absf %139 : vector<16x64xf32>
    %cst_52 = arith.constant 0.327591091 : f32
    %146 = vector.broadcast %cst_52 : f32 to vector<16x64xf32>
    %147 = arith.mulf %146, %145 : vector<16x64xf32>
    %cst_53 = arith.constant 1.000000e+00 : f32
    %148 = vector.broadcast %cst_53 : f32 to vector<16x64xf32>
    %149 = arith.addf %148, %147 : vector<16x64xf32>
    %cst_54 = arith.constant 1.000000e+00 : f32
    %150 = vector.broadcast %cst_54 : f32 to vector<16x64xf32>
    %151 = arith.divf %150, %149 : vector<16x64xf32>
    %cst_55 = arith.constant 1.06140542 : f32
    %152 = vector.broadcast %cst_55 : f32 to vector<16x64xf32>
    %153 = arith.mulf %152, %151 : vector<16x64xf32>
    %cst_56 = arith.constant -1.45315206 : f32
    %154 = vector.broadcast %cst_56 : f32 to vector<16x64xf32>
    %155 = arith.addf %153, %154 : vector<16x64xf32>
    %156 = arith.mulf %155, %151 : vector<16x64xf32>
    %cst_57 = arith.constant 1.42141378 : f32
    %157 = vector.broadcast %cst_57 : f32 to vector<16x64xf32>
    %158 = arith.addf %156, %157 : vector<16x64xf32>
    %159 = arith.mulf %158, %151 : vector<16x64xf32>
    %cst_58 = arith.constant -0.284496725 : f32
    %160 = vector.broadcast %cst_58 : f32 to vector<16x64xf32>
    %161 = arith.addf %159, %160 : vector<16x64xf32>
    %162 = arith.mulf %161, %151 : vector<16x64xf32>
    %cst_59 = arith.constant 0.254829586 : f32
    %163 = vector.broadcast %cst_59 : f32 to vector<16x64xf32>
    %164 = arith.addf %162, %163 : vector<16x64xf32>
    %165 = arith.mulf %164, %151 : vector<16x64xf32>
    %cst_60 = arith.constant 0.000000e+00 : f32
    %166 = vector.broadcast %cst_60 : f32 to vector<16x64xf32>
    %167 = arith.subf %166, %145 : vector<16x64xf32>
    %168 = arith.mulf %167, %145 : vector<16x64xf32>
    %169 = math.exp %168 : vector<16x64xf32>
    %170 = arith.mulf %165, %169 : vector<16x64xf32>
    %cst_61 = arith.constant 1.000000e+00 : f32
    %171 = vector.broadcast %cst_61 : f32 to vector<16x64xf32>
    %172 = arith.subf %171, %170 : vector<16x64xf32>
    %173 = arith.mulf %144, %172 : vector<16x64xf32>
    %cst_62 = arith.constant 1.000000e+00 : f32
    %174 = vector.broadcast %cst_62 : f32 to vector<16x64xf32>
    %175 = arith.addf %174, %173 : vector<16x64xf32>
    %176 = arith.mulf %137, %175 : vector<16x64xf32>
    %c216 = arith.constant 216 : index
    %c0_63 = arith.constant 0 : index
    %177 = vector.load %arg2[%c216, %c0_63] : memref<600x32xf32, #tpu.memory_space<vmem>>, vector<64x32xf32>
    %cst_64 = arith.constant dense<0.000000e+00> : vector<16x32xf32>
    %178 = tpu.matmul %176, %177, %cst_64 {dimension_numbers = #tpu.dot_dimension_numbers<[1], [0], [0], [1], [0, 0, 1, 1], [], []>} : vector<16x64xf32>, vector<64x32xf32>, vector<16x32xf32> -> vector<16x32xf32>
    %c7 = arith.constant 7 : index
    %c0_65 = arith.constant 0 : index
    %179 = vector.load %arg4[%c7, %c0_65] : memref<56x256xf32, #tpu.memory_space<vmem>>, vector<1x32xf32>
    %180 = vector.broadcast %179 : vector<1x32xf32> to vector<16x32xf32>
    %181 = arith.addf %178, %180 : vector<16x32xf32>
    %182 = arith.addf %130, %181 : vector<16x32xf32>
    %c8 = arith.constant 8 : index
    %c0_66 = arith.constant 0 : index
    %183 = vector.load %arg4[%c8, %c0_66] : memref<56x256xf32, #tpu.memory_space<vmem>>, vector<1x32xf32>
    %c9 = arith.constant 9 : index
    %c0_67 = arith.constant 0 : index
    %184 = vector.load %arg4[%c9, %c0_67] : memref<56x256xf32, #tpu.memory_space<vmem>>, vector<1x32xf32>
    %cst_68 = arith.constant dense<0.000000e+00> : vector<16xf32>
    %185 = vector.multi_reduction <add>, %182, %cst_68 [1] : vector<16x32xf32> to vector<16xf32>
    %186 = vector.shape_cast %185 : vector<16xf32> to vector<16x1xf32>
    %cst_69 = arith.constant 3.200000e+01 : f32
    %187 = vector.broadcast %cst_69 : f32 to vector<16x1xf32>
    %188 = arith.divf %186, %187 : vector<16x1xf32>
    %189 = vector.broadcast %188 : vector<16x1xf32> to vector<16x32xf32>
    %190 = arith.subf %182, %189 : vector<16x32xf32>
    %191 = arith.mulf %190, %190 : vector<16x32xf32>
    %cst_70 = arith.constant dense<0.000000e+00> : vector<16xf32>
    %192 = vector.multi_reduction <add>, %191, %cst_70 [1] : vector<16x32xf32> to vector<16xf32>
    %193 = vector.shape_cast %192 : vector<16xf32> to vector<16x1xf32>
    %cst_71 = arith.constant 3.200000e+01 : f32
    %194 = vector.broadcast %cst_71 : f32 to vector<16x1xf32>
    %195 = arith.divf %193, %194 : vector<16x1xf32>
    %196 = vector.broadcast %188 : vector<16x1xf32> to vector<16x32xf32>
    %197 = arith.subf %182, %196 : vector<16x32xf32>
    %cst_72 = arith.constant 9.99999996E-13 : f32
    %198 = vector.broadcast %cst_72 : f32 to vector<16x1xf32>
    %199 = arith.addf %195, %198 : vector<16x1xf32>
    %200 = math.rsqrt %199 : vector<16x1xf32>
    %201 = vector.broadcast %200 : vector<16x1xf32> to vector<16x32xf32>
    %202 = arith.mulf %197, %201 : vector<16x32xf32>
    %203 = vector.broadcast %183 : vector<1x32xf32> to vector<16x32xf32>
    %204 = arith.mulf %202, %203 : vector<16x32xf32>
    %205 = vector.broadcast %184 : vector<1x32xf32> to vector<16x32xf32>
    %206 = arith.addf %204, %205 : vector<16x32xf32>
    %c32 = arith.constant 32 : index
    %c0_73 = arith.constant 0 : index
    %207 = vector.load %arg3[%c32, %c0_73] : memref<128x96xf32, #tpu.memory_space<vmem>>, vector<32x96xf32>
    %cst_74 = arith.constant dense<0.000000e+00> : vector<16x96xf32>
    %208 = tpu.matmul %206, %207, %cst_74 {dimension_numbers = #tpu.dot_dimension_numbers<[1], [0], [0], [1], [0, 0, 1, 1], [], []>} : vector<16x32xf32>, vector<32x96xf32>, vector<16x96xf32> -> vector<16x96xf32>
    %c10 = arith.constant 10 : index
    %c0_75 = arith.constant 0 : index
    %209 = vector.load %arg4[%c10, %c0_75] : memref<56x256xf32, #tpu.memory_space<vmem>>, vector<1x96xf32>
    %210 = vector.broadcast %209 : vector<1x96xf32> to vector<16x96xf32>
    %211 = arith.addf %208, %210 : vector<16x96xf32>
    %212 = vector.extract_strided_slice %211 {offsets = [0, 0], sizes = [16, 8], strides = [1, 1]} : vector<16x96xf32> to vector<16x8xf32>
    %213 = vector.extract_strided_slice %211 {offsets = [0, 32], sizes = [16, 8], strides = [1, 1]} : vector<16x96xf32> to vector<16x8xf32>
    %214 = vector.extract_strided_slice %211 {offsets = [0, 64], sizes = [16, 8], strides = [1, 1]} : vector<16x96xf32> to vector<16x8xf32>
    %cst_76 = arith.constant dense<0.000000e+00> : vector<16x16xf32>
    %215 = tpu.matmul %212, %213, %cst_76 {dimension_numbers = #tpu.dot_dimension_numbers<[1], [1], [0], [0], [0, 0, 1, 0], [], []>} : vector<16x8xf32>, vector<16x8xf32>, vector<16x16xf32> -> vector<16x16xf32>
    %216 = arith.addf %215, %34 : vector<16x16xf32>
    %cst_77 = arith.constant dense<0xFF800000> : vector<16xf32>
    %217 = vector.multi_reduction <maximumf>, %216, %cst_77 [1] : vector<16x16xf32> to vector<16xf32>
    %218 = vector.shape_cast %217 : vector<16xf32> to vector<16x1xf32>
    %219 = vector.broadcast %218 : vector<16x1xf32> to vector<16x16xf32>
    %220 = arith.subf %216, %219 : vector<16x16xf32>
    %221 = math.exp %220 : vector<16x16xf32>
    %cst_78 = arith.constant dense<0.000000e+00> : vector<16xf32>
    %222 = vector.multi_reduction <add>, %221, %cst_78 [1] : vector<16x16xf32> to vector<16xf32>
    %223 = vector.shape_cast %222 : vector<16xf32> to vector<16x1xf32>
    %224 = vector.broadcast %223 : vector<16x1xf32> to vector<16x16xf32>
    %225 = arith.divf %221, %224 : vector<16x16xf32>
    %cst_79 = arith.constant dense<0.000000e+00> : vector<16x8xf32>
    %226 = tpu.matmul %225, %214, %cst_79 {dimension_numbers = #tpu.dot_dimension_numbers<[1], [0], [0], [1], [0, 0, 1, 1], [], []>} : vector<16x16xf32>, vector<16x8xf32>, vector<16x8xf32> -> vector<16x8xf32>
    %227 = vector.extract_strided_slice %211 {offsets = [0, 8], sizes = [16, 8], strides = [1, 1]} : vector<16x96xf32> to vector<16x8xf32>
    %228 = vector.extract_strided_slice %211 {offsets = [0, 40], sizes = [16, 8], strides = [1, 1]} : vector<16x96xf32> to vector<16x8xf32>
    %229 = vector.extract_strided_slice %211 {offsets = [0, 72], sizes = [16, 8], strides = [1, 1]} : vector<16x96xf32> to vector<16x8xf32>
    %cst_80 = arith.constant dense<0.000000e+00> : vector<16x16xf32>
    %230 = tpu.matmul %227, %228, %cst_80 {dimension_numbers = #tpu.dot_dimension_numbers<[1], [1], [0], [0], [0, 0, 1, 0], [], []>} : vector<16x8xf32>, vector<16x8xf32>, vector<16x16xf32> -> vector<16x16xf32>
    %231 = arith.addf %230, %34 : vector<16x16xf32>
    %cst_81 = arith.constant dense<0xFF800000> : vector<16xf32>
    %232 = vector.multi_reduction <maximumf>, %231, %cst_81 [1] : vector<16x16xf32> to vector<16xf32>
    %233 = vector.shape_cast %232 : vector<16xf32> to vector<16x1xf32>
    %234 = vector.broadcast %233 : vector<16x1xf32> to vector<16x16xf32>
    %235 = arith.subf %231, %234 : vector<16x16xf32>
    %236 = math.exp %235 : vector<16x16xf32>
    %cst_82 = arith.constant dense<0.000000e+00> : vector<16xf32>
    %237 = vector.multi_reduction <add>, %236, %cst_82 [1] : vector<16x16xf32> to vector<16xf32>
    %238 = vector.shape_cast %237 : vector<16xf32> to vector<16x1xf32>
    %239 = vector.broadcast %238 : vector<16x1xf32> to vector<16x16xf32>
    %240 = arith.divf %236, %239 : vector<16x16xf32>
    %cst_83 = arith.constant dense<0.000000e+00> : vector<16x8xf32>
    %241 = tpu.matmul %240, %229, %cst_83 {dimension_numbers = #tpu.dot_dimension_numbers<[1], [0], [0], [1], [0, 0, 1, 1], [], []>} : vector<16x16xf32>, vector<16x8xf32>, vector<16x8xf32> -> vector<16x8xf32>
    %242 = vector.extract_strided_slice %211 {offsets = [0, 16], sizes = [16, 8], strides = [1, 1]} : vector<16x96xf32> to vector<16x8xf32>
    %243 = vector.extract_strided_slice %211 {offsets = [0, 48], sizes = [16, 8], strides = [1, 1]} : vector<16x96xf32> to vector<16x8xf32>
    %244 = vector.extract_strided_slice %211 {offsets = [0, 80], sizes = [16, 8], strides = [1, 1]} : vector<16x96xf32> to vector<16x8xf32>
    %cst_84 = arith.constant dense<0.000000e+00> : vector<16x16xf32>
    %245 = tpu.matmul %242, %243, %cst_84 {dimension_numbers = #tpu.dot_dimension_numbers<[1], [1], [0], [0], [0, 0, 1, 0], [], []>} : vector<16x8xf32>, vector<16x8xf32>, vector<16x16xf32> -> vector<16x16xf32>
    %246 = arith.addf %245, %34 : vector<16x16xf32>
    %cst_85 = arith.constant dense<0xFF800000> : vector<16xf32>
    %247 = vector.multi_reduction <maximumf>, %246, %cst_85 [1] : vector<16x16xf32> to vector<16xf32>
    %248 = vector.shape_cast %247 : vector<16xf32> to vector<16x1xf32>
    %249 = vector.broadcast %248 : vector<16x1xf32> to vector<16x16xf32>
    %250 = arith.subf %246, %249 : vector<16x16xf32>
    %251 = math.exp %250 : vector<16x16xf32>
    %cst_86 = arith.constant dense<0.000000e+00> : vector<16xf32>
    %252 = vector.multi_reduction <add>, %251, %cst_86 [1] : vector<16x16xf32> to vector<16xf32>
    %253 = vector.shape_cast %252 : vector<16xf32> to vector<16x1xf32>
    %254 = vector.broadcast %253 : vector<16x1xf32> to vector<16x16xf32>
    %255 = arith.divf %251, %254 : vector<16x16xf32>
    %cst_87 = arith.constant dense<0.000000e+00> : vector<16x8xf32>
    %256 = tpu.matmul %255, %244, %cst_87 {dimension_numbers = #tpu.dot_dimension_numbers<[1], [0], [0], [1], [0, 0, 1, 1], [], []>} : vector<16x16xf32>, vector<16x8xf32>, vector<16x8xf32> -> vector<16x8xf32>
    %257 = vector.extract_strided_slice %211 {offsets = [0, 24], sizes = [16, 8], strides = [1, 1]} : vector<16x96xf32> to vector<16x8xf32>
    %258 = vector.extract_strided_slice %211 {offsets = [0, 56], sizes = [16, 8], strides = [1, 1]} : vector<16x96xf32> to vector<16x8xf32>
    %259 = vector.extract_strided_slice %211 {offsets = [0, 88], sizes = [16, 8], strides = [1, 1]} : vector<16x96xf32> to vector<16x8xf32>
    %cst_88 = arith.constant dense<0.000000e+00> : vector<16x16xf32>
    %260 = tpu.matmul %257, %258, %cst_88 {dimension_numbers = #tpu.dot_dimension_numbers<[1], [1], [0], [0], [0, 0, 1, 0], [], []>} : vector<16x8xf32>, vector<16x8xf32>, vector<16x16xf32> -> vector<16x16xf32>
    %261 = arith.addf %260, %34 : vector<16x16xf32>
    %cst_89 = arith.constant dense<0xFF800000> : vector<16xf32>
    %262 = vector.multi_reduction <maximumf>, %261, %cst_89 [1] : vector<16x16xf32> to vector<16xf32>
    %263 = vector.shape_cast %262 : vector<16xf32> to vector<16x1xf32>
    %264 = vector.broadcast %263 : vector<16x1xf32> to vector<16x16xf32>
    %265 = arith.subf %261, %264 : vector<16x16xf32>
    %266 = math.exp %265 : vector<16x16xf32>
    %cst_90 = arith.constant dense<0.000000e+00> : vector<16xf32>
    %267 = vector.multi_reduction <add>, %266, %cst_90 [1] : vector<16x16xf32> to vector<16xf32>
    %268 = vector.shape_cast %267 : vector<16xf32> to vector<16x1xf32>
    %269 = vector.broadcast %268 : vector<16x1xf32> to vector<16x16xf32>
    %270 = arith.divf %266, %269 : vector<16x16xf32>
    %cst_91 = arith.constant dense<0.000000e+00> : vector<16x8xf32>
    %271 = tpu.matmul %270, %259, %cst_91 {dimension_numbers = #tpu.dot_dimension_numbers<[1], [0], [0], [1], [0, 0, 1, 1], [], []>} : vector<16x16xf32>, vector<16x8xf32>, vector<16x8xf32> -> vector<16x8xf32>
    %272 = tpu.concatenate %226, %241, %256, %271 in 1 : vector<16x8xf32>, vector<16x8xf32>, vector<16x8xf32>, vector<16x8xf32> -> vector<16x32xf32>
    %c152 = arith.constant 152 : index
    %c0_92 = arith.constant 0 : index
    %273 = vector.load %arg2[%c152, %c0_92] : memref<600x32xf32, #tpu.memory_space<vmem>>, vector<32x32xf32>
    %cst_93 = arith.constant dense<0.000000e+00> : vector<16x32xf32>
    %274 = tpu.matmul %272, %273, %cst_93 {dimension_numbers = #tpu.dot_dimension_numbers<[1], [0], [0], [1], [0, 0, 1, 1], [], []>} : vector<16x32xf32>, vector<32x32xf32>, vector<16x32xf32> -> vector<16x32xf32>
    %c11 = arith.constant 11 : index
    %c0_94 = arith.constant 0 : index
    %275 = vector.load %arg4[%c11, %c0_94] : memref<56x256xf32, #tpu.memory_space<vmem>>, vector<1x32xf32>
    %276 = vector.broadcast %275 : vector<1x32xf32> to vector<16x32xf32>
    %277 = arith.addf %274, %276 : vector<16x32xf32>
    %278 = arith.addf %206, %277 : vector<16x32xf32>
    %c12 = arith.constant 12 : index
    %c0_95 = arith.constant 0 : index
    %279 = vector.load %arg4[%c12, %c0_95] : memref<56x256xf32, #tpu.memory_space<vmem>>, vector<1x32xf32>
    %c13 = arith.constant 13 : index
    %c0_96 = arith.constant 0 : index
    %280 = vector.load %arg4[%c13, %c0_96] : memref<56x256xf32, #tpu.memory_space<vmem>>, vector<1x32xf32>
    %cst_97 = arith.constant dense<0.000000e+00> : vector<16xf32>
    %281 = vector.multi_reduction <add>, %278, %cst_97 [1] : vector<16x32xf32> to vector<16xf32>
    %282 = vector.shape_cast %281 : vector<16xf32> to vector<16x1xf32>
    %cst_98 = arith.constant 3.200000e+01 : f32
    %283 = vector.broadcast %cst_98 : f32 to vector<16x1xf32>
    %284 = arith.divf %282, %283 : vector<16x1xf32>
    %285 = vector.broadcast %284 : vector<16x1xf32> to vector<16x32xf32>
    %286 = arith.subf %278, %285 : vector<16x32xf32>
    %287 = arith.mulf %286, %286 : vector<16x32xf32>
    %cst_99 = arith.constant dense<0.000000e+00> : vector<16xf32>
    %288 = vector.multi_reduction <add>, %287, %cst_99 [1] : vector<16x32xf32> to vector<16xf32>
    %289 = vector.shape_cast %288 : vector<16xf32> to vector<16x1xf32>
    %cst_100 = arith.constant 3.200000e+01 : f32
    %290 = vector.broadcast %cst_100 : f32 to vector<16x1xf32>
    %291 = arith.divf %289, %290 : vector<16x1xf32>
    %292 = vector.broadcast %284 : vector<16x1xf32> to vector<16x32xf32>
    %293 = arith.subf %278, %292 : vector<16x32xf32>
    %cst_101 = arith.constant 9.99999996E-13 : f32
    %294 = vector.broadcast %cst_101 : f32 to vector<16x1xf32>
    %295 = arith.addf %291, %294 : vector<16x1xf32>
    %296 = math.rsqrt %295 : vector<16x1xf32>
    %297 = vector.broadcast %296 : vector<16x1xf32> to vector<16x32xf32>
    %298 = arith.mulf %293, %297 : vector<16x32xf32>
    %299 = vector.broadcast %279 : vector<1x32xf32> to vector<16x32xf32>
    %300 = arith.mulf %298, %299 : vector<16x32xf32>
    %301 = vector.broadcast %280 : vector<1x32xf32> to vector<16x32xf32>
    %302 = arith.addf %300, %301 : vector<16x32xf32>
    %c96 = arith.constant 96 : index
    %c0_102 = arith.constant 0 : index
    %303 = vector.load %arg3[%c96, %c0_102] : memref<128x96xf32, #tpu.memory_space<vmem>>, vector<32x64xf32>
    %cst_103 = arith.constant dense<0.000000e+00> : vector<16x64xf32>
    %304 = tpu.matmul %302, %303, %cst_103 {dimension_numbers = #tpu.dot_dimension_numbers<[1], [0], [0], [1], [0, 0, 1, 1], [], []>} : vector<16x32xf32>, vector<32x64xf32>, vector<16x64xf32> -> vector<16x64xf32>
    %c14 = arith.constant 14 : index
    %c0_104 = arith.constant 0 : index
    %305 = vector.load %arg4[%c14, %c0_104] : memref<56x256xf32, #tpu.memory_space<vmem>>, vector<1x64xf32>
    %306 = vector.broadcast %305 : vector<1x64xf32> to vector<16x64xf32>
    %307 = arith.addf %304, %306 : vector<16x64xf32>
    %cst_105 = arith.constant 5.000000e-01 : f32
    %308 = vector.broadcast %cst_105 : f32 to vector<16x64xf32>
    %309 = arith.mulf %308, %307 : vector<16x64xf32>
    %cst_106 = arith.constant 0.707106769 : f32
    %310 = vector.broadcast %cst_106 : f32 to vector<16x64xf32>
    %311 = arith.mulf %307, %310 : vector<16x64xf32>
    %cst_107 = arith.constant 0.000000e+00 : f32
    %312 = vector.broadcast %cst_107 : f32 to vector<16x64xf32>
    %313 = arith.cmpf oge, %311, %312 : vector<16x64xf32>
    %cst_108 = arith.constant 1.000000e+00 : f32
    %cst_109 = arith.constant -1.000000e+00 : f32
    %314 = vector.broadcast %cst_108 : f32 to vector<16x64xf32>
    %315 = vector.broadcast %cst_109 : f32 to vector<16x64xf32>
    %316 = arith.select %313, %314, %315 : vector<16x64xi1>, vector<16x64xf32>
    %317 = math.absf %311 : vector<16x64xf32>
    %cst_110 = arith.constant 0.327591091 : f32
    %318 = vector.broadcast %cst_110 : f32 to vector<16x64xf32>
    %319 = arith.mulf %318, %317 : vector<16x64xf32>
    %cst_111 = arith.constant 1.000000e+00 : f32
    %320 = vector.broadcast %cst_111 : f32 to vector<16x64xf32>
    %321 = arith.addf %320, %319 : vector<16x64xf32>
    %cst_112 = arith.constant 1.000000e+00 : f32
    %322 = vector.broadcast %cst_112 : f32 to vector<16x64xf32>
    %323 = arith.divf %322, %321 : vector<16x64xf32>
    %cst_113 = arith.constant 1.06140542 : f32
    %324 = vector.broadcast %cst_113 : f32 to vector<16x64xf32>
    %325 = arith.mulf %324, %323 : vector<16x64xf32>
    %cst_114 = arith.constant -1.45315206 : f32
    %326 = vector.broadcast %cst_114 : f32 to vector<16x64xf32>
    %327 = arith.addf %325, %326 : vector<16x64xf32>
    %328 = arith.mulf %327, %323 : vector<16x64xf32>
    %cst_115 = arith.constant 1.42141378 : f32
    %329 = vector.broadcast %cst_115 : f32 to vector<16x64xf32>
    %330 = arith.addf %328, %329 : vector<16x64xf32>
    %331 = arith.mulf %330, %323 : vector<16x64xf32>
    %cst_116 = arith.constant -0.284496725 : f32
    %332 = vector.broadcast %cst_116 : f32 to vector<16x64xf32>
    %333 = arith.addf %331, %332 : vector<16x64xf32>
    %334 = arith.mulf %333, %323 : vector<16x64xf32>
    %cst_117 = arith.constant 0.254829586 : f32
    %335 = vector.broadcast %cst_117 : f32 to vector<16x64xf32>
    %336 = arith.addf %334, %335 : vector<16x64xf32>
    %337 = arith.mulf %336, %323 : vector<16x64xf32>
    %cst_118 = arith.constant 0.000000e+00 : f32
    %338 = vector.broadcast %cst_118 : f32 to vector<16x64xf32>
    %339 = arith.subf %338, %317 : vector<16x64xf32>
    %340 = arith.mulf %339, %317 : vector<16x64xf32>
    %341 = math.exp %340 : vector<16x64xf32>
    %342 = arith.mulf %337, %341 : vector<16x64xf32>
    %cst_119 = arith.constant 1.000000e+00 : f32
    %343 = vector.broadcast %cst_119 : f32 to vector<16x64xf32>
    %344 = arith.subf %343, %342 : vector<16x64xf32>
    %345 = arith.mulf %316, %344 : vector<16x64xf32>
    %cst_120 = arith.constant 1.000000e+00 : f32
    %346 = vector.broadcast %cst_120 : f32 to vector<16x64xf32>
    %347 = arith.addf %346, %345 : vector<16x64xf32>
    %348 = arith.mulf %309, %347 : vector<16x64xf32>
    %c280 = arith.constant 280 : index
    %c0_121 = arith.constant 0 : index
    %349 = vector.load %arg2[%c280, %c0_121] : memref<600x32xf32, #tpu.memory_space<vmem>>, vector<64x32xf32>
    %cst_122 = arith.constant dense<0.000000e+00> : vector<16x32xf32>
    %350 = tpu.matmul %348, %349, %cst_122 {dimension_numbers = #tpu.dot_dimension_numbers<[1], [0], [0], [1], [0, 0, 1, 1], [], []>} : vector<16x64xf32>, vector<64x32xf32>, vector<16x32xf32> -> vector<16x32xf32>
    %c15 = arith.constant 15 : index
    %c0_123 = arith.constant 0 : index
    %351 = vector.load %arg4[%c15, %c0_123] : memref<56x256xf32, #tpu.memory_space<vmem>>, vector<1x32xf32>
    %352 = vector.broadcast %351 : vector<1x32xf32> to vector<16x32xf32>
    %353 = arith.addf %350, %352 : vector<16x32xf32>
    %354 = arith.addf %302, %353 : vector<16x32xf32>
    %c16 = arith.constant 16 : index
    %c0_124 = arith.constant 0 : index
    %355 = vector.load %arg4[%c16, %c0_124] : memref<56x256xf32, #tpu.memory_space<vmem>>, vector<1x32xf32>
    %c17 = arith.constant 17 : index
    %c0_125 = arith.constant 0 : index
    %356 = vector.load %arg4[%c17, %c0_125] : memref<56x256xf32, #tpu.memory_space<vmem>>, vector<1x32xf32>
    %cst_126 = arith.constant dense<0.000000e+00> : vector<16xf32>
    %357 = vector.multi_reduction <add>, %354, %cst_126 [1] : vector<16x32xf32> to vector<16xf32>
    %358 = vector.shape_cast %357 : vector<16xf32> to vector<16x1xf32>
    %cst_127 = arith.constant 3.200000e+01 : f32
    %359 = vector.broadcast %cst_127 : f32 to vector<16x1xf32>
    %360 = arith.divf %358, %359 : vector<16x1xf32>
    %361 = vector.broadcast %360 : vector<16x1xf32> to vector<16x32xf32>
    %362 = arith.subf %354, %361 : vector<16x32xf32>
    %363 = arith.mulf %362, %362 : vector<16x32xf32>
    %cst_128 = arith.constant dense<0.000000e+00> : vector<16xf32>
    %364 = vector.multi_reduction <add>, %363, %cst_128 [1] : vector<16x32xf32> to vector<16xf32>
    %365 = vector.shape_cast %364 : vector<16xf32> to vector<16x1xf32>
    %cst_129 = arith.constant 3.200000e+01 : f32
    %366 = vector.broadcast %cst_129 : f32 to vector<16x1xf32>
    %367 = arith.divf %365, %366 : vector<16x1xf32>
    %368 = vector.broadcast %360 : vector<16x1xf32> to vector<16x32xf32>
    %369 = arith.subf %354, %368 : vector<16x32xf32>
    %cst_130 = arith.constant 9.99999996E-13 : f32
    %370 = vector.broadcast %cst_130 : f32 to vector<16x1xf32>
    %371 = arith.addf %367, %370 : vector<16x1xf32>
    %372 = math.rsqrt %371 : vector<16x1xf32>
    %373 = vector.broadcast %372 : vector<16x1xf32> to vector<16x32xf32>
    %374 = arith.mulf %369, %373 : vector<16x32xf32>
    %375 = vector.broadcast %355 : vector<1x32xf32> to vector<16x32xf32>
    %376 = arith.mulf %374, %375 : vector<16x32xf32>
    %377 = vector.broadcast %356 : vector<1x32xf32> to vector<16x32xf32>
    %378 = arith.addf %376, %377 : vector<16x32xf32>
    %379 = tpu.iota {dimensions = array<i32: 0>} : vector<2x16xi32>
    %380 = tpu.iota {dimensions = array<i32: 1>} : vector<2x16xi32>
    %c8_i32 = arith.constant 8 : i32
    %381 = vector.broadcast %c8_i32 : i32 to vector<2x16xi32>
    %382 = arith.muli %379, %381 : vector<2x16xi32>
    %383 = arith.cmpi eq, %380, %382 : vector<2x16xi32>
    %384 = arith.extui %383 : vector<2x16xi1> to vector<2x16xi32>
    %385 = arith.sitofp %384 : vector<2x16xi32> to vector<2x16xf32>
    %cst_131 = arith.constant dense<0.000000e+00> : vector<2x32xf32>
    %386 = tpu.matmul %385, %378, %cst_131 {dimension_numbers = #tpu.dot_dimension_numbers<[1], [0], [0], [1], [0, 0, 1, 1], [], []>} : vector<2x16xf32>, vector<16x32xf32>, vector<2x32xf32> -> vector<2x32xf32>
    %c184 = arith.constant 184 : index
    %c0_132 = arith.constant 0 : index
    %387 = vector.load %arg2[%c184, %c0_132] : memref<600x32xf32, #tpu.memory_space<vmem>>, vector<32x32xf32>
    %cst_133 = arith.constant dense<0.000000e+00> : vector<2x32xf32>
    %388 = tpu.matmul %386, %387, %cst_133 {dimension_numbers = #tpu.dot_dimension_numbers<[1], [0], [0], [1], [0, 0, 1, 1], [], []>} : vector<2x32xf32>, vector<32x32xf32>, vector<2x32xf32> -> vector<2x32xf32>
    %c18 = arith.constant 18 : index
    %c0_134 = arith.constant 0 : index
    %389 = vector.load %arg4[%c18, %c0_134] : memref<56x256xf32, #tpu.memory_space<vmem>>, vector<1x32xf32>
    %390 = vector.broadcast %389 : vector<1x32xf32> to vector<2x32xf32>
    %391 = arith.addf %388, %390 : vector<2x32xf32>
    %392 = math.tanh %391 : vector<2x32xf32>
    %c24 = arith.constant 24 : index
    %c0_135 = arith.constant 0 : index
    %393 = vector.load %arg4[%c24, %c0_135] : memref<56x256xf32, #tpu.memory_space<vmem>>, vector<32x256xf32>
    %cst_136 = arith.constant dense<0.000000e+00> : vector<2x256xf32>
    %394 = tpu.matmul %392, %393, %cst_136 {dimension_numbers = #tpu.dot_dimension_numbers<[1], [0], [0], [1], [0, 0, 1, 1], [], []>} : vector<2x32xf32>, vector<32x256xf32>, vector<2x256xf32> -> vector<2x256xf32>
    %c19 = arith.constant 19 : index
    %c0_137 = arith.constant 0 : index
    %395 = vector.load %arg4[%c19, %c0_137] : memref<56x256xf32, #tpu.memory_space<vmem>>, vector<1x256xf32>
    %396 = vector.broadcast %395 : vector<1x256xf32> to vector<2x256xf32>
    %397 = arith.addf %394, %396 : vector<2x256xf32>
    %c344 = arith.constant 344 : index
    %c0_138 = arith.constant 0 : index
    %398 = vector.load %arg2[%c344, %c0_138] : memref<600x32xf32, #tpu.memory_space<vmem>>, vector<256x32xf32>
    %cst_139 = arith.constant dense<0.000000e+00> : vector<2x32xf32>
    %399 = tpu.matmul %397, %398, %cst_139 {dimension_numbers = #tpu.dot_dimension_numbers<[1], [0], [0], [1], [0, 0, 1, 1], [], []>} : vector<2x256xf32>, vector<256x32xf32>, vector<2x32xf32> -> vector<2x32xf32>
    %c20 = arith.constant 20 : index
    %c0_140 = arith.constant 0 : index
    %400 = vector.load %arg4[%c20, %c0_140] : memref<56x256xf32, #tpu.memory_space<vmem>>, vector<1x32xf32>
    %401 = vector.broadcast %400 : vector<1x32xf32> to vector<2x32xf32>
    %402 = arith.addf %399, %401 : vector<2x32xf32>
    %403 = vector.extract_strided_slice %402 {offsets = [0, 0], sizes = [2, 3], strides = [1, 1]} : vector<2x32xf32> to vector<2x3xf32>
    %c0_141 = arith.constant 0 : index
    %c0_142 = arith.constant 0 : index
    %404 = vector.load %arg5[%c0_141, %c0_142] : memref<2x3xf32, #tpu.memory_space<vmem>>, vector<2x3xf32>
    tpu.vector_store %arg5[%c0_141, %c0_142], %403 {strides = array<i32>} : memref<2x3xf32, #tpu.memory_space<vmem>>, vector<2x3xf32>,
    return
  }
}

</mosaic_0001>

<llo_original>
// kernel: forward.1
$region0: #{forward.1}
  #allocation0 [shape = 'u32[]', space=smem, size = 0x4, offset = 0x4, fixed_abs, tag = 'smem constant byte address 0x4 - core index']
  #allocation1 [shape = 'u32[144,128]{1,0:T(1,128)}', space=vmem, size = 0x12000, scoped, tag = 'internal scratch']
  %s0 = inlined_call_operand.vmem [shape: s32[16,1], index: 0, kind: input, shape index: {}]
  %s1 = inlined_call_operand.vmem [shape: f32[16,16], index: 1, kind: input, shape index: {}]
  %s2 = inlined_call_operand.vmem [shape: f32[600,32], index: 2, kind: input, shape index: {}]
  %s3 = inlined_call_operand.vmem [shape: f32[128,96], index: 3, kind: input, shape index: {}]
  %s4 = inlined_call_operand.vmem [shape: f32[56,256], index: 4, kind: input, shape index: {}]
  %s5 = inlined_call_operand.hbm [shape: f32[2,3], index: 5, kind: output, shape index: {}]
  %s6 = sld [smem:[#allocation0]]
  $region30: #{forward.1} parent=0
    _
  %s8 = ssub.s32 1, %s6
  %s9 = scalar_select 0, %s8, %s6
  $region1: #{forward.1} parent=0
    #allocation2 [shape = 'u8[1024]{0}', space=vmem, size = 0x400, scoped, tag = 'output window, operand 0, single buffered']
    #allocation3 [shape = 's32[1]{0}', space=sflag, size = 0x4, scoped, tag = 'scoped memory for forward.1']
    %10 = vsyncpa [#allocation3], 0
    // Predicated region
    $region2: #{forward.1} parent=1 // pred_check
      _
    $region3: #{forward.1} parent=1 // pred_check_branch
      %12 = sbr.rel (0) target = $region5
    $region4: #{forward.1} parent=1 // pred_region
      _
    $region5: #{forward.1} parent=1 // pred_fallthru
      _
    // Predicated region
    $region6: #{forward.1} parent=1 // pred_check
      _
    $region7: #{forward.1} parent=1 // pred_check_branch
      %14 = sbr.rel (0) target = $region9
    $region8: #{forward.1} parent=1 // pred_region
      _
    $region9: #{forward.1} parent=1 // pred_fallthru
      _
    // Predicated region
    $region10: #{forward.1} parent=1 // pred_check
      _
    $region11: #{forward.1} parent=1 // pred_check_branch
      %16 = sbr.rel (0) target = $region13
    $region12: #{forward.1} parent=1 // pred_region
      _
    $region13: #{forward.1} parent=1 // pred_fallthru
      _
    // Predicated region
    $region14: #{forward.1} parent=1 // pred_check
      _
    $region15: #{forward.1} parent=1 // pred_check_branch
      %18 = sbr.rel (0) target = $region17
    $region16: #{forward.1} parent=1 // pred_region
      _
    $region17: #{forward.1} parent=1 // pred_fallthru
      _
    // Predicated region
    $region18: #{forward.1} parent=1 // pred_check
      _
    $region19: #{forward.1} parent=1 // pred_check_branch
      %20 = sbr.rel (0) target = $region21
    $region20: #{forward.1} parent=1 // pred_region
      _
    $region21: #{forward.1} parent=1 // pred_fallthru
      _
    %v21 = vld [vmem:[%s0] sm:$0xff]
    %v22 = vld [vmem:[%s0 + $0x8] sm:$0xff]
    %v23 = vlaneseq
    %v24 = vand.u32 %v23, 127
    %25 = vset.pattern.permute.xlu0 0
    %26 = vperm.xlu0 %25, %v21
    %v27 = vpop.permute.xlu0 %26
    %28 = vset.pattern.permute.xlu0 0
    %29 = vperm.xlu0 %28, %v22
    %v30 = vpop.permute.xlu0 %29
    %vm31 = vcmp.eq.s32.totalorder %v24, %v27
    %vm32 = vcmp.eq.s32.totalorder %v24, %v30
    %v33 = vsel %vm31, 1, 0
    %v34 = vsel %vm32, 1, 0
    %v35 = vcvt.s32.f32 %v33
    %v36 = vcvt.s32.f32 %v34
    %v37 = vld [vmem:[%s2] sm:$0xff]
    %v38 = vld [vmem:[%s2 + $0x8] sm:$0xff]
    %v39 = vld [vmem:[%s2 + $0x10] sm:$0xff]
    %v40 = vld [vmem:[%s2 + $0x18] sm:$0xff]
    %v41 = vld [vmem:[%s2 + $0x20] sm:$0xff]
    %v42 = vld [vmem:[%s2 + $0x28] sm:$0xff]
    %v43 = vld [vmem:[%s2 + $0x30] sm:$0xff]
    %v44 = vld [vmem:[%s2 + $0x38] sm:$0xff]
    %v45 = vld [vmem:[%s2 + $0x40] sm:$0xff]
    %v46 = vld [vmem:[%s2 + $0x48] sm:$0xff]
    %v47 = vld [vmem:[%s2 + $0x50] sm:$0xff]
    %v48 = vld [vmem:[%s2 + $0x58] sm:$0xff]
    %v49 = vld [vmem:[%s2 + $0x60] sm:$0xf]
    %v50 = vld [vmem:[%s2 + $0x68] sm:$0xff]
    %v51 = vld [vmem:[%s2 + $0x70] sm:$0xff]
    %vm52 = vcmask 818176
    %v54 = vsel %vm52, %v35, 0
    %v57 = vsel %vm52, %v36, 0
    %vm59 = vcmask 1043456
    %v61 = vsel %vm59, %v49, 0
    %63 = vmatprep.subr.mxu0 0.0
    %64 = vmatpush1.msra.mxu0 0.0
    %65 = vmatprep.subr.mxu0 0.0
    %66 = vmatpush1.msra.mxu0 0.0
    %67 = vmatprep.subr.mxu0 0.0
    %68 = vmatpush1.msra.mxu0 0.0
    %69 = vmatprep.subr.mxu0 0.0
    %70 = vmatpush1.msra.mxu0 %v61
    %71 = vmatprep.subr.mxu0 0.0
    %72 = vmatpush1.msra.mxu0 %v48
    %73 = vmatprep.subr.mxu0 0.0
    %74 = vmatpush1.msra.mxu0 %v47
    %75 = vmatprep.subr.mxu0 0.0
    %76 = vmatpush1.msra.mxu0 %v46
    %77 = vmatprep.subr.mxu0 0.0
    %78 = vmatpush1.msra.mxu0 %v45
    %79 = vmatprep.subr.mxu0 0.0
    %80 = vmatpush1.msra.mxu0 %v44
    %81 = vmatprep.subr.mxu0 0.0
    %82 = vmatpush1.msra.mxu0 %v43
    %83 = vmatprep.subr.mxu0 0.0
    %84 = vmatpush1.msra.mxu0 %v42
    %85 = vmatprep.subr.mxu0 0.0
    %86 = vmatpush1.msra.mxu0 %v41
    %87 = vmatprep.subr.mxu0 0.0
    %88 = vmatpush1.msra.mxu0 %v40
    %89 = vmatprep.subr.mxu0 0.0
    %90 = vmatpush1.msra.mxu0 %v39
    %91 = vmatprep.subr.mxu0 0.0
    %92 = vmatpush1.msra.mxu0 %v38
    %93 = vmatprep.subr.mxu0 0.0
    %94 = vmatpush1.msra.mxu0 %v37
    %95 = vmatprep.subr.mxu0 0.0
    %96 = vmatpush2.msra.mxu0 0.0
    %97 = vmatprep.subr.mxu0 0.0
    %98 = vmatpush2.msra.mxu0 0.0
    %99 = vmatprep.subr.mxu0 0.0
    %100 = vmatpush2.msra.mxu0 0.0
    %101 = vmatprep.subr.mxu0 0.0
    %102 = vmatpush2.msra.mxu0 0.0
    %103 = vmatprep.subr.mxu0 0.0
    %104 = vmatpush2.msra.mxu0 0.0
    %105 = vmatprep.subr.mxu0 0.0
    %106 = vmatpush2.msra.mxu0 0.0
    %107 = vmatprep.subr.mxu0 0.0
    %108 = vmatpush2.msra.mxu0 0.0
    %109 = vmatprep.subr.mxu0 0.0
    %110 = vmatpush2.msra.mxu0 0.0
    %111 = vmatprep.subr.mxu0 0.0
    %112 = vmatpush2.msra.mxu0 0.0
    %113 = vmatprep.subr.mxu0 0.0
    %114 = vmatpush2.msra.mxu0 0.0
    %115 = vmatprep.subr.mxu0 0.0
    %116 = vmatpush2.msra.mxu0 0.0
    %117 = vmatprep.subr.mxu0 0.0
    %118 = vmatpush2.msra.mxu0 0.0
    %119 = vmatprep.subr.mxu0 0.0
    %120 = vmatpush2.msra.mxu0 0.0
    %121 = vmatprep.subr.mxu0 0.0
    %122 = vmatpush2.msra.mxu0 0.0
    %123 = vmatprep.subr.mxu0 0.0
    %124 = vmatpush2.msra.mxu0 0.0
    %125 = vmatprep.subr.mxu0 0.0
    %126 = vmatpush2.msra.mxu0 0.0
    %127 = vmatprep.mubr.f32.mxu0 0.0
    %128 = vmatmul.mubr.f32.gmra.mxu0 %v54
    %v129 = vpop.f32.mrf.mxu0
    %v130 = vadd.f32 %v50, %v129
    %v131 = vpop.f32.mrf.mxu0
    %132 = vmatprep.mubr.f32.mxu0 0.0
    %133 = vmatmul.mubr.f32.gmra.mxu0 %v57
    %v134 = vpop.f32.mrf.mxu0
    %v135 = vadd.f32 %v51, %v134
    %v136 = vpop.f32.mrf.mxu0
    %137 = vdwg.mxu0
    %v138 = vld [vmem:[%s4] ss:$0 sm:$0xff]
    %v139 = vld [vmem:[%s4 + $0x1] ss:$0 sm:$0xff]
    %vm140 = vcmask 261120
    %v141 = vsel %vm140, %v130, 0.0
    %142 = vadd.xlane.f32.xlu0 %v141
    %v143 = vpop.xlane.xlu0 %142
    %v144 = vsel %vm140, %v135, 0.0
    %145 = vadd.xlane.f32.xlu0 %v144
    %v146 = vpop.xlane.xlu0 %145
    %v147 = vrcp.pop 32.0
    %v148 = vmul.f32 %v143, %v147
    %v149 = vmul.f32 %v146, %v147
    %v150 = vsub.f32 %v130, %v148
    %v151 = vsub.f32 %v135, %v149
    %v152 = vmul.f32 %v150, %v150
    %v153 = vmul.f32 %v151, %v151
    %v154 = vsel %vm140, %v152, 0.0
    %155 = vadd.xlane.f32.xlu0 %v154
    %v156 = vpop.xlane.xlu0 %155
    %v157 = vsel %vm140, %v153, 0.0
    %158 = vadd.xlane.f32.xlu0 %v157
    %v159 = vpop.xlane.xlu0 %158
    %v160 = vmul.f32 %v156, %v147
    %v161 = vmul.f32 %v159, %v147
    %v162 = vadd.f32 %v160, 1e-12
    %v163 = vadd.f32 %v161, 1e-12
    %v164 = vrsqrt.pop %v162
    %v165 = vrsqrt.pop %v163
    %v166 = vmul.f32 %v150, %v164
    %v167 = vmul.f32 %v151, %v165
    %v168 = vmul.f32 %v166, %v138
    %v169 = vmul.f32 %v167, %v138
    %v170 = vadd.f32 %v168, %v139
    %v171 = vadd.f32 %v169, %v139
    %v172 = vld [vmem:[%s1] sm:$0xff]
    %v173 = vld [vmem:[%s1 + $0x8] sm:$0xff]
    %v174 = vld [vmem:[%s3] sm:$0xff]
    %v175 = vld [vmem:[%s3 + $0x8] sm:$0xff]
    %v176 = vld [vmem:[%s3 + $0x10] sm:$0xff]
    %v177 = vld [vmem:[%s3 + $0x18] sm:$0xff]
    %v178 = vld [vmem:[%s4 + $0x2] ss:$0 sm:$0xff]
    %v180 = vsel %vm140, %v170, 0
    %v183 = vsel %vm140, %v171, 0
    %185 = vmatprep.subr.mxu0 0.0
    %186 = vmatpush1.msra.mxu0 0.0
    %187 = vmatprep.subr.mxu0 0.0
    %188 = vmatpush1.msra.mxu0 0.0
    %189 = vmatprep.subr.mxu0 0.0
    %190 = vmatpush1.msra.mxu0 0.0
    %191 = vmatprep.subr.mxu0 0.0
    %192 = vmatpush1.msra.mxu0 0.0
    %193 = vmatprep.subr.mxu0 0.0
    %194 = vmatpush1.msra.mxu0 0.0
    %195 = vmatprep.subr.mxu0 0.0
    %196 = vmatpush1.msra.mxu0 0.0
    %197 = vmatprep.subr.mxu0 0.0
    %198 = vmatpush1.msra.mxu0 0.0
    %199 = vmatprep.subr.mxu0 0.0
    %200 = vmatpush1.msra.mxu0 0.0
    %201 = vmatprep.subr.mxu0 0.0
    %202 = vmatpush1.msra.mxu0 0.0
    %203 = vmatprep.subr.mxu0 0.0
    %204 = vmatpush1.msra.mxu0 0.0
    %205 = vmatprep.subr.mxu0 0.0
    %206 = vmatpush1.msra.mxu0 0.0
    %207 = vmatprep.subr.mxu0 0.0
    %208 = vmatpush1.msra.mxu0 0.0
    %209 = vmatprep.subr.mxu0 0.0
    %210 = vmatpush1.msra.mxu0 %v177
    %211 = vmatprep.subr.mxu0 0.0
    %212 = vmatpush1.msra.mxu0 %v176
    %213 = vmatprep.subr.mxu0 0.0
    %214 = vmatpush1.msra.mxu0 %v175
    %215 = vmatprep.subr.mxu0 0.0
    %216 = vmatpush1.msra.mxu0 %v174
    %217 = vmatprep.subr.mxu0 0.0
    %218 = vmatpush2.msra.mxu0 0.0
    %219 = vmatprep.subr.mxu0 0.0
    %220 = vmatpush2.msra.mxu0 0.0
    %221 = vmatprep.subr.mxu0 0.0
    %222 = vmatpush2.msra.mxu0 0.0
    %223 = vmatprep.subr.mxu0 0.0
    %224 = vmatpush2.msra.mxu0 0.0
    %225 = vmatprep.subr.mxu0 0.0
    %226 = vmatpush2.msra.mxu0 0.0
    %227 = vmatprep.subr.mxu0 0.0
    %228 = vmatpush2.msra.mxu0 0.0
    %229 = vmatprep.subr.mxu0 0.0
    %230 = vmatpush2.msra.mxu0 0.0
    %231 = vmatprep.subr.mxu0 0.0
    %232 = vmatpush2.msra.mxu0 0.0
    %233 = vmatprep.subr.mxu0 0.0
    %234 = vmatpush2.msra.mxu0 0.0
    %235 = vmatprep.subr.mxu0 0.0
    %236 = vmatpush2.msra.mxu0 0.0
    %237 = vmatprep.subr.mxu0 0.0
    %238 = vmatpush2.msra.mxu0 0.0
    %239 = vmatprep.subr.mxu0 0.0
    %240 = vmatpush2.msra.mxu0 0.0
    %241 = vmatprep.subr.mxu0 0.0
    %242 = vmatpush2.msra.mxu0 0.0
    %243 = vmatprep.subr.mxu0 0.0
    %244 = vmatpush2.msra.mxu0 0.0
    %245 = vmatprep.subr.mxu0 0.0
    %246 = vmatpush2.msra.mxu0 0.0
    %247 = vmatprep.subr.mxu0 0.0
    %248 = vmatpush2.msra.mxu0 0.0
    %249 = vmatprep.mubr.f32.mxu0 0.0
    %250 = vmatmul.mubr.f32.gmra.mxu0 %v180
    %v251 = vpop.f32.mrf.mxu0
    %v252 = vadd.f32 %v178, %v251
    %v253 = vpop.f32.mrf.mxu0
    %254 = vmatprep.mubr.f32.mxu0 0.0
    %255 = vmatmul.mubr.f32.gmra.mxu0 %v183
    %v256 = vpop.f32.mrf.mxu0
    %v257 = vadd.f32 %v178, %v256
    %v258 = vpop.f32.mrf.mxu0
    %259 = vdwg.mxu0
    %262 = vrot.lane.b32.xlu0 %v252, 96
    %v263 = vpop.permute.xlu0 %262
    %264 = vrot.lane.b32.xlu0 %v257, 96
    %v265 = vpop.permute.xlu0 %264
    %vm266 = vcmask 64512
    %v267 = vsel %vm266, %v252, 0
    %v269 = vsel %vm266, %v257, 0
    %v271 = vsel %vm266, %v263, 0
    %v273 = vsel %vm266, %v265, 0
    %275 = vmatprep.subr.mxu0 0.0
    %276 = vmatpush1.xpose.msra.mxu0 0.0
    %277 = vmatprep.subr.mxu0 0.0
    %278 = vmatpush1.xpose.msra.mxu0 0.0
    %279 = vmatprep.subr.mxu0 0.0
    %280 = vmatpush1.xpose.msra.mxu0 0.0
    %281 = vmatprep.subr.mxu0 0.0
    %282 = vmatpush1.xpose.msra.mxu0 0.0
    %283 = vmatprep.subr.mxu0 0.0
    %284 = vmatpush1.xpose.msra.mxu0 0.0
    %285 = vmatprep.subr.mxu0 0.0
    %286 = vmatpush1.xpose.msra.mxu0 0.0
    %287 = vmatprep.subr.mxu0 0.0
    %288 = vmatpush1.xpose.msra.mxu0 0.0
    %289 = vmatprep.subr.mxu0 0.0
    %290 = vmatpush1.xpose.msra.mxu0 0.0
    %291 = vmatprep.subr.mxu0 0.0
    %292 = vmatpush1.xpose.msra.mxu0 0.0
    %293 = vmatprep.subr.mxu0 0.0
    %294 = vmatpush1.xpose.msra.mxu0 0.0
    %295 = vmatprep.subr.mxu0 0.0
    %296 = vmatpush1.xpose.msra.mxu0 0.0
    %297 = vmatprep.subr.mxu0 0.0
    %298 = vmatpush1.xpose.msra.mxu0 0.0
    %299 = vmatprep.subr.mxu0 0.0
    %300 = vmatpush1.xpose.msra.mxu0 0.0
    %301 = vmatprep.subr.mxu0 0.0
    %302 = vmatpush1.xpose.msra.mxu0 0.0
    %303 = vmatprep.subr.mxu0 0.0
    %304 = vmatpush1.xpose.msra.mxu0 %v273
    %305 = vmatprep.subr.mxu0 0.0
    %306 = vmatpush1.xpose.msra.mxu0 %v271
    %307 = vmatprep.subr.mxu0 0.0
    %308 = vmatpush2.xpose.msra.mxu0 0.0
    %309 = vmatprep.subr.mxu0 0.0
    %310 = vmatpush2.xpose.msra.mxu0 0.0
    %311 = vmatprep.subr.mxu0 0.0
    %312 = vmatpush2.xpose.msra.mxu0 0.0
    %313 = vmatprep.subr.mxu0 0.0
    %314 = vmatpush2.xpose.msra.mxu0 0.0
    %315 = vmatprep.subr.mxu0 0.0
    %316 = vmatpush2.xpose.msra.mxu0 0.0
    %317 = vmatprep.subr.mxu0 0.0
    %318 = vmatpush2.xpose.msra.mxu0 0.0
    %319 = vmatprep.subr.mxu0 0.0
    %320 = vmatpush2.xpose.msra.mxu0 0.0
    %321 = vmatprep.subr.mxu0 0.0
    %322 = vmatpush2.xpose.msra.mxu0 0.0
    %323 = vmatprep.subr.mxu0 0.0
    %324 = vmatpush2.xpose.msra.mxu0 0.0
    %325 = vmatprep.subr.mxu0 0.0
    %326 = vmatpush2.xpose.msra.mxu0 0.0
    %327 = vmatprep.subr.mxu0 0.0
    %328 = vmatpush2.xpose.msra.mxu0 0.0
    %329 = vmatprep.subr.mxu0 0.0
    %330 = vmatpush2.xpose.msra.mxu0 0.0
    %331 = vmatprep.subr.mxu0 0.0
    %332 = vmatpush2.xpose.msra.mxu0 0.0
    %333 = vmatprep.subr.mxu0 0.0
    %334 = vmatpush2.xpose.msra.mxu0 0.0
    %335 = vmatprep.subr.mxu0 0.0
    %336 = vmatpush2.xpose.msra.mxu0 0.0
    %337 = vmatprep.subr.mxu0 0.0
    %338 = vmatpush2.xpose.msra.mxu0 0.0
    %339 = vmatprep.mubr.f32.mxu0 0.0
    %340 = vmatmul.mubr.f32.gmra.mxu0 %v267
    %v341 = vpop.f32.mrf.mxu0
    %v342 = vadd.f32 %v172, %v341
    %v343 = vpop.f32.mrf.mxu0
    %344 = vmatprep.mubr.f32.mxu0 0.0
    %345 = vmatmul.mubr.f32.gmra.mxu0 %v269
    %v346 = vpop.f32.mrf.mxu0
    %v347 = vadd.f32 %v173, %v346
    %v348 = vpop.f32.mrf.mxu0
    %349 = vdwg.mxu0
    %vm350 = vcmask 130048
    %v351 = vsel %vm350, %v342, -inf
    %352 = vmax.xlane.f32.xlu0 %v351
    %v353 = vpop.xlane.xlu0 %352
    %v354 = vsel %vm350, %v347, -inf
    %355 = vmax.xlane.f32.xlu0 %v354
    %v356 = vpop.xlane.xlu0 %355
    %v357 = vsub.f32 %v342, %v353
    %v358 = vsub.f32 %v347, %v356
    %v359 = vmul.f32 %v357, 1.442695
    %v360 = vpow.pop %v359
    %v361 = vmul.f32 %v358, 1.442695
    %v362 = vpow.pop %v361
    %v363 = vsel %vm350, %v360, 0.0
    %364 = vadd.xlane.f32.xlu0 %v363
    %v365 = vpop.xlane.xlu0 %364
    %v366 = vsel %vm350, %v362, 0.0
    %367 = vadd.xlane.f32.xlu0 %v366
    %v368 = vpop.xlane.xlu0 %367
    %v369 = vrcp.pop %v365
    %v370 = vmul.f32 %v360, %v369
    %v371 = vrcp.pop %v368
    %v372 = vmul.f32 %v362, %v371
    %373 = vrot.lane.b32.xlu0 %v252, 64
    %v374 = vpop.permute.xlu0 %373
    %375 = vrot.lane.b32.xlu0 %v257, 64
    %v376 = vpop.permute.xlu0 %375
    %v380 = vsel %vm350, %v370, 0
    %v383 = vsel %vm350, %v372, 0
    %385 = vmatprep.subr.mxu0 0.0
    %386 = vmatpush1.msra.mxu0 0.0
    %387 = vmatprep.subr.mxu0 0.0
    %388 = vmatpush1.msra.mxu0 0.0
    %389 = vmatprep.subr.mxu0 0.0
    %390 = vmatpush1.msra.mxu0 0.0
    %391 = vmatprep.subr.mxu0 0.0
    %392 = vmatpush1.msra.mxu0 0.0
    %393 = vmatprep.subr.mxu0 0.0
    %394 = vmatpush1.msra.mxu0 0.0
    %395 = vmatprep.subr.mxu0 0.0
    %396 = vmatpush1.msra.mxu0 0.0
    %397 = vmatprep.subr.mxu0 0.0
    %398 = vmatpush1.msra.mxu0 0.0
    %399 = vmatprep.subr.mxu0 0.0
    %400 = vmatpush1.msra.mxu0 0.0
    %401 = vmatprep.subr.mxu0 0.0
    %402 = vmatpush1.msra.mxu0 0.0
    %403 = vmatprep.subr.mxu0 0.0
    %404 = vmatpush1.msra.mxu0 0.0
    %405 = vmatprep.subr.mxu0 0.0
    %406 = vmatpush1.msra.mxu0 0.0
    %407 = vmatprep.subr.mxu0 0.0
    %408 = vmatpush1.msra.mxu0 0.0
    %409 = vmatprep.subr.mxu0 0.0
    %410 = vmatpush1.msra.mxu0 0.0
    %411 = vmatprep.subr.mxu0 0.0
    %412 = vmatpush1.msra.mxu0 0.0
    %413 = vmatprep.subr.mxu0 0.0
    %414 = vmatpush1.msra.mxu0 %v376
    %415 = vmatprep.subr.mxu0 0.0
    %416 = vmatpush1.msra.mxu0 %v374
    %417 = vmatprep.subr.mxu0 0.0
    %418 = vmatpush2.msra.mxu0 0.0
    %419 = vmatprep.subr.mxu0 0.0
    %420 = vmatpush2.msra.mxu0 0.0
    %421 = vmatprep.subr.mxu0 0.0
    %422 = vmatpush2.msra.mxu0 0.0
    %423 = vmatprep.subr.mxu0 0.0
    %424 = vmatpush2.msra.mxu0 0.0
    %425 = vmatprep.subr.mxu0 0.0
    %426 = vmatpush2.msra.mxu0 0.0
    %427 = vmatprep.subr.mxu0 0.0
    %428 = vmatpush2.msra.mxu0 0.0
    %429 = vmatprep.subr.mxu0 0.0
    %430 = vmatpush2.msra.mxu0 0.0
    %431 = vmatprep.subr.mxu0 0.0
    %432 = vmatpush2.msra.mxu0 0.0
    %433 = vmatprep.subr.mxu0 0.0
    %434 = vmatpush2.msra.mxu0 0.0
    %435 = vmatprep.subr.mxu0 0.0
    %436 = vmatpush2.msra.mxu0 0.0
    %437 = vmatprep.subr.mxu0 0.0
    %438 = vmatpush2.msra.mxu0 0.0
    %439 = vmatprep.subr.mxu0 0.0
    %440 = vmatpush2.msra.mxu0 0.0
    %441 = vmatprep.subr.mxu0 0.0
    %442 = vmatpush2.msra.mxu0 0.0
    %443 = vmatprep.subr.mxu0 0.0
    %444 = vmatpush2.msra.mxu0 0.0
    %445 = vmatprep.subr.mxu0 0.0
    %446 = vmatpush2.msra.mxu0 0.0
    %447 = vmatprep.subr.mxu0 0.0
    %448 = vmatpush2.msra.mxu0 0.0
    %449 = vmatprep.mubr.f32.mxu0 0.0
    %450 = vmatmul.mubr.f32.gmra.mxu0 %v380
    %v451 = vpop.f32.mrf.mxu0
    %v452 = vadd.f32 0.0, %v451
    %v453 = vpop.f32.mrf.mxu0
    %454 = vmatprep.mubr.f32.mxu0 0.0
    %455 = vmatmul.mubr.f32.gmra.mxu0 %v383
    %v456 = vpop.f32.mrf.mxu0
    %v457 = vadd.f32 0.0, %v456
    %v458 = vpop.f32.mrf.mxu0
    %459 = vdwg.mxu0
    %460 = vrot.lane.b32.xlu0 %v252, 120
    %v461 = vpop.permute.xlu0 %460
    %462 = vrot.lane.b32.xlu0 %v257, 120
    %v463 = vpop.permute.xlu0 %462
    %464 = vrot.lane.b32.xlu0 %v252, 88
    %v465 = vpop.permute.xlu0 %464
    %466 = vrot.lane.b32.xlu0 %v257, 88
    %v467 = vpop.permute.xlu0 %466
    %v468 = vsel %vm266, %v461, 0
    %v470 = vsel %vm266, %v463, 0
    %v472 = vsel %vm266, %v465, 0
    %v474 = vsel %vm266, %v467, 0
    %476 = vmatprep.subr.mxu0 0.0
    %477 = vmatpush1.xpose.msra.mxu0 0.0
    %478 = vmatprep.subr.mxu0 0.0
    %479 = vmatpush1.xpose.msra.mxu0 0.0
    %480 = vmatprep.subr.mxu0 0.0
    %481 = vmatpush1.xpose.msra.mxu0 0.0
    %482 = vmatprep.subr.mxu0 0.0
    %483 = vmatpush1.xpose.msra.mxu0 0.0
    %484 = vmatprep.subr.mxu0 0.0
    %485 = vmatpush1.xpose.msra.mxu0 0.0
    %486 = vmatprep.subr.mxu0 0.0
    %487 = vmatpush1.xpose.msra.mxu0 0.0
    %488 = vmatprep.subr.mxu0 0.0
    %489 = vmatpush1.xpose.msra.mxu0 0.0
    %490 = vmatprep.subr.mxu0 0.0
    %491 = vmatpush1.xpose.msra.mxu0 0.0
    %492 = vmatprep.subr.mxu0 0.0
    %493 = vmatpush1.xpose.msra.mxu0 0.0
    %494 = vmatprep.subr.mxu0 0.0
    %495 = vmatpush1.xpose.msra.mxu0 0.0
    %496 = vmatprep.subr.mxu0 0.0
    %497 = vmatpush1.xpose.msra.mxu0 0.0
    %498 = vmatprep.subr.mxu0 0.0
    %499 = vmatpush1.xpose.msra.mxu0 0.0
    %500 = vmatprep.subr.mxu0 0.0
    %501 = vmatpush1.xpose.msra.mxu0 0.0
    %502 = vmatprep.subr.mxu0 0.0
    %503 = vmatpush1.xpose.msra.mxu0 0.0
    %504 = vmatprep.subr.mxu0 0.0
    %505 = vmatpush1.xpose.msra.mxu0 %v474
    %506 = vmatprep.subr.mxu0 0.0
    %507 = vmatpush1.xpose.msra.mxu0 %v472
    %508 = vmatprep.subr.mxu0 0.0
    %509 = vmatpush2.xpose.msra.mxu0 0.0
    %510 = vmatprep.subr.mxu0 0.0
    %511 = vmatpush2.xpose.msra.mxu0 0.0
    %512 = vmatprep.subr.mxu0 0.0
    %513 = vmatpush2.xpose.msra.mxu0 0.0
    %514 = vmatprep.subr.mxu0 0.0
    %515 = vmatpush2.xpose.msra.mxu0 0.0
    %516 = vmatprep.subr.mxu0 0.0
    %517 = vmatpush2.xpose.msra.mxu0 0.0
    %518 = vmatprep.subr.mxu0 0.0
    %519 = vmatpush2.xpose.msra.mxu0 0.0
    %520 = vmatprep.subr.mxu0 0.0
    %521 = vmatpush2.xpose.msra.mxu0 0.0
    %522 = vmatprep.subr.mxu0 0.0
    %523 = vmatpush2.xpose.msra.mxu0 0.0
    %524 = vmatprep.subr.mxu0 0.0
    %525 = vmatpush2.xpose.msra.mxu0 0.0
    %526 = vmatprep.subr.mxu0 0.0
    %527 = vmatpush2.xpose.msra.mxu0 0.0
    %528 = vmatprep.subr.mxu0 0.0
    %529 = vmatpush2.xpose.msra.mxu0 0.0
    %530 = vmatprep.subr.mxu0 0.0
    %531 = vmatpush2.xpose.msra.mxu0 0.0
    %532 = vmatprep.subr.mxu0 0.0
    %533 = vmatpush2.xpose.msra.mxu0 0.0
    %534 = vmatprep.subr.mxu0 0.0
    %535 = vmatpush2.xpose.msra.mxu0 0.0
    %536 = vmatprep.subr.mxu0 0.0
    %537 = vmatpush2.xpose.msra.mxu0 0.0
    %538 = vmatprep.subr.mxu0 0.0
    %539 = vmatpush2.xpose.msra.mxu0 0.0
    %540 = vmatprep.mubr.f32.mxu0 0.0
    %541 = vmatmul.mubr.f32.gmra.mxu0 %v468
    %v542 = vpop.f32.mrf.mxu0
    %v543 = vadd.f32 %v172, %v542
    %v544 = vpop.f32.mrf.mxu0
    %545 = vmatprep.mubr.f32.mxu0 0.0
    %546 = vmatmul.mubr.f32.gmra.mxu0 %v470
    %v547 = vpop.f32.mrf.mxu0
    %v548 = vadd.f32 %v173, %v547
    %v549 = vpop.f32.mrf.mxu0
    %550 = vdwg.mxu0
    %v551 = vsel %vm350, %v543, -inf
    %552 = vmax.xlane.f32.xlu0 %v551
    %v553 = vpop.xlane.xlu0 %552
    %v554 = vsel %vm350, %v548, -inf
    %555 = vmax.xlane.f32.xlu0 %v554
    %v556 = vpop.xlane.xlu0 %555
    %v557 = vsub.f32 %v543, %v553
    %v558 = vsub.f32 %v548, %v556
    %v559 = vmul.f32 %v557, 1.442695
    %v560 = vpow.pop %v559
    %v561 = vmul.f32 %v558, 1.442695
    %v562 = vpow.pop %v561
    %v563 = vsel %vm350, %v560, 0.0
    %564 = vadd.xlane.f32.xlu0 %v563
    %v565 = vpop.xlane.xlu0 %564
    %v566 = vsel %vm350, %v562, 0.0
    %567 = vadd.xlane.f32.xlu0 %v566
    %v568 = vpop.xlane.xlu0 %567
    %v569 = vrcp.pop %v565
    %v570 = vmul.f32 %v560, %v569
    %v571 = vrcp.pop %v568
    %v572 = vmul.f32 %v562, %v571
    %573 = vrot.lane.b32.xlu0 %v252, 56
    %v574 = vpop.permute.xlu0 %573
    %575 = vrot.lane.b32.xlu0 %v257, 56
    %v576 = vpop.permute.xlu0 %575
    %v580 = vsel %vm350, %v570, 0
    %v583 = vsel %vm350, %v572, 0
    %585 = vmatprep.subr.mxu0 0.0
    %586 = vmatpush1.msra.mxu0 0.0
    %587 = vmatprep.subr.mxu0 0.0
    %588 = vmatpush1.msra.mxu0 0.0
    %589 = vmatprep.subr.mxu0 0.0
    %590 = vmatpush1.msra.mxu0 0.0
    %591 = vmatprep.subr.mxu0 0.0
    %592 = vmatpush1.msra.mxu0 0.0
    %593 = vmatprep.subr.mxu0 0.0
    %594 = vmatpush1.msra.mxu0 0.0
    %595 = vmatprep.subr.mxu0 0.0
    %596 = vmatpush1.msra.mxu0 0.0
    %597 = vmatprep.subr.mxu0 0.0
    %598 = vmatpush1.msra.mxu0 0.0
    %599 = vmatprep.subr.mxu0 0.0
    %600 = vmatpush1.msra.mxu0 0.0
    %601 = vmatprep.subr.mxu0 0.0
    %602 = vmatpush1.msra.mxu0 0.0
    %603 = vmatprep.subr.mxu0 0.0
    %604 = vmatpush1.msra.mxu0 0.0
    %605 = vmatprep.subr.mxu0 0.0
    %606 = vmatpush1.msra.mxu0 0.0
    %607 = vmatprep.subr.mxu0 0.0
    %608 = vmatpush1.msra.mxu0 0.0
    %609 = vmatprep.subr.mxu0 0.0
    %610 = vmatpush1.msra.mxu0 0.0
    %611 = vmatprep.subr.mxu0 0.0
    %612 = vmatpush1.msra.mxu0 0.0
    %613 = vmatprep.subr.mxu0 0.0
    %614 = vmatpush1.msra.mxu0 %v576
    %615 = vmatprep.subr.mxu0 0.0
    %616 = vmatpush1.msra.mxu0 %v574
    %617 = vmatprep.subr.mxu0 0.0
    %618 = vmatpush2.msra.mxu0 0.0
    %619 = vmatprep.subr.mxu0 0.0
    %620 = vmatpush2.msra.mxu0 0.0
    %621 = vmatprep.subr.mxu0 0.0
    %622 = vmatpush2.msra.mxu0 0.0
    %623 = vmatprep.subr.mxu0 0.0
    %624 = vmatpush2.msra.mxu0 0.0
    %625 = vmatprep.subr.mxu0 0.0
    %626 = vmatpush2.msra.mxu0 0.0
    %627 = vmatprep.subr.mxu0 0.0
    %628 = vmatpush2.msra.mxu0 0.0
    %629 = vmatprep.subr.mxu0 0.0
    %630 = vmatpush2.msra.mxu0 0.0
    %631 = vmatprep.subr.mxu0 0.0
    %632 = vmatpush2.msra.mxu0 0.0
    %633 = vmatprep.subr.mxu0 0.0
    %634 = vmatpush2.msra.mxu0 0.0
    %635 = vmatprep.subr.mxu0 0.0
    %636 = vmatpush2.msra.mxu0 0.0
    %637 = vmatprep.subr.mxu0 0.0
    %638 = vmatpush2.msra.mxu0 0.0
    %639 = vmatprep.subr.mxu0 0.0
    %640 = vmatpush2.msra.mxu0 0.0
    %641 = vmatprep.subr.mxu0 0.0
    %642 = vmatpush2.msra.mxu0 0.0
    %643 = vmatprep.subr.mxu0 0.0
    %644 = vmatpush2.msra.mxu0 0.0
    %645 = vmatprep.subr.mxu0 0.0
    %646 = vmatpush2.msra.mxu0 0.0
    %647 = vmatprep.subr.mxu0 0.0
    %648 = vmatpush2.msra.mxu0 0.0
    %649 = vmatprep.mubr.f32.mxu0 0.0
    %650 = vmatmul.mubr.f32.gmra.mxu0 %v580
    %v651 = vpop.f32.mrf.mxu0
    %v652 = vadd.f32 0.0, %v651
    %v653 = vpop.f32.mrf.mxu0
    %654 = vmatprep.mubr.f32.mxu0 0.0
    %655 = vmatmul.mubr.f32.gmra.mxu0 %v583
    %v656 = vpop.f32.mrf.mxu0
    %v657 = vadd.f32 0.0, %v656
    %v658 = vpop.f32.mrf.mxu0
    %659 = vdwg.mxu0
    %660 = vrot.lane.b32.xlu0 %v252, 112
    %v661 = vpop.permute.xlu0 %660
    %662 = vrot.lane.b32.xlu0 %v257, 112
    %v663 = vpop.permute.xlu0 %662
    %664 = vrot.lane.b32.xlu0 %v252, 80
    %v665 = vpop.permute.xlu0 %664
    %666 = vrot.lane.b32.xlu0 %v257, 80
    %v667 = vpop.permute.xlu0 %666
    %v668 = vsel %vm266, %v661, 0
    %v670 = vsel %vm266, %v663, 0
    %v672 = vsel %vm266, %v665, 0
    %v674 = vsel %vm266, %v667, 0
    %676 = vmatprep.subr.mxu0 0.0
    %677 = vmatpush1.xpose.msra.mxu0 0.0
    %678 = vmatprep.subr.mxu0 0.0
    %679 = vmatpush1.xpose.msra.mxu0 0.0
    %680 = vmatprep.subr.mxu0 0.0
    %681 = vmatpush1.xpose.msra.mxu0 0.0
    %682 = vmatprep.subr.mxu0 0.0
    %683 = vmatpush1.xpose.msra.mxu0 0.0
    %684 = vmatprep.subr.mxu0 0.0
    %685 = vmatpush1.xpose.msra.mxu0 0.0
    %686 = vmatprep.subr.mxu0 0.0
    %687 = vmatpush1.xpose.msra.mxu0 0.0
    %688 = vmatprep.subr.mxu0 0.0
    %689 = vmatpush1.xpose.msra.mxu0 0.0
    %690 = vmatprep.subr.mxu0 0.0
    %691 = vmatpush1.xpose.msra.mxu0 0.0
    %692 = vmatprep.subr.mxu0 0.0
    %693 = vmatpush1.xpose.msra.mxu0 0.0
    %694 = vmatprep.subr.mxu0 0.0
    %695 = vmatpush1.xpose.msra.mxu0 0.0
    %696 = vmatprep.subr.mxu0 0.0
    %697 = vmatpush1.xpose.msra.mxu0 0.0
    %698 = vmatprep.subr.mxu0 0.0
    %699 = vmatpush1.xpose.msra.mxu0 0.0
    %700 = vmatprep.subr.mxu0 0.0
    %701 = vmatpush1.xpose.msra.mxu0 0.0
    %702 = vmatprep.subr.mxu0 0.0
    %703 = vmatpush1.xpose.msra.mxu0 0.0
    %704 = vmatprep.subr.mxu0 0.0
    %705 = vmatpush1.xpose.msra.mxu0 %v674
    %706 = vmatprep.subr.mxu0 0.0
    %707 = vmatpush1.xpose.msra.mxu0 %v672
    %708 = vmatprep.subr.mxu0 0.0
    %709 = vmatpush2.xpose.msra.mxu0 0.0
    %710 = vmatprep.subr.mxu0 0.0
    %711 = vmatpush2.xpose.msra.mxu0 0.0
    %712 = vmatprep.subr.mxu0 0.0
    %713 = vmatpush2.xpose.msra.mxu0 0.0
    %714 = vmatprep.subr.mxu0 0.0
    %715 = vmatpush2.xpose.msra.mxu0 0.0
    %716 = vmatprep.subr.mxu0 0.0
    %717 = vmatpush2.xpose.msra.mxu0 0.0
    %718 = vmatprep.subr.mxu0 0.0
    %719 = vmatpush2.xpose.msra.mxu0 0.0
    %720 = vmatprep.subr.mxu0 0.0
    %721 = vmatpush2.xpose.msra.mxu0 0.0
    %722 = vmatprep.subr.mxu0 0.0
    %723 = vmatpush2.xpose.msra.mxu0 0.0
    %724 = vmatprep.subr.mxu0 0.0
    %725 = vmatpush2.xpose.msra.mxu0 0.0
    %726 = vmatprep.subr.mxu0 0.0
    %727 = vmatpush2.xpose.msra.mxu0 0.0
    %728 = vmatprep.subr.mxu0 0.0
    %729 = vmatpush2.xpose.msra.mxu0 0.0
    %730 = vmatprep.subr.mxu0 0.0
    %731 = vmatpush2.xpose.msra.mxu0 0.0
    %732 = vmatprep.subr.mxu0 0.0
    %733 = vmatpush2.xpose.msra.mxu0 0.0
    %734 = vmatprep.subr.mxu0 0.0
    %735 = vmatpush2.xpose.msra.mxu0 0.0
    %736 = vmatprep.subr.mxu0 0.0
    %737 = vmatpush2.xpose.msra.mxu0 0.0
    %738 = vmatprep.subr.mxu0 0.0
    %739 = vmatpush2.xpose.msra.mxu0 0.0
    %740 = vmatprep.mubr.f32.mxu0 0.0
    %741 = vmatmul.mubr.f32.gmra.mxu0 %v668
    %v742 = vpop.f32.mrf.mxu0
    %v743 = vadd.f32 %v172, %v742
    %v744 = vpop.f32.mrf.mxu0
    %745 = vmatprep.mubr.f32.mxu0 0.0
    %746 = vmatmul.mubr.f32.gmra.mxu0 %v670
    %v747 = vpop.f32.mrf.mxu0
    %v748 = vadd.f32 %v173, %v747
    %v749 = vpop.f32.mrf.mxu0
    %750 = vdwg.mxu0
    %v751 = vsel %vm350, %v743, -inf
    %752 = vmax.xlane.f32.xlu0 %v751
    %v753 = vpop.xlane.xlu0 %752
    %v754 = vsel %vm350, %v748, -inf
    %755 = vmax.xlane.f32.xlu0 %v754
    %v756 = vpop.xlane.xlu0 %755
    %v757 = vsub.f32 %v743, %v753
    %v758 = vsub.f32 %v748, %v756
    %v759 = vmul.f32 %v757, 1.442695
    %v760 = vpow.pop %v759
    %v761 = vmul.f32 %v758, 1.442695
    %v762 = vpow.pop %v761
    %v763 = vsel %vm350, %v760, 0.0
    %764 = vadd.xlane.f32.xlu0 %v763
    %v765 = vpop.xlane.xlu0 %764
    %v766 = vsel %vm350, %v762, 0.0
    %767 = vadd.xlane.f32.xlu0 %v766
    %v768 = vpop.xlane.xlu0 %767
    %v769 = vrcp.pop %v765
    %v770 = vmul.f32 %v760, %v769
    %v771 = vrcp.pop %v768
    %v772 = vmul.f32 %v762, %v771
    %773 = vrot.lane.b32.xlu0 %v252, 48
    %v774 = vpop.permute.xlu0 %773
    %775 = vrot.lane.b32.xlu0 %v257, 48
    %v776 = vpop.permute.xlu0 %775
    %v780 = vsel %vm350, %v770, 0
    %v783 = vsel %vm350, %v772, 0
    %785 = vmatprep.subr.mxu0 0.0
    %786 = vmatpush1.msra.mxu0 0.0
    %787 = vmatprep.subr.mxu0 0.0
    %788 = vmatpush1.msra.mxu0 0.0
    %789 = vmatprep.subr.mxu0 0.0
    %790 = vmatpush1.msra.mxu0 0.0
    %791 = vmatprep.subr.mxu0 0.0
    %792 = vmatpush1.msra.mxu0 0.0
    %793 = vmatprep.subr.mxu0 0.0
    %794 = vmatpush1.msra.mxu0 0.0
    %795 = vmatprep.subr.mxu0 0.0
    %796 = vmatpush1.msra.mxu0 0.0
    %797 = vmatprep.subr.mxu0 0.0
    %798 = vmatpush1.msra.mxu0 0.0
    %799 = vmatprep.subr.mxu0 0.0
    %800 = vmatpush1.msra.mxu0 0.0
    %801 = vmatprep.subr.mxu0 0.0
    %802 = vmatpush1.msra.mxu0 0.0
    %803 = vmatprep.subr.mxu0 0.0
    %804 = vmatpush1.msra.mxu0 0.0
    %805 = vmatprep.subr.mxu0 0.0
    %806 = vmatpush1.msra.mxu0 0.0
    %807 = vmatprep.subr.mxu0 0.0
    %808 = vmatpush1.msra.mxu0 0.0
    %809 = vmatprep.subr.mxu0 0.0
    %810 = vmatpush1.msra.mxu0 0.0
    %811 = vmatprep.subr.mxu0 0.0
    %812 = vmatpush1.msra.mxu0 0.0
    %813 = vmatprep.subr.mxu0 0.0
    %814 = vmatpush1.msra.mxu0 %v776
    %815 = vmatprep.subr.mxu0 0.0
    %816 = vmatpush1.msra.mxu0 %v774
    %817 = vmatprep.subr.mxu0 0.0
    %818 = vmatpush2.msra.mxu0 0.0
    %819 = vmatprep.subr.mxu0 0.0
    %820 = vmatpush2.msra.mxu0 0.0
    %821 = vmatprep.subr.mxu0 0.0
    %822 = vmatpush2.msra.mxu0 0.0
    %823 = vmatprep.subr.mxu0 0.0
    %824 = vmatpush2.msra.mxu0 0.0
    %825 = vmatprep.subr.mxu0 0.0
    %826 = vmatpush2.msra.mxu0 0.0
    %827 = vmatprep.subr.mxu0 0.0
    %828 = vmatpush2.msra.mxu0 0.0
    %829 = vmatprep.subr.mxu0 0.0
    %830 = vmatpush2.msra.mxu0 0.0
    %831 = vmatprep.subr.mxu0 0.0
    %832 = vmatpush2.msra.mxu0 0.0
    %833 = vmatprep.subr.mxu0 0.0
    %834 = vmatpush2.msra.mxu0 0.0
    %835 = vmatprep.subr.mxu0 0.0
    %836 = vmatpush2.msra.mxu0 0.0
    %837 = vmatprep.subr.mxu0 0.0
    %838 = vmatpush2.msra.mxu0 0.0
    %839 = vmatprep.subr.mxu0 0.0
    %840 = vmatpush2.msra.mxu0 0.0
    %841 = vmatprep.subr.mxu0 0.0
    %842 = vmatpush2.msra.mxu0 0.0
    %843 = vmatprep.subr.mxu0 0.0
    %844 = vmatpush2.msra.mxu0 0.0
    %845 = vmatprep.subr.mxu0 0.0
    %846 = vmatpush2.msra.mxu0 0.0
    %847 = vmatprep.subr.mxu0 0.0
    %848 = vmatpush2.msra.mxu0 0.0
    %849 = vmatprep.mubr.f32.mxu0 0.0
    %850 = vmatmul.mubr.f32.gmra.mxu0 %v780
    %v851 = vpop.f32.mrf.mxu0
    %v852 = vadd.f32 0.0, %v851
    %v853 = vpop.f32.mrf.mxu0
    %854 = vmatprep.mubr.f32.mxu0 0.0
    %855 = vmatmul.mubr.f32.gmra.mxu0 %v783
    %v856 = vpop.f32.mrf.mxu0
    %v857 = vadd.f32 0.0, %v856
    %v858 = vpop.f32.mrf.mxu0
    %859 = vdwg.mxu0
    %860 = vrot.lane.b32.xlu0 %v252, 104
    %v861 = vpop.permute.xlu0 %860
    %862 = vrot.lane.b32.xlu0 %v257, 104
    %v863 = vpop.permute.xlu0 %862
    %864 = vrot.lane.b32.xlu0 %v252, 72
    %v865 = vpop.permute.xlu0 %864
    %866 = vrot.lane.b32.xlu0 %v257, 72
    %v867 = vpop.permute.xlu0 %866
    %v868 = vsel %vm266, %v861, 0
    %v870 = vsel %vm266, %v863, 0
    %v872 = vsel %vm266, %v865, 0
    %v874 = vsel %vm266, %v867, 0
    %876 = vmatprep.subr.mxu0 0.0
    %877 = vmatpush1.xpose.msra.mxu0 0.0
    %878 = vmatprep.subr.mxu0 0.0
    %879 = vmatpush1.xpose.msra.mxu0 0.0
    %880 = vmatprep.subr.mxu0 0.0
    %881 = vmatpush1.xpose.msra.mxu0 0.0
    %882 = vmatprep.subr.mxu0 0.0
    %883 = vmatpush1.xpose.msra.mxu0 0.0
    %884 = vmatprep.subr.mxu0 0.0
    %885 = vmatpush1.xpose.msra.mxu0 0.0
    %886 = vmatprep.subr.mxu0 0.0
    %887 = vmatpush1.xpose.msra.mxu0 0.0
    %888 = vmatprep.subr.mxu0 0.0
    %889 = vmatpush1.xpose.msra.mxu0 0.0
    %890 = vmatprep.subr.mxu0 0.0
    %891 = vmatpush1.xpose.msra.mxu0 0.0
    %892 = vmatprep.subr.mxu0 0.0
    %893 = vmatpush1.xpose.msra.mxu0 0.0
    %894 = vmatprep.subr.mxu0 0.0
    %895 = vmatpush1.xpose.msra.mxu0 0.0
    %896 = vmatprep.subr.mxu0 0.0
    %897 = vmatpush1.xpose.msra.mxu0 0.0
    %898 = vmatprep.subr.mxu0 0.0
    %899 = vmatpush1.xpose.msra.mxu0 0.0
    %900 = vmatprep.subr.mxu0 0.0
    %901 = vmatpush1.xpose.msra.mxu0 0.0
    %902 = vmatprep.subr.mxu0 0.0
    %903 = vmatpush1.xpose.msra.mxu0 0.0
    %904 = vmatprep.subr.mxu0 0.0
    %905 = vmatpush1.xpose.msra.mxu0 %v874
    %906 = vmatprep.subr.mxu0 0.0
    %907 = vmatpush1.xpose.msra.mxu0 %v872
    %908 = vmatprep.subr.mxu0 0.0
    %909 = vmatpush2.xpose.msra.mxu0 0.0
    %910 = vmatprep.subr.mxu0 0.0
    %911 = vmatpush2.xpose.msra.mxu0 0.0
    %912 = vmatprep.subr.mxu0 0.0
    %913 = vmatpush2.xpose.msra.mxu0 0.0
    %914 = vmatprep.subr.mxu0 0.0
    %915 = vmatpush2.xpose.msra.mxu0 0.0
    %916 = vmatprep.subr.mxu0 0.0
    %917 = vmatpush2.xpose.msra.mxu0 0.0
    %918 = vmatprep.subr.mxu0 0.0
    %919 = vmatpush2.xpose.msra.mxu0 0.0
    %920 = vmatprep.subr.mxu0 0.0
    %921 = vmatpush2.xpose.msra.mxu0 0.0
    %922 = vmatprep.subr.mxu0 0.0
    %923 = vmatpush2.xpose.msra.mxu0 0.0
    %924 = vmatprep.subr.mxu0 0.0
    %925 = vmatpush2.xpose.msra.mxu0 0.0
    %926 = vmatprep.subr.mxu0 0.0
    %927 = vmatpush2.xpose.msra.mxu0 0.0
    %928 = vmatprep.subr.mxu0 0.0
    %929 = vmatpush2.xpose.msra.mxu0 0.0
    %930 = vmatprep.subr.mxu0 0.0
    %931 = vmatpush2.xpose.msra.mxu0 0.0
    %932 = vmatprep.subr.mxu0 0.0
    %933 = vmatpush2.xpose.msra.mxu0 0.0
    %934 = vmatprep.subr.mxu0 0.0
    %935 = vmatpush2.xpose.msra.mxu0 0.0
    %936 = vmatprep.subr.mxu0 0.0
    %937 = vmatpush2.xpose.msra.mxu0 0.0
    %938 = vmatprep.subr.mxu0 0.0
    %939 = vmatpush2.xpose.msra.mxu0 0.0
    %940 = vmatprep.mubr.f32.mxu0 0.0
    %941 = vmatmul.mubr.f32.gmra.mxu0 %v868
    %v942 = vpop.f32.mrf.mxu0
    %v943 = vadd.f32 %v172, %v942
    %v944 = vpop.f32.mrf.mxu0
    %945 = vmatprep.mubr.f32.mxu0 0.0
    %946 = vmatmul.mubr.f32.gmra.mxu0 %v870
    %v947 = vpop.f32.mrf.mxu0
    %v948 = vadd.f32 %v173, %v947
    %v949 = vpop.f32.mrf.mxu0
    %950 = vdwg.mxu0
    %v951 = vsel %vm350, %v943, -inf
    %952 = vmax.xlane.f32.xlu0 %v951
    %v953 = vpop.xlane.xlu0 %952
    %v954 = vsel %vm350, %v948, -inf
    %955 = vmax.xlane.f32.xlu0 %v954
    %v956 = vpop.xlane.xlu0 %955
    %v957 = vsub.f32 %v943, %v953
    %v958 = vsub.f32 %v948, %v956
    %v959 = vmul.f32 %v957, 1.442695
    %v960 = vpow.pop %v959
    %v961 = vmul.f32 %v958, 1.442695
    %v962 = vpow.pop %v961
    %v963 = vsel %vm350, %v960, 0.0
    %964 = vadd.xlane.f32.xlu0 %v963
    %v965 = vpop.xlane.xlu0 %964
    %v966 = vsel %vm350, %v962, 0.0
    %967 = vadd.xlane.f32.xlu0 %v966
    %v968 = vpop.xlane.xlu0 %967
    %v969 = vrcp.pop %v965
    %v970 = vmul.f32 %v960, %v969
    %v971 = vrcp.pop %v968
    %v972 = vmul.f32 %v962, %v971
    %973 = vrot.lane.b32.xlu0 %v252, 40
    %v974 = vpop.permute.xlu0 %973
    %975 = vrot.lane.b32.xlu0 %v257, 40
    %v976 = vpop.permute.xlu0 %975
    %v980 = vsel %vm350, %v970, 0
    %v983 = vsel %vm350, %v972, 0
    %985 = vmatprep.subr.mxu0 0.0
    %986 = vmatpush1.msra.mxu0 0.0
    %987 = vmatprep.subr.mxu0 0.0
    %988 = vmatpush1.msra.mxu0 0.0
    %989 = vmatprep.subr.mxu0 0.0
    %990 = vmatpush1.msra.mxu0 0.0
    %991 = vmatprep.subr.mxu0 0.0
    %992 = vmatpush1.msra.mxu0 0.0
    %993 = vmatprep.subr.mxu0 0.0
    %994 = vmatpush1.msra.mxu0 0.0
    %995 = vmatprep.subr.mxu0 0.0
    %996 = vmatpush1.msra.mxu0 0.0
    %997 = vmatprep.subr.mxu0 0.0
    %998 = vmatpush1.msra.mxu0 0.0
    %999 = vmatprep.subr.mxu0 0.0
    %1000 = vmatpush1.msra.mxu0 0.0
    %1001 = vmatprep.subr.mxu0 0.0
    %1002 = vmatpush1.msra.mxu0 0.0
    %1003 = vmatprep.subr.mxu0 0.0
    %1004 = vmatpush1.msra.mxu0 0.0
    %1005 = vmatprep.subr.mxu0 0.0
    %1006 = vmatpush1.msra.mxu0 0.0
    %1007 = vmatprep.subr.mxu0 0.0
    %1008 = vmatpush1.msra.mxu0 0.0
    %1009 = vmatprep.subr.mxu0 0.0
    %1010 = vmatpush1.msra.mxu0 0.0
    %1011 = vmatprep.subr.mxu0 0.0
    %1012 = vmatpush1.msra.mxu0 0.0
    %1013 = vmatprep.subr.mxu0 0.0
    %1014 = vmatpush1.msra.mxu0 %v976
    %1015 = vmatprep.subr.mxu0 0.0
    %1016 = vmatpush1.msra.mxu0 %v974
    %1017 = vmatprep.subr.mxu0 0.0
    %1018 = vmatpush2.msra.mxu0 0.0
    %1019 = vmatprep.subr.mxu0 0.0
    %1020 = vmatpush2.msra.mxu0 0.0
    %1021 = vmatprep.subr.mxu0 0.0
    %1022 = vmatpush2.msra.mxu0 0.0
    %1023 = vmatprep.subr.mxu0 0.0
    %1024 = vmatpush2.msra.mxu0 0.0
    %1025 = vmatprep.subr.mxu0 0.0
    %1026 = vmatpush2.msra.mxu0 0.0
    %1027 = vmatprep.subr.mxu0 0.0
    %1028 = vmatpush2.msra.mxu0 0.0
    %1029 = vmatprep.subr.mxu0 0.0
    %1030 = vmatpush2.msra.mxu0 0.0
    %1031 = vmatprep.subr.mxu0 0.0
    %1032 = vmatpush2.msra.mxu0 0.0
    %1033 = vmatprep.subr.mxu0 0.0
    %1034 = vmatpush2.msra.mxu0 0.0
    %1035 = vmatprep.subr.mxu0 0.0
    %1036 = vmatpush2.msra.mxu0 0.0
    %1037 = vmatprep.subr.mxu0 0.0
    %1038 = vmatpush2.msra.mxu0 0.0
    %1039 = vmatprep.subr.mxu0 0.0
    %1040 = vmatpush2.msra.mxu0 0.0
    %1041 = vmatprep.subr.mxu0 0.0
    %1042 = vmatpush2.msra.mxu0 0.0
    %1043 = vmatprep.subr.mxu0 0.0
    %1044 = vmatpush2.msra.mxu0 0.0
    %1045 = vmatprep.subr.mxu0 0.0
    %1046 = vmatpush2.msra.mxu0 0.0
    %1047 = vmatprep.subr.mxu0 0.0
    %1048 = vmatpush2.msra.mxu0 0.0
    %1049 = vmatprep.mubr.f32.mxu0 0.0
    %1050 = vmatmul.mubr.f32.gmra.mxu0 %v980
    %v1051 = vpop.f32.mrf.mxu0
    %v1052 = vadd.f32 0.0, %v1051
    %v1053 = vpop.f32.mrf.mxu0
    %1054 = vmatprep.mubr.f32.mxu0 0.0
    %1055 = vmatmul.mubr.f32.gmra.mxu0 %v983
    %v1056 = vpop.f32.mrf.mxu0
    %v1057 = vadd.f32 0.0, %v1056
    %v1058 = vpop.f32.mrf.mxu0
    %1059 = vdwg.mxu0
    %1062 = vrot.lane.b32.xlu0 %v652, 8
    %v1063 = vpop.permute.xlu0 %1062
    %1064 = vrot.lane.b32.xlu0 %v657, 8
    %v1065 = vpop.permute.xlu0 %1064
    %1070 = vrot.lane.b32.xlu0 %v852, 16
    %v1071 = vpop.permute.xlu0 %1070
    %1072 = vrot.lane.b32.xlu0 %v857, 16
    %v1073 = vpop.permute.xlu0 %1072
    %1078 = vrot.lane.b32.xlu0 %v1052, 24
    %v1079 = vpop.permute.xlu0 %1078
    %1080 = vrot.lane.b32.xlu0 %v1057, 24
    %v1081 = vpop.permute.xlu0 %1080
    %v1084 = vsel %vm266, %v452, %v1063
    %v1085 = vsel %vm266, %v457, %v1065
    %v1086 = vsel %vm350, %v1084, %v1071
    %v1087 = vsel %vm350, %v1085, %v1073
    %vm1088 = vcmask 195584
    %v1089 = vsel %vm1088, %v1086, %v1079
    %v1090 = vsel %vm1088, %v1087, %v1081
    %v1091 = vld [vmem:[%s2 + $0x78] sm:$0xff]
    %v1092 = vld [vmem:[%s2 + $0x80] sm:$0xff]
    %v1093 = vld [vmem:[%s2 + $0x88] sm:$0xff]
    %v1094 = vld [vmem:[%s2 + $0x90] sm:$0xff]
    %v1095 = vld [vmem:[%s4 + $0x3] ss:$0 sm:$0xff]
    %v1097 = vsel %vm140, %v1089, 0
    %v1100 = vsel %vm140, %v1090, 0
    %1102 = vmatprep.subr.mxu0 0.0
    %1103 = vmatpush1.msra.mxu0 0.0
    %1104 = vmatprep.subr.mxu0 0.0
    %1105 = vmatpush1.msra.mxu0 0.0
    %1106 = vmatprep.subr.mxu0 0.0
    %1107 = vmatpush1.msra.mxu0 0.0
    %1108 = vmatprep.subr.mxu0 0.0
    %1109 = vmatpush1.msra.mxu0 0.0
    %1110 = vmatprep.subr.mxu0 0.0
    %1111 = vmatpush1.msra.mxu0 0.0
    %1112 = vmatprep.subr.mxu0 0.0
    %1113 = vmatpush1.msra.mxu0 0.0
    %1114 = vmatprep.subr.mxu0 0.0
    %1115 = vmatpush1.msra.mxu0 0.0
    %1116 = vmatprep.subr.mxu0 0.0
    %1117 = vmatpush1.msra.mxu0 0.0
    %1118 = vmatprep.subr.mxu0 0.0
    %1119 = vmatpush1.msra.mxu0 0.0
    %1120 = vmatprep.subr.mxu0 0.0
    %1121 = vmatpush1.msra.mxu0 0.0
    %1122 = vmatprep.subr.mxu0 0.0
    %1123 = vmatpush1.msra.mxu0 0.0
    %1124 = vmatprep.subr.mxu0 0.0
    %1125 = vmatpush1.msra.mxu0 0.0
    %1126 = vmatprep.subr.mxu0 0.0
    %1127 = vmatpush1.msra.mxu0 %v1094
    %1128 = vmatprep.subr.mxu0 0.0
    %1129 = vmatpush1.msra.mxu0 %v1093
    %1130 = vmatprep.subr.mxu0 0.0
    %1131 = vmatpush1.msra.mxu0 %v1092
    %1132 = vmatprep.subr.mxu0 0.0
    %1133 = vmatpush1.msra.mxu0 %v1091
    %1134 = vmatprep.subr.mxu0 0.0
    %1135 = vmatpush2.msra.mxu0 0.0
    %1136 = vmatprep.subr.mxu0 0.0
    %1137 = vmatpush2.msra.mxu0 0.0
    %1138 = vmatprep.subr.mxu0 0.0
    %1139 = vmatpush2.msra.mxu0 0.0
    %1140 = vmatprep.subr.mxu0 0.0
    %1141 = vmatpush2.msra.mxu0 0.0
    %1142 = vmatprep.subr.mxu0 0.0
    %1143 = vmatpush2.msra.mxu0 0.0
    %1144 = vmatprep.subr.mxu0 0.0
    %1145 = vmatpush2.msra.mxu0 0.0
    %1146 = vmatprep.subr.mxu0 0.0
    %1147 = vmatpush2.msra.mxu0 0.0
    %1148 = vmatprep.subr.mxu0 0.0
    %1149 = vmatpush2.msra.mxu0 0.0
    %1150 = vmatprep.subr.mxu0 0.0
    %1151 = vmatpush2.msra.mxu0 0.0
    %1152 = vmatprep.subr.mxu0 0.0
    %1153 = vmatpush2.msra.mxu0 0.0
    %1154 = vmatprep.subr.mxu0 0.0
    %1155 = vmatpush2.msra.mxu0 0.0
    %1156 = vmatprep.subr.mxu0 0.0
    %1157 = vmatpush2.msra.mxu0 0.0
    %1158 = vmatprep.subr.mxu0 0.0
    %1159 = vmatpush2.msra.mxu0 0.0
    %1160 = vmatprep.subr.mxu0 0.0
    %1161 = vmatpush2.msra.mxu0 0.0
    %1162 = vmatprep.subr.mxu0 0.0
    %1163 = vmatpush2.msra.mxu0 0.0
    %1164 = vmatprep.subr.mxu0 0.0
    %1165 = vmatpush2.msra.mxu0 0.0
    %1166 = vmatprep.mubr.f32.mxu0 0.0
    %1167 = vmatmul.mubr.f32.gmra.mxu0 %v1097
    %v1168 = vpop.f32.mrf.mxu0
    %v1169 = vadd.f32 %v1095, %v1168
    %v1170 = vpop.f32.mrf.mxu0
    %1171 = vmatprep.mubr.f32.mxu0 0.0
    %1172 = vmatmul.mubr.f32.gmra.mxu0 %v1100
    %v1173 = vpop.f32.mrf.mxu0
    %v1174 = vadd.f32 %v1095, %v1173
    %v1175 = vpop.f32.mrf.mxu0
    %1176 = vdwg.mxu0
    %v1177 = vadd.f32 %v170, %v1169
    %v1178 = vadd.f32 %v171, %v1174
    %v1179 = vld [vmem:[%s4 + $0x4] ss:$0 sm:$0xff]
    %v1180 = vld [vmem:[%s4 + $0x5] ss:$0 sm:$0xff]
    %v1181 = vsel %vm140, %v1177, 0.0
    %1182 = vadd.xlane.f32.xlu0 %v1181
    %v1183 = vpop.xlane.xlu0 %1182
    %v1184 = vsel %vm140, %v1178, 0.0
    %1185 = vadd.xlane.f32.xlu0 %v1184
    %v1186 = vpop.xlane.xlu0 %1185
    %v1187 = vmul.f32 %v1183, %v147
    %v1188 = vmul.f32 %v1186, %v147
    %v1189 = vsub.f32 %v1177, %v1187
    %v1190 = vsub.f32 %v1178, %v1188
    %v1191 = vmul.f32 %v1189, %v1189
    %v1192 = vmul.f32 %v1190, %v1190
    %v1193 = vsel %vm140, %v1191, 0.0
    %1194 = vadd.xlane.f32.xlu0 %v1193
    %v1195 = vpop.xlane.xlu0 %1194
    %v1196 = vsel %vm140, %v1192, 0.0
    %1197 = vadd.xlane.f32.xlu0 %v1196
    %v1198 = vpop.xlane.xlu0 %1197
    %v1199 = vmul.f32 %v1195, %v147
    %v1200 = vmul.f32 %v1198, %v147
    %v1201 = vadd.f32 %v1199, 1e-12
    %v1202 = vadd.f32 %v1200, 1e-12
    %v1203 = vrsqrt.pop %v1201
    %v1204 = vrsqrt.pop %v1202
    %v1205 = vmul.f32 %v1189, %v1203
    %v1206 = vmul.f32 %v1190, %v1204
    %v1207 = vmul.f32 %v1205, %v1179
    %v1208 = vmul.f32 %v1206, %v1179
    %v1209 = vadd.f32 %v1207, %v1180
    %v1210 = vadd.f32 %v1208, %v1180
    %v1211 = vld [vmem:[%s3 + $0x40] sm:$0xff]
    %v1212 = vld [vmem:[%s3 + $0x48] sm:$0xff]
    %v1213 = vld [vmem:[%s3 + $0x50] sm:$0xff]
    %v1214 = vld [vmem:[%s3 + $0x58] sm:$0xff]
    %v1215 = vld [vmem:[%s4 + $0x6] ss:$0 sm:$0xff]
    %v1217 = vsel %vm140, %v1209, 0
    %v1220 = vsel %vm140, %v1210, 0
    %1222 = vmatprep.subr.mxu0 0.0
    %1223 = vmatpush1.msra.mxu0 0.0
    %1224 = vmatprep.subr.mxu0 0.0
    %1225 = vmatpush1.msra.mxu0 0.0
    %1226 = vmatprep.subr.mxu0 0.0
    %1227 = vmatpush1.msra.mxu0 0.0
    %1228 = vmatprep.subr.mxu0 0.0
    %1229 = vmatpush1.msra.mxu0 0.0
    %1230 = vmatprep.subr.mxu0 0.0
    %1231 = vmatpush1.msra.mxu0 0.0
    %1232 = vmatprep.subr.mxu0 0.0
    %1233 = vmatpush1.msra.mxu0 0.0
    %1234 = vmatprep.subr.mxu0 0.0
    %1235 = vmatpush1.msra.mxu0 0.0
    %1236 = vmatprep.subr.mxu0 0.0
    %1237 = vmatpush1.msra.mxu0 0.0
    %1238 = vmatprep.subr.mxu0 0.0
    %1239 = vmatpush1.msra.mxu0 0.0
    %1240 = vmatprep.subr.mxu0 0.0
    %1241 = vmatpush1.msra.mxu0 0.0
    %1242 = vmatprep.subr.mxu0 0.0
    %1243 = vmatpush1.msra.mxu0 0.0
    %1244 = vmatprep.subr.mxu0 0.0
    %1245 = vmatpush1.msra.mxu0 0.0
    %1246 = vmatprep.subr.mxu0 0.0
    %1247 = vmatpush1.msra.mxu0 %v1214
    %1248 = vmatprep.subr.mxu0 0.0
    %1249 = vmatpush1.msra.mxu0 %v1213
    %1250 = vmatprep.subr.mxu0 0.0
    %1251 = vmatpush1.msra.mxu0 %v1212
    %1252 = vmatprep.subr.mxu0 0.0
    %1253 = vmatpush1.msra.mxu0 %v1211
    %1254 = vmatprep.subr.mxu0 0.0
    %1255 = vmatpush2.msra.mxu0 0.0
    %1256 = vmatprep.subr.mxu0 0.0
    %1257 = vmatpush2.msra.mxu0 0.0
    %1258 = vmatprep.subr.mxu0 0.0
    %1259 = vmatpush2.msra.mxu0 0.0
    %1260 = vmatprep.subr.mxu0 0.0
    %1261 = vmatpush2.msra.mxu0 0.0
    %1262 = vmatprep.subr.mxu0 0.0
    %1263 = vmatpush2.msra.mxu0 0.0
    %1264 = vmatprep.subr.mxu0 0.0
    %1265 = vmatpush2.msra.mxu0 0.0
    %1266 = vmatprep.subr.mxu0 0.0
    %1267 = vmatpush2.msra.mxu0 0.0
    %1268 = vmatprep.subr.mxu0 0.0
    %1269 = vmatpush2.msra.mxu0 0.0
    %1270 = vmatprep.subr.mxu0 0.0
    %1271 = vmatpush2.msra.mxu0 0.0
    %1272 = vmatprep.subr.mxu0 0.0
    %1273 = vmatpush2.msra.mxu0 0.0
    %1274 = vmatprep.subr.mxu0 0.0
    %1275 = vmatpush2.msra.mxu0 0.0
    %1276 = vmatprep.subr.mxu0 0.0
    %1277 = vmatpush2.msra.mxu0 0.0
    %1278 = vmatprep.subr.mxu0 0.0
    %1279 = vmatpush2.msra.mxu0 0.0
    %1280 = vmatprep.subr.mxu0 0.0
    %1281 = vmatpush2.msra.mxu0 0.0
    %1282 = vmatprep.subr.mxu0 0.0
    %1283 = vmatpush2.msra.mxu0 0.0
    %1284 = vmatprep.subr.mxu0 0.0
    %1285 = vmatpush2.msra.mxu0 0.0
    %1286 = vmatprep.mubr.f32.mxu0 0.0
    %1287 = vmatmul.mubr.f32.gmra.mxu0 %v1217
    %v1288 = vpop.f32.mrf.mxu0
    %v1289 = vadd.f32 %v1215, %v1288
    %v1290 = vpop.f32.mrf.mxu0
    %1291 = vmatprep.mubr.f32.mxu0 0.0
    %1292 = vmatmul.mubr.f32.gmra.mxu0 %v1220
    %v1293 = vpop.f32.mrf.mxu0
    %v1294 = vadd.f32 %v1215, %v1293
    %v1295 = vpop.f32.mrf.mxu0
    %1296 = vdwg.mxu0
    %v1297 = vmul.f32 %v1289, 0.5
    %v1298 = vmul.f32 %v1294, 0.5
    %v1299 = vmul.f32 %v1289, 0.70710677
    %v1300 = vmul.f32 %v1294, 0.70710677
    %vm1301 = vcmp.ge.f32.partialorder %v1299, 0.0
    %vm1302 = vcmp.ge.f32.partialorder %v1300, 0.0
    %v1303 = vsel %vm1301, 1.0, -1.0
    %v1304 = vsel %vm1302, 1.0, -1.0
    %v1305 = vand.u32 2147483647, %v1299
    %v1306 = vand.u32 2147483647, %v1300
    %v1307 = vmul.f32 %v1305, 0.3275911
    %v1308 = vmul.f32 %v1306, 0.3275911
    %v1309 = vadd.f32 %v1307, 1.0
    %v1310 = vadd.f32 %v1308, 1.0
    %v1311 = vrcp.pop %v1309
    %v1312 = vmul.f32 1.0, %v1311
    %v1313 = vrcp.pop %v1310
    %v1314 = vmul.f32 1.0, %v1313
    %v1315 = vmul.f32 %v1312, 1.0614054
    %v1316 = vmul.f32 %v1314, 1.0614054
    %v1317 = vadd.f32 %v1315, -1.4531521
    %v1318 = vadd.f32 %v1316, -1.4531521
    %v1319 = vmul.f32 %v1317, %v1312
    %v1320 = vmul.f32 %v1318, %v1314
    %v1321 = vadd.f32 %v1319, 1.4214138
    %v1322 = vadd.f32 %v1320, 1.4214138
    %v1323 = vmul.f32 %v1321, %v1312
    %v1324 = vmul.f32 %v1322, %v1314
    %v1325 = vadd.f32 %v1323, -0.28449672
    %v1326 = vadd.f32 %v1324, -0.28449672
    %v1327 = vmul.f32 %v1325, %v1312
    %v1328 = vmul.f32 %v1326, %v1314
    %v1329 = vadd.f32 %v1327, 0.2548296
    %v1330 = vadd.f32 %v1328, 0.2548296
    %v1331 = vmul.f32 %v1329, %v1312
    %v1332 = vmul.f32 %v1330, %v1314
    %v1333 = vsub.f32 0.0, %v1305
    %v1334 = vsub.f32 0.0, %v1306
    %v1335 = vmul.f32 %v1333, %v1305
    %v1336 = vmul.f32 %v1334, %v1306
    %v1337 = vmul.f32 %v1335, 1.442695
    %v1338 = vpow.pop %v1337
    %v1339 = vmul.f32 %v1336, 1.442695
    %v1340 = vpow.pop %v1339
    %v1341 = vmul.f32 %v1331, %v1338
    %v1342 = vmul.f32 %v1332, %v1340
    %v1343 = vsub.f32 1.0, %v1341
    %v1344 = vsub.f32 1.0, %v1342
    %v1345 = vmul.f32 %v1303, %v1343
    %v1346 = vmul.f32 %v1304, %v1344
    %v1347 = vadd.f32 %v1345, 1.0
    %v1348 = vadd.f32 %v1346, 1.0
    %v1349 = vmul.f32 %v1297, %v1347
    %v1350 = vmul.f32 %v1298, %v1348
    %v1351 = vld [vmem:[%s2 + $0xd8] sm:$0xff]
    %v1352 = vld [vmem:[%s2 + $0xe0] sm:$0xff]
    %v1353 = vld [vmem:[%s2 + $0xe8] sm:$0xff]
    %v1354 = vld [vmem:[%s2 + $0xf0] sm:$0xff]
    %v1355 = vld [vmem:[%s2 + $0xf8] sm:$0xff]
    %v1356 = vld [vmem:[%s2 + $0x100] sm:$0xff]
    %v1357 = vld [vmem:[%s2 + $0x108] sm:$0xff]
    %v1358 = vld [vmem:[%s2 + $0x110] sm:$0xff]
    %v1359 = vld [vmem:[%s4 + $0x7] ss:$0 sm:$0xff]
    %vm1360 = vcmask 523264
    %v1362 = vsel %vm1360, %v1349, 0
    %v1365 = vsel %vm1360, %v1350, 0
    %1367 = vmatprep.subr.mxu0 0.0
    %1368 = vmatpush1.msra.mxu0 0.0
    %1369 = vmatprep.subr.mxu0 0.0
    %1370 = vmatpush1.msra.mxu0 0.0
    %1371 = vmatprep.subr.mxu0 0.0
    %1372 = vmatpush1.msra.mxu0 0.0
    %1373 = vmatprep.subr.mxu0 0.0
    %1374 = vmatpush1.msra.mxu0 0.0
    %1375 = vmatprep.subr.mxu0 0.0
    %1376 = vmatpush1.msra.mxu0 0.0
    %1377 = vmatprep.subr.mxu0 0.0
    %1378 = vmatpush1.msra.mxu0 0.0
    %1379 = vmatprep.subr.mxu0 0.0
    %1380 = vmatpush1.msra.mxu0 0.0
    %1381 = vmatprep.subr.mxu0 0.0
    %1382 = vmatpush1.msra.mxu0 0.0
    %1383 = vmatprep.subr.mxu0 0.0
    %1384 = vmatpush1.msra.mxu0 %v1358
    %1385 = vmatprep.subr.mxu0 0.0
    %1386 = vmatpush1.msra.mxu0 %v1357
    %1387 = vmatprep.subr.mxu0 0.0
    %1388 = vmatpush1.msra.mxu0 %v1356
    %1389 = vmatprep.subr.mxu0 0.0
    %1390 = vmatpush1.msra.mxu0 %v1355
    %1391 = vmatprep.subr.mxu0 0.0
    %1392 = vmatpush1.msra.mxu0 %v1354
    %1393 = vmatprep.subr.mxu0 0.0
    %1394 = vmatpush1.msra.mxu0 %v1353
    %1395 = vmatprep.subr.mxu0 0.0
    %1396 = vmatpush1.msra.mxu0 %v1352
    %1397 = vmatprep.subr.mxu0 0.0
    %1398 = vmatpush1.msra.mxu0 %v1351
    %1399 = vmatprep.subr.mxu0 0.0
    %1400 = vmatpush2.msra.mxu0 0.0
    %1401 = vmatprep.subr.mxu0 0.0
    %1402 = vmatpush2.msra.mxu0 0.0
    %1403 = vmatprep.subr.mxu0 0.0
    %1404 = vmatpush2.msra.mxu0 0.0
    %1405 = vmatprep.subr.mxu0 0.0
    %1406 = vmatpush2.msra.mxu0 0.0
    %1407 = vmatprep.subr.mxu0 0.0
    %1408 = vmatpush2.msra.mxu0 0.0
    %1409 = vmatprep.subr.mxu0 0.0
    %1410 = vmatpush2.msra.mxu0 0.0
    %1411 = vmatprep.subr.mxu0 0.0
    %1412 = vmatpush2.msra.mxu0 0.0
    %1413 = vmatprep.subr.mxu0 0.0
    %1414 = vmatpush2.msra.mxu0 0.0
    %1415 = vmatprep.subr.mxu0 0.0
    %1416 = vmatpush2.msra.mxu0 0.0
    %1417 = vmatprep.subr.mxu0 0.0
    %1418 = vmatpush2.msra.mxu0 0.0
    %1419 = vmatprep.subr.mxu0 0.0
    %1420 = vmatpush2.msra.mxu0 0.0
    %1421 = vmatprep.subr.mxu0 0.0
    %1422 = vmatpush2.msra.mxu0 0.0
    %1423 = vmatprep.subr.mxu0 0.0
    %1424 = vmatpush2.msra.mxu0 0.0
    %1425 = vmatprep.subr.mxu0 0.0
    %1426 = vmatpush2.msra.mxu0 0.0
    %1427 = vmatprep.subr.mxu0 0.0
    %1428 = vmatpush2.msra.mxu0 0.0
    %1429 = vmatprep.subr.mxu0 0.0
    %1430 = vmatpush2.msra.mxu0 0.0
    %1431 = vmatprep.mubr.f32.mxu0 0.0
    %1432 = vmatmul.mubr.f32.gmra.mxu0 %v1362
    %v1433 = vpop.f32.mrf.mxu0
    %v1434 = vadd.f32 %v1359, %v1433
    %v1435 = vpop.f32.mrf.mxu0
    %1436 = vmatprep.mubr.f32.mxu0 0.0
    %1437 = vmatmul.mubr.f32.gmra.mxu0 %v1365
    %v1438 = vpop.f32.mrf.mxu0
    %v1439 = vadd.f32 %v1359, %v1438
    %v1440 = vpop.f32.mrf.mxu0
    %1441 = vdwg.mxu0
    %v1442 = vadd.f32 %v1209, %v1434
    %v1443 = vadd.f32 %v1210, %v1439
    %v1444 = vld [vmem:[%s4 + $0x10] ss:$0 sm:$0xff]
    %v1445 = vld [vmem:[%s4 + $0x11] ss:$0 sm:$0xff]
    %v1446 = vsel %vm140, %v1442, 0.0
    %1447 = vadd.xlane.f32.xlu0 %v1446
    %v1448 = vpop.xlane.xlu0 %1447
    %v1449 = vsel %vm140, %v1443, 0.0
    %1450 = vadd.xlane.f32.xlu0 %v1449
    %v1451 = vpop.xlane.xlu0 %1450
    %v1452 = vmul.f32 %v1448, %v147
    %v1453 = vmul.f32 %v1451, %v147
    %v1454 = vsub.f32 %v1442, %v1452
    %v1455 = vsub.f32 %v1443, %v1453
    %v1456 = vmul.f32 %v1454, %v1454
    %v1457 = vmul.f32 %v1455, %v1455
    %v1458 = vsel %vm140, %v1456, 0.0
    %1459 = vadd.xlane.f32.xlu0 %v1458
    %v1460 = vpop.xlane.xlu0 %1459
    %v1461 = vsel %vm140, %v1457, 0.0
    %1462 = vadd.xlane.f32.xlu0 %v1461
    %v1463 = vpop.xlane.xlu0 %1462
    %v1464 = vmul.f32 %v1460, %v147
    %v1465 = vmul.f32 %v1463, %v147
    %v1466 = vadd.f32 %v1464, 1e-12
    %v1467 = vadd.f32 %v1465, 1e-12
    %v1468 = vrsqrt.pop %v1466
    %v1469 = vrsqrt.pop %v1467
    %v1470 = vmul.f32 %v1454, %v1468
    %v1471 = vmul.f32 %v1455, %v1469
    %v1472 = vmul.f32 %v1470, %v1444
    %v1473 = vmul.f32 %v1471, %v1444
    %v1474 = vadd.f32 %v1472, %v1445
    %v1475 = vadd.f32 %v1473, %v1445
    %v1476 = vld [vmem:[%s3 + $0x20] sm:$0xff]
    %v1477 = vld [vmem:[%s3 + $0x28] sm:$0xff]
    %v1478 = vld [vmem:[%s3 + $0x30] sm:$0xff]
    %v1479 = vld [vmem:[%s3 + $0x38] sm:$0xff]
    %v1480 = vld [vmem:[%s4 + $0x12] ss:$0 sm:$0xff]
    %v1482 = vsel %vm140, %v1474, 0
    %v1485 = vsel %vm140, %v1475, 0
    %1487 = vmatprep.subr.mxu0 0.0
    %1488 = vmatpush1.msra.mxu0 0.0
    %1489 = vmatprep.subr.mxu0 0.0
    %1490 = vmatpush1.msra.mxu0 0.0
    %1491 = vmatprep.subr.mxu0 0.0
    %1492 = vmatpush1.msra.mxu0 0.0
    %1493 = vmatprep.subr.mxu0 0.0
    %1494 = vmatpush1.msra.mxu0 0.0
    %1495 = vmatprep.subr.mxu0 0.0
    %1496 = vmatpush1.msra.mxu0 0.0
    %1497 = vmatprep.subr.mxu0 0.0
    %1498 = vmatpush1.msra.mxu0 0.0
    %1499 = vmatprep.subr.mxu0 0.0
    %1500 = vmatpush1.msra.mxu0 0.0
    %1501 = vmatprep.subr.mxu0 0.0
    %1502 = vmatpush1.msra.mxu0 0.0
    %1503 = vmatprep.subr.mxu0 0.0
    %1504 = vmatpush1.msra.mxu0 0.0
    %1505 = vmatprep.subr.mxu0 0.0
    %1506 = vmatpush1.msra.mxu0 0.0
    %1507 = vmatprep.subr.mxu0 0.0
    %1508 = vmatpush1.msra.mxu0 0.0
    %1509 = vmatprep.subr.mxu0 0.0
    %1510 = vmatpush1.msra.mxu0 0.0
    %1511 = vmatprep.subr.mxu0 0.0
    %1512 = vmatpush1.msra.mxu0 %v1479
    %1513 = vmatprep.subr.mxu0 0.0
    %1514 = vmatpush1.msra.mxu0 %v1478
    %1515 = vmatprep.subr.mxu0 0.0
    %1516 = vmatpush1.msra.mxu0 %v1477
    %1517 = vmatprep.subr.mxu0 0.0
    %1518 = vmatpush1.msra.mxu0 %v1476
    %1519 = vmatprep.subr.mxu0 0.0
    %1520 = vmatpush2.msra.mxu0 0.0
    %1521 = vmatprep.subr.mxu0 0.0
    %1522 = vmatpush2.msra.mxu0 0.0
    %1523 = vmatprep.subr.mxu0 0.0
    %1524 = vmatpush2.msra.mxu0 0.0
    %1525 = vmatprep.subr.mxu0 0.0
    %1526 = vmatpush2.msra.mxu0 0.0
    %1527 = vmatprep.subr.mxu0 0.0
    %1528 = vmatpush2.msra.mxu0 0.0
    %1529 = vmatprep.subr.mxu0 0.0
    %1530 = vmatpush2.msra.mxu0 0.0
    %1531 = vmatprep.subr.mxu0 0.0
    %1532 = vmatpush2.msra.mxu0 0.0
    %1533 = vmatprep.subr.mxu0 0.0
    %1534 = vmatpush2.msra.mxu0 0.0
    %1535 = vmatprep.subr.mxu0 0.0
    %1536 = vmatpush2.msra.mxu0 0.0
    %1537 = vmatprep.subr.mxu0 0.0
    %1538 = vmatpush2.msra.mxu0 0.0
    %1539 = vmatprep.subr.mxu0 0.0
    %1540 = vmatpush2.msra.mxu0 0.0
    %1541 = vmatprep.subr.mxu0 0.0
    %1542 = vmatpush2.msra.mxu0 0.0
    %1543 = vmatprep.subr.mxu0 0.0
    %1544 = vmatpush2.msra.mxu0 0.0
    %1545 = vmatprep.subr.mxu0 0.0
    %1546 = vmatpush2.msra.mxu0 0.0
    %1547 = vmatprep.subr.mxu0 0.0
    %1548 = vmatpush2.msra.mxu0 0.0
    %1549 = vmatprep.subr.mxu0 0.0
    %1550 = vmatpush2.msra.mxu0 0.0
    %1551 = vmatprep.mubr.f32.mxu0 0.0
    %1552 = vmatmul.mubr.f32.gmra.mxu0 %v1482
    %v1553 = vpop.f32.mrf.mxu0
    %v1554 = vadd.f32 %v1480, %v1553
    %v1555 = vpop.f32.mrf.mxu0
    %1556 = vmatprep.mubr.f32.mxu0 0.0
    %1557 = vmatmul.mubr.f32.gmra.mxu0 %v1485
    %v1558 = vpop.f32.mrf.mxu0
    %v1559 = vadd.f32 %v1480, %v1558
    %v1560 = vpop.f32.mrf.mxu0
    %1561 = vdwg.mxu0
    %1564 = vrot.lane.b32.xlu0 %v1554, 96
    %v1565 = vpop.permute.xlu0 %1564
    %1566 = vrot.lane.b32.xlu0 %v1559, 96
    %v1567 = vpop.permute.xlu0 %1566
    %v1568 = vsel %vm266, %v1554, 0
    %v1570 = vsel %vm266, %v1559, 0
    %v1572 = vsel %vm266, %v1565, 0
    %v1574 = vsel %vm266, %v1567, 0
    %1576 = vmatprep.subr.mxu0 0.0
    %1577 = vmatpush1.xpose.msra.mxu0 0.0
    %1578 = vmatprep.subr.mxu0 0.0
    %1579 = vmatpush1.xpose.msra.mxu0 0.0
    %1580 = vmatprep.subr.mxu0 0.0
    %1581 = vmatpush1.xpose.msra.mxu0 0.0
    %1582 = vmatprep.subr.mxu0 0.0
    %1583 = vmatpush1.xpose.msra.mxu0 0.0
    %1584 = vmatprep.subr.mxu0 0.0
    %1585 = vmatpush1.xpose.msra.mxu0 0.0
    %1586 = vmatprep.subr.mxu0 0.0
    %1587 = vmatpush1.xpose.msra.mxu0 0.0
    %1588 = vmatprep.subr.mxu0 0.0
    %1589 = vmatpush1.xpose.msra.mxu0 0.0
    %1590 = vmatprep.subr.mxu0 0.0
    %1591 = vmatpush1.xpose.msra.mxu0 0.0
    %1592 = vmatprep.subr.mxu0 0.0
    %1593 = vmatpush1.xpose.msra.mxu0 0.0
    %1594 = vmatprep.subr.mxu0 0.0
    %1595 = vmatpush1.xpose.msra.mxu0 0.0
    %1596 = vmatprep.subr.mxu0 0.0
    %1597 = vmatpush1.xpose.msra.mxu0 0.0
    %1598 = vmatprep.subr.mxu0 0.0
    %1599 = vmatpush1.xpose.msra.mxu0 0.0
    %1600 = vmatprep.subr.mxu0 0.0
    %1601 = vmatpush1.xpose.msra.mxu0 0.0
    %1602 = vmatprep.subr.mxu0 0.0
    %1603 = vmatpush1.xpose.msra.mxu0 0.0
    %1604 = vmatprep.subr.mxu0 0.0
    %1605 = vmatpush1.xpose.msra.mxu0 %v1574
    %1606 = vmatprep.subr.mxu0 0.0
    %1607 = vmatpush1.xpose.msra.mxu0 %v1572
    %1608 = vmatprep.subr.mxu0 0.0
    %1609 = vmatpush2.xpose.msra.mxu0 0.0
    %1610 = vmatprep.subr.mxu0 0.0
    %1611 = vmatpush2.xpose.msra.mxu0 0.0
    %1612 = vmatprep.subr.mxu0 0.0
    %1613 = vmatpush2.xpose.msra.mxu0 0.0
    %1614 = vmatprep.subr.mxu0 0.0
    %1615 = vmatpush2.xpose.msra.mxu0 0.0
    %1616 = vmatprep.subr.mxu0 0.0
    %1617 = vmatpush2.xpose.msra.mxu0 0.0
    %1618 = vmatprep.subr.mxu0 0.0
    %1619 = vmatpush2.xpose.msra.mxu0 0.0
    %1620 = vmatprep.subr.mxu0 0.0
    %1621 = vmatpush2.xpose.msra.mxu0 0.0
    %1622 = vmatprep.subr.mxu0 0.0
    %1623 = vmatpush2.xpose.msra.mxu0 0.0
    %1624 = vmatprep.subr.mxu0 0.0
    %1625 = vmatpush2.xpose.msra.mxu0 0.0
    %1626 = vmatprep.subr.mxu0 0.0
    %1627 = vmatpush2.xpose.msra.mxu0 0.0
    %1628 = vmatprep.subr.mxu0 0.0
    %1629 = vmatpush2.xpose.msra.mxu0 0.0
    %1630 = vmatprep.subr.mxu0 0.0
    %1631 = vmatpush2.xpose.msra.mxu0 0.0
    %1632 = vmatprep.subr.mxu0 0.0
    %1633 = vmatpush2.xpose.msra.mxu0 0.0
    %1634 = vmatprep.subr.mxu0 0.0
    %1635 = vmatpush2.xpose.msra.mxu0 0.0
    %1636 = vmatprep.subr.mxu0 0.0
    %1637 = vmatpush2.xpose.msra.mxu0 0.0
    %1638 = vmatprep.subr.mxu0 0.0
    %1639 = vmatpush2.xpose.msra.mxu0 0.0
    %1640 = vmatprep.mubr.f32.mxu0 0.0
    %1641 = vmatmul.mubr.f32.gmra.mxu0 %v1568
    %v1642 = vpop.f32.mrf.mxu0
    %v1643 = vadd.f32 %v172, %v1642
    %v1644 = vpop.f32.mrf.mxu0
    %1645 = vmatprep.mubr.f32.mxu0 0.0
    %1646 = vmatmul.mubr.f32.gmra.mxu0 %v1570
    %v1647 = vpop.f32.mrf.mxu0
    %v1648 = vadd.f32 %v173, %v1647
    %v1649 = vpop.f32.mrf.mxu0
    %1650 = vdwg.mxu0
    %v1651 = vsel %vm350, %v1643, -inf
    %1652 = vmax.xlane.f32.xlu0 %v1651
    %v1653 = vpop.xlane.xlu0 %1652
    %v1654 = vsel %vm350, %v1648, -inf
    %1655 = vmax.xlane.f32.xlu0 %v1654
    %v1656 = vpop.xlane.xlu0 %1655
    %v1657 = vsub.f32 %v1643, %v1653
    %v1658 = vsub.f32 %v1648, %v1656
    %v1659 = vmul.f32 %v1657, 1.442695
    %v1660 = vpow.pop %v1659
    %v1661 = vmul.f32 %v1658, 1.442695
    %v1662 = vpow.pop %v1661
    %v1663 = vsel %vm350, %v1660, 0.0
    %1664 = vadd.xlane.f32.xlu0 %v1663
    %v1665 = vpop.xlane.xlu0 %1664
    %v1666 = vsel %vm350, %v1662, 0.0
    %1667 = vadd.xlane.f32.xlu0 %v1666
    %v1668 = vpop.xlane.xlu0 %1667
    %v1669 = vrcp.pop %v1665
    %v1670 = vmul.f32 %v1660, %v1669
    %v1671 = vrcp.pop %v1668
    %v1672 = vmul.f32 %v1662, %v1671
    %1673 = vrot.lane.b32.xlu0 %v1554, 64
    %v1674 = vpop.permute.xlu0 %1673
    %1675 = vrot.lane.b32.xlu0 %v1559, 64
    %v1676 = vpop.permute.xlu0 %1675
    %v1680 = vsel %vm350, %v1670, 0
    %v1683 = vsel %vm350, %v1672, 0
    %1685 = vmatprep.subr.mxu0 0.0
    %1686 = vmatpush1.msra.mxu0 0.0
    %1687 = vmatprep.subr.mxu0 0.0
    %1688 = vmatpush1.msra.mxu0 0.0
    %1689 = vmatprep.subr.mxu0 0.0
    %1690 = vmatpush1.msra.mxu0 0.0
    %1691 = vmatprep.subr.mxu0 0.0
    %1692 = vmatpush1.msra.mxu0 0.0
    %1693 = vmatprep.subr.mxu0 0.0
    %1694 = vmatpush1.msra.mxu0 0.0
    %1695 = vmatprep.subr.mxu0 0.0
    %1696 = vmatpush1.msra.mxu0 0.0
    %1697 = vmatprep.subr.mxu0 0.0
    %1698 = vmatpush1.msra.mxu0 0.0
    %1699 = vmatprep.subr.mxu0 0.0
    %1700 = vmatpush1.msra.mxu0 0.0
    %1701 = vmatprep.subr.mxu0 0.0
    %1702 = vmatpush1.msra.mxu0 0.0
    %1703 = vmatprep.subr.mxu0 0.0
    %1704 = vmatpush1.msra.mxu0 0.0
    %1705 = vmatprep.subr.mxu0 0.0
    %1706 = vmatpush1.msra.mxu0 0.0
    %1707 = vmatprep.subr.mxu0 0.0
    %1708 = vmatpush1.msra.mxu0 0.0
    %1709 = vmatprep.subr.mxu0 0.0
    %1710 = vmatpush1.msra.mxu0 0.0
    %1711 = vmatprep.subr.mxu0 0.0
    %1712 = vmatpush1.msra.mxu0 0.0
    %1713 = vmatprep.subr.mxu0 0.0
    %1714 = vmatpush1.msra.mxu0 %v1676
    %1715 = vmatprep.subr.mxu0 0.0
    %1716 = vmatpush1.msra.mxu0 %v1674
    %1717 = vmatprep.subr.mxu0 0.0
    %1718 = vmatpush2.msra.mxu0 0.0
    %1719 = vmatprep.subr.mxu0 0.0
    %1720 = vmatpush2.msra.mxu0 0.0
    %1721 = vmatprep.subr.mxu0 0.0
    %1722 = vmatpush2.msra.mxu0 0.0
    %1723 = vmatprep.subr.mxu0 0.0
    %1724 = vmatpush2.msra.mxu0 0.0
    %1725 = vmatprep.subr.mxu0 0.0
    %1726 = vmatpush2.msra.mxu0 0.0
    %1727 = vmatprep.subr.mxu0 0.0
    %1728 = vmatpush2.msra.mxu0 0.0
    %1729 = vmatprep.subr.mxu0 0.0
    %1730 = vmatpush2.msra.mxu0 0.0
    %1731 = vmatprep.subr.mxu0 0.0
    %1732 = vmatpush2.msra.mxu0 0.0
    %1733 = vmatprep.subr.mxu0 0.0
    %1734 = vmatpush2.msra.mxu0 0.0
    %1735 = vmatprep.subr.mxu0 0.0
    %1736 = vmatpush2.msra.mxu0 0.0
    %1737 = vmatprep.subr.mxu0 0.0
    %1738 = vmatpush2.msra.mxu0 0.0
    %1739 = vmatprep.subr.mxu0 0.0
    %1740 = vmatpush2.msra.mxu0 0.0
    %1741 = vmatprep.subr.mxu0 0.0
    %1742 = vmatpush2.msra.mxu0 0.0
    %1743 = vmatprep.subr.mxu0 0.0
    %1744 = vmatpush2.msra.mxu0 0.0
    %1745 = vmatprep.subr.mxu0 0.0
    %1746 = vmatpush2.msra.mxu0 0.0
    %1747 = vmatprep.subr.mxu0 0.0
    %1748 = vmatpush2.msra.mxu0 0.0
    %1749 = vmatprep.mubr.f32.mxu0 0.0
    %1750 = vmatmul.mubr.f32.gmra.mxu0 %v1680
    %v1751 = vpop.f32.mrf.mxu0
    %v1752 = vadd.f32 0.0, %v1751
    %v1753 = vpop.f32.mrf.mxu0
    %1754 = vmatprep.mubr.f32.mxu0 0.0
    %1755 = vmatmul.mubr.f32.gmra.mxu0 %v1683
    %v1756 = vpop.f32.mrf.mxu0
    %v1757 = vadd.f32 0.0, %v1756
    %v1758 = vpop.f32.mrf.mxu0
    %1759 = vdwg.mxu0
    %1760 = vrot.lane.b32.xlu0 %v1554, 120
    %v1761 = vpop.permute.xlu0 %1760
    %1762 = vrot.lane.b32.xlu0 %v1559, 120
    %v1763 = vpop.permute.xlu0 %1762
    %1764 = vrot.lane.b32.xlu0 %v1554, 88
    %v1765 = vpop.permute.xlu0 %1764
    %1766 = vrot.lane.b32.xlu0 %v1559, 88
    %v1767 = vpop.permute.xlu0 %1766
    %v1768 = vsel %vm266, %v1761, 0
    %v1770 = vsel %vm266, %v1763, 0
    %v1772 = vsel %vm266, %v1765, 0
    %v1774 = vsel %vm266, %v1767, 0
    %1776 = vmatprep.subr.mxu0 0.0
    %1777 = vmatpush1.xpose.msra.mxu0 0.0
    %1778 = vmatprep.subr.mxu0 0.0
    %1779 = vmatpush1.xpose.msra.mxu0 0.0
    %1780 = vmatprep.subr.mxu0 0.0
    %1781 = vmatpush1.xpose.msra.mxu0 0.0
    %1782 = vmatprep.subr.mxu0 0.0
    %1783 = vmatpush1.xpose.msra.mxu0 0.0
    %1784 = vmatprep.subr.mxu0 0.0
    %1785 = vmatpush1.xpose.msra.mxu0 0.0
    %1786 = vmatprep.subr.mxu0 0.0
    %1787 = vmatpush1.xpose.msra.mxu0 0.0
    %1788 = vmatprep.subr.mxu0 0.0
    %1789 = vmatpush1.xpose.msra.mxu0 0.0
    %1790 = vmatprep.subr.mxu0 0.0
    %1791 = vmatpush1.xpose.msra.mxu0 0.0
    %1792 = vmatprep.subr.mxu0 0.0
    %1793 = vmatpush1.xpose.msra.mxu0 0.0
    %1794 = vmatprep.subr.mxu0 0.0
    %1795 = vmatpush1.xpose.msra.mxu0 0.0
    %1796 = vmatprep.subr.mxu0 0.0
    %1797 = vmatpush1.xpose.msra.mxu0 0.0
    %1798 = vmatprep.subr.mxu0 0.0
    %1799 = vmatpush1.xpose.msra.mxu0 0.0
    %1800 = vmatprep.subr.mxu0 0.0
    %1801 = vmatpush1.xpose.msra.mxu0 0.0
    %1802 = vmatprep.subr.mxu0 0.0
    %1803 = vmatpush1.xpose.msra.mxu0 0.0
    %1804 = vmatprep.subr.mxu0 0.0
    %1805 = vmatpush1.xpose.msra.mxu0 %v1774
    %1806 = vmatprep.subr.mxu0 0.0
    %1807 = vmatpush1.xpose.msra.mxu0 %v1772
    %1808 = vmatprep.subr.mxu0 0.0
    %1809 = vmatpush2.xpose.msra.mxu0 0.0
    %1810 = vmatprep.subr.mxu0 0.0
    %1811 = vmatpush2.xpose.msra.mxu0 0.0
    %1812 = vmatprep.subr.mxu0 0.0
    %1813 = vmatpush2.xpose.msra.mxu0 0.0
    %1814 = vmatprep.subr.mxu0 0.0
    %1815 = vmatpush2.xpose.msra.mxu0 0.0
    %1816 = vmatprep.subr.mxu0 0.0
    %1817 = vmatpush2.xpose.msra.mxu0 0.0
    %1818 = vmatprep.subr.mxu0 0.0
    %1819 = vmatpush2.xpose.msra.mxu0 0.0
    %1820 = vmatprep.subr.mxu0 0.0
    %1821 = vmatpush2.xpose.msra.mxu0 0.0
    %1822 = vmatprep.subr.mxu0 0.0
    %1823 = vmatpush2.xpose.msra.mxu0 0.0
    %1824 = vmatprep.subr.mxu0 0.0
    %1825 = vmatpush2.xpose.msra.mxu0 0.0
    %1826 = vmatprep.subr.mxu0 0.0
    %1827 = vmatpush2.xpose.msra.mxu0 0.0
    %1828 = vmatprep.subr.mxu0 0.0
    %1829 = vmatpush2.xpose.msra.mxu0 0.0
    %1830 = vmatprep.subr.mxu0 0.0
    %1831 = vmatpush2.xpose.msra.mxu0 0.0
    %1832 = vmatprep.subr.mxu0 0.0
    %1833 = vmatpush2.xpose.msra.mxu0 0.0
    %1834 = vmatprep.subr.mxu0 0.0
    %1835 = vmatpush2.xpose.msra.mxu0 0.0
    %1836 = vmatprep.subr.mxu0 0.0
    %1837 = vmatpush2.xpose.msra.mxu0 0.0
    %1838 = vmatprep.subr.mxu0 0.0
    %1839 = vmatpush2.xpose.msra.mxu0 0.0
    %1840 = vmatprep.mubr.f32.mxu0 0.0
    %1841 = vmatmul.mubr.f32.gmra.mxu0 %v1768
    %v1842 = vpop.f32.mrf.mxu0
    %v1843 = vadd.f32 %v172, %v1842
    %v1844 = vpop.f32.mrf.mxu0
    %1845 = vmatprep.mubr.f32.mxu0 0.0
    %1846 = vmatmul.mubr.f32.gmra.mxu0 %v1770
    %v1847 = vpop.f32.mrf.mxu0
    %v1848 = vadd.f32 %v173, %v1847
    %v1849 = vpop.f32.mrf.mxu0
    %1850 = vdwg.mxu0
    %v1851 = vsel %vm350, %v1843, -inf
    %1852 = vmax.xlane.f32.xlu0 %v1851
    %v1853 = vpop.xlane.xlu0 %1852
    %v1854 = vsel %vm350, %v1848, -inf
    %1855 = vmax.xlane.f32.xlu0 %v1854
    %v1856 = vpop.xlane.xlu0 %1855
    %v1857 = vsub.f32 %v1843, %v1853
    %v1858 = vsub.f32 %v1848, %v1856
    %v1859 = vmul.f32 %v1857, 1.442695
    %v1860 = vpow.pop %v1859
    %v1861 = vmul.f32 %v1858, 1.442695
    %v1862 = vpow.pop %v1861
    %v1863 = vsel %vm350, %v1860, 0.0
    %1864 = vadd.xlane.f32.xlu0 %v1863
    %v1865 = vpop.xlane.xlu0 %1864
    %v1866 = vsel %vm350, %v1862, 0.0
    %1867 = vadd.xlane.f32.xlu0 %v1866
    %v1868 = vpop.xlane.xlu0 %1867
    %v1869 = vrcp.pop %v1865
    %v1870 = vmul.f32 %v1860, %v1869
    %v1871 = vrcp.pop %v1868
    %v1872 = vmul.f32 %v1862, %v1871
    %1873 = vrot.lane.b32.xlu0 %v1554, 56
    %v1874 = vpop.permute.xlu0 %1873
    %1875 = vrot.lane.b32.xlu0 %v1559, 56
    %v1876 = vpop.permute.xlu0 %1875
    %v1880 = vsel %vm350, %v1870, 0
    %v1883 = vsel %vm350, %v1872, 0
    %1885 = vmatprep.subr.mxu0 0.0
    %1886 = vmatpush1.msra.mxu0 0.0
    %1887 = vmatprep.subr.mxu0 0.0
    %1888 = vmatpush1.msra.mxu0 0.0
    %1889 = vmatprep.subr.mxu0 0.0
    %1890 = vmatpush1.msra.mxu0 0.0
    %1891 = vmatprep.subr.mxu0 0.0
    %1892 = vmatpush1.msra.mxu0 0.0
    %1893 = vmatprep.subr.mxu0 0.0
    %1894 = vmatpush1.msra.mxu0 0.0
    %1895 = vmatprep.subr.mxu0 0.0
    %1896 = vmatpush1.msra.mxu0 0.0
    %1897 = vmatprep.subr.mxu0 0.0
    %1898 = vmatpush1.msra.mxu0 0.0
    %1899 = vmatprep.subr.mxu0 0.0
    %1900 = vmatpush1.msra.mxu0 0.0
    %1901 = vmatprep.subr.mxu0 0.0
    %1902 = vmatpush1.msra.mxu0 0.0
    %1903 = vmatprep.subr.mxu0 0.0
    %1904 = vmatpush1.msra.mxu0 0.0
    %1905 = vmatprep.subr.mxu0 0.0
    %1906 = vmatpush1.msra.mxu0 0.0
    %1907 = vmatprep.subr.mxu0 0.0
    %1908 = vmatpush1.msra.mxu0 0.0
    %1909 = vmatprep.subr.mxu0 0.0
    %1910 = vmatpush1.msra.mxu0 0.0
    %1911 = vmatprep.subr.mxu0 0.0
    %1912 = vmatpush1.msra.mxu0 0.0
    %1913 = vmatprep.subr.mxu0 0.0
    %1914 = vmatpush1.msra.mxu0 %v1876
    %1915 = vmatprep.subr.mxu0 0.0
    %1916 = vmatpush1.msra.mxu0 %v1874
    %1917 = vmatprep.subr.mxu0 0.0
    %1918 = vmatpush2.msra.mxu0 0.0
    %1919 = vmatprep.subr.mxu0 0.0
    %1920 = vmatpush2.msra.mxu0 0.0
    %1921 = vmatprep.subr.mxu0 0.0
    %1922 = vmatpush2.msra.mxu0 0.0
    %1923 = vmatprep.subr.mxu0 0.0
    %1924 = vmatpush2.msra.mxu0 0.0
    %1925 = vmatprep.subr.mxu0 0.0
    %1926 = vmatpush2.msra.mxu0 0.0
    %1927 = vmatprep.subr.mxu0 0.0
    %1928 = vmatpush2.msra.mxu0 0.0
    %1929 = vmatprep.subr.mxu0 0.0
    %1930 = vmatpush2.msra.mxu0 0.0
    %1931 = vmatprep.subr.mxu0 0.0
    %1932 = vmatpush2.msra.mxu0 0.0
    %1933 = vmatprep.subr.mxu0 0.0
    %1934 = vmatpush2.msra.mxu0 0.0
    %1935 = vmatprep.subr.mxu0 0.0
    %1936 = vmatpush2.msra.mxu0 0.0
    %1937 = vmatprep.subr.mxu0 0.0
    %1938 = vmatpush2.msra.mxu0 0.0
    %1939 = vmatprep.subr.mxu0 0.0
    %1940 = vmatpush2.msra.mxu0 0.0
    %1941 = vmatprep.subr.mxu0 0.0
    %1942 = vmatpush2.msra.mxu0 0.0
    %1943 = vmatprep.subr.mxu0 0.0
    %1944 = vmatpush2.msra.mxu0 0.0
    %1945 = vmatprep.subr.mxu0 0.0
    %1946 = vmatpush2.msra.mxu0 0.0
    %1947 = vmatprep.subr.mxu0 0.0
    %1948 = vmatpush2.msra.mxu0 0.0
    %1949 = vmatprep.mubr.f32.mxu0 0.0
    %1950 = vmatmul.mubr.f32.gmra.mxu0 %v1880
    %v1951 = vpop.f32.mrf.mxu0
    %v1952 = vadd.f32 0.0, %v1951
    %v1953 = vpop.f32.mrf.mxu0
    %1954 = vmatprep.mubr.f32.mxu0 0.0
    %1955 = vmatmul.mubr.f32.gmra.mxu0 %v1883
    %v1956 = vpop.f32.mrf.mxu0
    %v1957 = vadd.f32 0.0, %v1956
    %v1958 = vpop.f32.mrf.mxu0
    %1959 = vdwg.mxu0
    %1960 = vrot.lane.b32.xlu0 %v1554, 112
    %v1961 = vpop.permute.xlu0 %1960
    %1962 = vrot.lane.b32.xlu0 %v1559, 112
    %v1963 = vpop.permute.xlu0 %1962
    %1964 = vrot.lane.b32.xlu0 %v1554, 80
    %v1965 = vpop.permute.xlu0 %1964
    %1966 = vrot.lane.b32.xlu0 %v1559, 80
    %v1967 = vpop.permute.xlu0 %1966
    %v1968 = vsel %vm266, %v1961, 0
    %v1970 = vsel %vm266, %v1963, 0
    %v1972 = vsel %vm266, %v1965, 0
    %v1974 = vsel %vm266, %v1967, 0
    %1976 = vmatprep.subr.mxu0 0.0
    %1977 = vmatpush1.xpose.msra.mxu0 0.0
    %1978 = vmatprep.subr.mxu0 0.0
    %1979 = vmatpush1.xpose.msra.mxu0 0.0
    %1980 = vmatprep.subr.mxu0 0.0
    %1981 = vmatpush1.xpose.msra.mxu0 0.0
    %1982 = vmatprep.subr.mxu0 0.0
    %1983 = vmatpush1.xpose.msra.mxu0 0.0
    %1984 = vmatprep.subr.mxu0 0.0
    %1985 = vmatpush1.xpose.msra.mxu0 0.0
    %1986 = vmatprep.subr.mxu0 0.0
    %1987 = vmatpush1.xpose.msra.mxu0 0.0
    %1988 = vmatprep.subr.mxu0 0.0
    %1989 = vmatpush1.xpose.msra.mxu0 0.0
    %1990 = vmatprep.subr.mxu0 0.0
    %1991 = vmatpush1.xpose.msra.mxu0 0.0
    %1992 = vmatprep.subr.mxu0 0.0
    %1993 = vmatpush1.xpose.msra.mxu0 0.0
    %1994 = vmatprep.subr.mxu0 0.0
    %1995 = vmatpush1.xpose.msra.mxu0 0.0
    %1996 = vmatprep.subr.mxu0 0.0
    %1997 = vmatpush1.xpose.msra.mxu0 0.0
    %1998 = vmatprep.subr.mxu0 0.0
    %1999 = vmatpush1.xpose.msra.mxu0 0.0
    %2000 = vmatprep.subr.mxu0 0.0
    %2001 = vmatpush1.xpose.msra.mxu0 0.0
    %2002 = vmatprep.subr.mxu0 0.0
    %2003 = vmatpush1.xpose.msra.mxu0 0.0
    %2004 = vmatprep.subr.mxu0 0.0
    %2005 = vmatpush1.xpose.msra.mxu0 %v1974
    %2006 = vmatprep.subr.mxu0 0.0
    %2007 = vmatpush1.xpose.msra.mxu0 %v1972
    %2008 = vmatprep.subr.mxu0 0.0
    %2009 = vmatpush2.xpose.msra.mxu0 0.0
    %2010 = vmatprep.subr.mxu0 0.0
    %2011 = vmatpush2.xpose.msra.mxu0 0.0
    %2012 = vmatprep.subr.mxu0 0.0
    %2013 = vmatpush2.xpose.msra.mxu0 0.0
    %2014 = vmatprep.subr.mxu0 0.0
    %2015 = vmatpush2.xpose.msra.mxu0 0.0
    %2016 = vmatprep.subr.mxu0 0.0
    %2017 = vmatpush2.xpose.msra.mxu0 0.0
    %2018 = vmatprep.subr.mxu0 0.0
    %2019 = vmatpush2.xpose.msra.mxu0 0.0
    %2020 = vmatprep.subr.mxu0 0.0
    %2021 = vmatpush2.xpose.msra.mxu0 0.0
    %2022 = vmatprep.subr.mxu0 0.0
    %2023 = vmatpush2.xpose.msra.mxu0 0.0
    %2024 = vmatprep.subr.mxu0 0.0
    %2025 = vmatpush2.xpose.msra.mxu0 0.0
    %2026 = vmatprep.subr.mxu0 0.0
    %2027 = vmatpush2.xpose.msra.mxu0 0.0
    %2028 = vmatprep.subr.mxu0 0.0
    %2029 = vmatpush2.xpose.msra.mxu0 0.0
    %2030 = vmatprep.subr.mxu0 0.0
    %2031 = vmatpush2.xpose.msra.mxu0 0.0
    %2032 = vmatprep.subr.mxu0 0.0
    %2033 = vmatpush2.xpose.msra.mxu0 0.0
    %2034 = vmatprep.subr.mxu0 0.0
    %2035 = vmatpush2.xpose.msra.mxu0 0.0
    %2036 = vmatprep.subr.mxu0 0.0
    %2037 = vmatpush2.xpose.msra.mxu0 0.0
    %2038 = vmatprep.subr.mxu0 0.0
    %2039 = vmatpush2.xpose.msra.mxu0 0.0
    %2040 = vmatprep.mubr.f32.mxu0 0.0
    %2041 = vmatmul.mubr.f32.gmra.mxu0 %v1968
    %v2042 = vpop.f32.mrf.mxu0
    %v2043 = vadd.f32 %v172, %v2042
    %v2044 = vpop.f32.mrf.mxu0
    %2045 = vmatprep.mubr.f32.mxu0 0.0
    %2046 = vmatmul.mubr.f32.gmra.mxu0 %v1970
    %v2047 = vpop.f32.mrf.mxu0
    %v2048 = vadd.f32 %v173, %v2047
    %v2049 = vpop.f32.mrf.mxu0
    %2050 = vdwg.mxu0
    %v2051 = vsel %vm350, %v2043, -inf
    %2052 = vmax.xlane.f32.xlu0 %v2051
    %v2053 = vpop.xlane.xlu0 %2052
    %v2054 = vsel %vm350, %v2048, -inf
    %2055 = vmax.xlane.f32.xlu0 %v2054
    %v2056 = vpop.xlane.xlu0 %2055
    %v2057 = vsub.f32 %v2043, %v2053
    %v2058 = vsub.f32 %v2048, %v2056
    %v2059 = vmul.f32 %v2057, 1.442695
    %v2060 = vpow.pop %v2059
    %v2061 = vmul.f32 %v2058, 1.442695
    %v2062 = vpow.pop %v2061
    %v2063 = vsel %vm350, %v2060, 0.0
    %2064 = vadd.xlane.f32.xlu0 %v2063
    %v2065 = vpop.xlane.xlu0 %2064
    %v2066 = vsel %vm350, %v2062, 0.0
    %2067 = vadd.xlane.f32.xlu0 %v2066
    %v2068 = vpop.xlane.xlu0 %2067
    %v2069 = vrcp.pop %v2065
    %v2070 = vmul.f32 %v2060, %v2069
    %v2071 = vrcp.pop %v2068
    %v2072 = vmul.f32 %v2062, %v2071
    %2073 = vrot.lane.b32.xlu0 %v1554, 48
    %v2074 = vpop.permute.xlu0 %2073
    %2075 = vrot.lane.b32.xlu0 %v1559, 48
    %v2076 = vpop.permute.xlu0 %2075
    %v2080 = vsel %vm350, %v2070, 0
    %v2083 = vsel %vm350, %v2072, 0
    %2085 = vmatprep.subr.mxu0 0.0
    %2086 = vmatpush1.msra.mxu0 0.0
    %2087 = vmatprep.subr.mxu0 0.0
    %2088 = vmatpush1.msra.mxu0 0.0
    %2089 = vmatprep.subr.mxu0 0.0
    %2090 = vmatpush1.msra.mxu0 0.0
    %2091 = vmatprep.subr.mxu0 0.0
    %2092 = vmatpush1.msra.mxu0 0.0
    %2093 = vmatprep.subr.mxu0 0.0
    %2094 = vmatpush1.msra.mxu0 0.0
    %2095 = vmatprep.subr.mxu0 0.0
    %2096 = vmatpush1.msra.mxu0 0.0
    %2097 = vmatprep.subr.mxu0 0.0
    %2098 = vmatpush1.msra.mxu0 0.0
    %2099 = vmatprep.subr.mxu0 0.0
    %2100 = vmatpush1.msra.mxu0 0.0
    %2101 = vmatprep.subr.mxu0 0.0
    %2102 = vmatpush1.msra.mxu0 0.0
    %2103 = vmatprep.subr.mxu0 0.0
    %2104 = vmatpush1.msra.mxu0 0.0
    %2105 = vmatprep.subr.mxu0 0.0
    %2106 = vmatpush1.msra.mxu0 0.0
    %2107 = vmatprep.subr.mxu0 0.0
    %2108 = vmatpush1.msra.mxu0 0.0
    %2109 = vmatprep.subr.mxu0 0.0
    %2110 = vmatpush1.msra.mxu0 0.0
    %2111 = vmatprep.subr.mxu0 0.0
    %2112 = vmatpush1.msra.mxu0 0.0
    %2113 = vmatprep.subr.mxu0 0.0
    %2114 = vmatpush1.msra.mxu0 %v2076
    %2115 = vmatprep.subr.mxu0 0.0
    %2116 = vmatpush1.msra.mxu0 %v2074
    %2117 = vmatprep.subr.mxu0 0.0
    %2118 = vmatpush2.msra.mxu0 0.0
    %2119 = vmatprep.subr.mxu0 0.0
    %2120 = vmatpush2.msra.mxu0 0.0
    %2121 = vmatprep.subr.mxu0 0.0
    %2122 = vmatpush2.msra.mxu0 0.0
    %2123 = vmatprep.subr.mxu0 0.0
    %2124 = vmatpush2.msra.mxu0 0.0
    %2125 = vmatprep.subr.mxu0 0.0
    %2126 = vmatpush2.msra.mxu0 0.0
    %2127 = vmatprep.subr.mxu0 0.0
    %2128 = vmatpush2.msra.mxu0 0.0
    %2129 = vmatprep.subr.mxu0 0.0
    %2130 = vmatpush2.msra.mxu0 0.0
    %2131 = vmatprep.subr.mxu0 0.0
    %2132 = vmatpush2.msra.mxu0 0.0
    %2133 = vmatprep.subr.mxu0 0.0
    %2134 = vmatpush2.msra.mxu0 0.0
    %2135 = vmatprep.subr.mxu0 0.0
    %2136 = vmatpush2.msra.mxu0 0.0
    %2137 = vmatprep.subr.mxu0 0.0
    %2138 = vmatpush2.msra.mxu0 0.0
    %2139 = vmatprep.subr.mxu0 0.0
    %2140 = vmatpush2.msra.mxu0 0.0
    %2141 = vmatprep.subr.mxu0 0.0
    %2142 = vmatpush2.msra.mxu0 0.0
    %2143 = vmatprep.subr.mxu0 0.0
    %2144 = vmatpush2.msra.mxu0 0.0
    %2145 = vmatprep.subr.mxu0 0.0
    %2146 = vmatpush2.msra.mxu0 0.0
    %2147 = vmatprep.subr.mxu0 0.0
    %2148 = vmatpush2.msra.mxu0 0.0
    %2149 = vmatprep.mubr.f32.mxu0 0.0
    %2150 = vmatmul.mubr.f32.gmra.mxu0 %v2080
    %v2151 = vpop.f32.mrf.mxu0
    %v2152 = vadd.f32 0.0, %v2151
    %v2153 = vpop.f32.mrf.mxu0
    %2154 = vmatprep.mubr.f32.mxu0 0.0
    %2155 = vmatmul.mubr.f32.gmra.mxu0 %v2083
    %v2156 = vpop.f32.mrf.mxu0
    %v2157 = vadd.f32 0.0, %v2156
    %v2158 = vpop.f32.mrf.mxu0
    %2159 = vdwg.mxu0
    %2160 = vrot.lane.b32.xlu0 %v1554, 104
    %v2161 = vpop.permute.xlu0 %2160
    %2162 = vrot.lane.b32.xlu0 %v1559, 104
    %v2163 = vpop.permute.xlu0 %2162
    %2164 = vrot.lane.b32.xlu0 %v1554, 72
    %v2165 = vpop.permute.xlu0 %2164
    %2166 = vrot.lane.b32.xlu0 %v1559, 72
    %v2167 = vpop.permute.xlu0 %2166
    %v2168 = vsel %vm266, %v2161, 0
    %v2170 = vsel %vm266, %v2163, 0
    %v2172 = vsel %vm266, %v2165, 0
    %v2174 = vsel %vm266, %v2167, 0
    %2176 = vmatprep.subr.mxu0 0.0
    %2177 = vmatpush1.xpose.msra.mxu0 0.0
    %2178 = vmatprep.subr.mxu0 0.0
    %2179 = vmatpush1.xpose.msra.mxu0 0.0
    %2180 = vmatprep.subr.mxu0 0.0
    %2181 = vmatpush1.xpose.msra.mxu0 0.0
    %2182 = vmatprep.subr.mxu0 0.0
    %2183 = vmatpush1.xpose.msra.mxu0 0.0
    %2184 = vmatprep.subr.mxu0 0.0
    %2185 = vmatpush1.xpose.msra.mxu0 0.0
    %2186 = vmatprep.subr.mxu0 0.0
    %2187 = vmatpush1.xpose.msra.mxu0 0.0
    %2188 = vmatprep.subr.mxu0 0.0
    %2189 = vmatpush1.xpose.msra.mxu0 0.0
    %2190 = vmatprep.subr.mxu0 0.0
    %2191 = vmatpush1.xpose.msra.mxu0 0.0
    %2192 = vmatprep.subr.mxu0 0.0
    %2193 = vmatpush1.xpose.msra.mxu0 0.0
    %2194 = vmatprep.subr.mxu0 0.0
    %2195 = vmatpush1.xpose.msra.mxu0 0.0
    %2196 = vmatprep.subr.mxu0 0.0
    %2197 = vmatpush1.xpose.msra.mxu0 0.0
    %2198 = vmatprep.subr.mxu0 0.0
    %2199 = vmatpush1.xpose.msra.mxu0 0.0
    %2200 = vmatprep.subr.mxu0 0.0
    %2201 = vmatpush1.xpose.msra.mxu0 0.0
    %2202 = vmatprep.subr.mxu0 0.0
    %2203 = vmatpush1.xpose.msra.mxu0 0.0
    %2204 = vmatprep.subr.mxu0 0.0
    %2205 = vmatpush1.xpose.msra.mxu0 %v2174
    %2206 = vmatprep.subr.mxu0 0.0
    %2207 = vmatpush1.xpose.msra.mxu0 %v2172
    %2208 = vmatprep.subr.mxu0 0.0
    %2209 = vmatpush2.xpose.msra.mxu0 0.0
    %2210 = vmatprep.subr.mxu0 0.0
    %2211 = vmatpush2.xpose.msra.mxu0 0.0
    %2212 = vmatprep.subr.mxu0 0.0
    %2213 = vmatpush2.xpose.msra.mxu0 0.0
    %2214 = vmatprep.subr.mxu0 0.0
    %2215 = vmatpush2.xpose.msra.mxu0 0.0
    %2216 = vmatprep.subr.mxu0 0.0
    %2217 = vmatpush2.xpose.msra.mxu0 0.0
    %2218 = vmatprep.subr.mxu0 0.0
    %2219 = vmatpush2.xpose.msra.mxu0 0.0
    %2220 = vmatprep.subr.mxu0 0.0
    %2221 = vmatpush2.xpose.msra.mxu0 0.0
    %2222 = vmatprep.subr.mxu0 0.0
    %2223 = vmatpush2.xpose.msra.mxu0 0.0
    %2224 = vmatprep.subr.mxu0 0.0
    %2225 = vmatpush2.xpose.msra.mxu0 0.0
    %2226 = vmatprep.subr.mxu0 0.0
    %2227 = vmatpush2.xpose.msra.mxu0 0.0
    %2228 = vmatprep.subr.mxu0 0.0
    %2229 = vmatpush2.xpose.msra.mxu0 0.0
    %2230 = vmatprep.subr.mxu0 0.0
    %2231 = vmatpush2.xpose.msra.mxu0 0.0
    %2232 = vmatprep.subr.mxu0 0.0
    %2233 = vmatpush2.xpose.msra.mxu0 0.0
    %2234 = vmatprep.subr.mxu0 0.0
    %2235 = vmatpush2.xpose.msra.mxu0 0.0
    %2236 = vmatprep.subr.mxu0 0.0
    %2237 = vmatpush2.xpose.msra.mxu0 0.0
    %2238 = vmatprep.subr.mxu0 0.0
    %2239 = vmatpush2.xpose.msra.mxu0 0.0
    %2240 = vmatprep.mubr.f32.mxu0 0.0
    %2241 = vmatmul.mubr.f32.gmra.mxu0 %v2168
    %v2242 = vpop.f32.mrf.mxu0
    %v2243 = vadd.f32 %v172, %v2242
    %v2244 = vpop.f32.mrf.mxu0
    %2245 = vmatprep.mubr.f32.mxu0 0.0
    %2246 = vmatmul.mubr.f32.gmra.mxu0 %v2170
    %v2247 = vpop.f32.mrf.mxu0
    %v2248 = vadd.f32 %v173, %v2247
    %v2249 = vpop.f32.mrf.mxu0
    %2250 = vdwg.mxu0
    %v2251 = vsel %vm350, %v2243, -inf
    %2252 = vmax.xlane.f32.xlu0 %v2251
    %v2253 = vpop.xlane.xlu0 %2252
    %v2254 = vsel %vm350, %v2248, -inf
    %2255 = vmax.xlane.f32.xlu0 %v2254
    %v2256 = vpop.xlane.xlu0 %2255
    %v2257 = vsub.f32 %v2243, %v2253
    %v2258 = vsub.f32 %v2248, %v2256
    %v2259 = vmul.f32 %v2257, 1.442695
    %v2260 = vpow.pop %v2259
    %v2261 = vmul.f32 %v2258, 1.442695
    %v2262 = vpow.pop %v2261
    %v2263 = vsel %vm350, %v2260, 0.0
    %2264 = vadd.xlane.f32.xlu0 %v2263
    %v2265 = vpop.xlane.xlu0 %2264
    %v2266 = vsel %vm350, %v2262, 0.0
    %2267 = vadd.xlane.f32.xlu0 %v2266
    %v2268 = vpop.xlane.xlu0 %2267
    %v2269 = vrcp.pop %v2265
    %v2270 = vmul.f32 %v2260, %v2269
    %v2271 = vrcp.pop %v2268
    %v2272 = vmul.f32 %v2262, %v2271
    %2273 = vrot.lane.b32.xlu0 %v1554, 40
    %v2274 = vpop.permute.xlu0 %2273
    %2275 = vrot.lane.b32.xlu0 %v1559, 40
    %v2276 = vpop.permute.xlu0 %2275
    %v2280 = vsel %vm350, %v2270, 0
    %v2283 = vsel %vm350, %v2272, 0
    %2285 = vmatprep.subr.mxu0 0.0
    %2286 = vmatpush1.msra.mxu0 0.0
    %2287 = vmatprep.subr.mxu0 0.0
    %2288 = vmatpush1.msra.mxu0 0.0
    %2289 = vmatprep.subr.mxu0 0.0
    %2290 = vmatpush1.msra.mxu0 0.0
    %2291 = vmatprep.subr.mxu0 0.0
    %2292 = vmatpush1.msra.mxu0 0.0
    %2293 = vmatprep.subr.mxu0 0.0
    %2294 = vmatpush1.msra.mxu0 0.0
    %2295 = vmatprep.subr.mxu0 0.0
    %2296 = vmatpush1.msra.mxu0 0.0
    %2297 = vmatprep.subr.mxu0 0.0
    %2298 = vmatpush1.msra.mxu0 0.0
    %2299 = vmatprep.subr.mxu0 0.0
    %2300 = vmatpush1.msra.mxu0 0.0
    %2301 = vmatprep.subr.mxu0 0.0
    %2302 = vmatpush1.msra.mxu0 0.0
    %2303 = vmatprep.subr.mxu0 0.0
    %2304 = vmatpush1.msra.mxu0 0.0
    %2305 = vmatprep.subr.mxu0 0.0
    %2306 = vmatpush1.msra.mxu0 0.0
    %2307 = vmatprep.subr.mxu0 0.0
    %2308 = vmatpush1.msra.mxu0 0.0
    %2309 = vmatprep.subr.mxu0 0.0
    %2310 = vmatpush1.msra.mxu0 0.0
    %2311 = vmatprep.subr.mxu0 0.0
    %2312 = vmatpush1.msra.mxu0 0.0
    %2313 = vmatprep.subr.mxu0 0.0
    %2314 = vmatpush1.msra.mxu0 %v2276
    %2315 = vmatprep.subr.mxu0 0.0
    %2316 = vmatpush1.msra.mxu0 %v2274
    %2317 = vmatprep.subr.mxu0 0.0
    %2318 = vmatpush2.msra.mxu0 0.0
    %2319 = vmatprep.subr.mxu0 0.0
    %2320 = vmatpush2.msra.mxu0 0.0
    %2321 = vmatprep.subr.mxu0 0.0
    %2322 = vmatpush2.msra.mxu0 0.0
    %2323 = vmatprep.subr.mxu0 0.0
    %2324 = vmatpush2.msra.mxu0 0.0
    %2325 = vmatprep.subr.mxu0 0.0
    %2326 = vmatpush2.msra.mxu0 0.0
    %2327 = vmatprep.subr.mxu0 0.0
    %2328 = vmatpush2.msra.mxu0 0.0
    %2329 = vmatprep.subr.mxu0 0.0
    %2330 = vmatpush2.msra.mxu0 0.0
    %2331 = vmatprep.subr.mxu0 0.0
    %2332 = vmatpush2.msra.mxu0 0.0
    %2333 = vmatprep.subr.mxu0 0.0
    %2334 = vmatpush2.msra.mxu0 0.0
    %2335 = vmatprep.subr.mxu0 0.0
    %2336 = vmatpush2.msra.mxu0 0.0
    %2337 = vmatprep.subr.mxu0 0.0
    %2338 = vmatpush2.msra.mxu0 0.0
    %2339 = vmatprep.subr.mxu0 0.0
    %2340 = vmatpush2.msra.mxu0 0.0
    %2341 = vmatprep.subr.mxu0 0.0
    %2342 = vmatpush2.msra.mxu0 0.0
    %2343 = vmatprep.subr.mxu0 0.0
    %2344 = vmatpush2.msra.mxu0 0.0
    %2345 = vmatprep.subr.mxu0 0.0
    %2346 = vmatpush2.msra.mxu0 0.0
    %2347 = vmatprep.subr.mxu0 0.0
    %2348 = vmatpush2.msra.mxu0 0.0
    %2349 = vmatprep.mubr.f32.mxu0 0.0
    %2350 = vmatmul.mubr.f32.gmra.mxu0 %v2280
    %v2351 = vpop.f32.mrf.mxu0
    %v2352 = vadd.f32 0.0, %v2351
    %v2353 = vpop.f32.mrf.mxu0
    %2354 = vmatprep.mubr.f32.mxu0 0.0
    %2355 = vmatmul.mubr.f32.gmra.mxu0 %v2283
    %v2356 = vpop.f32.mrf.mxu0
    %v2357 = vadd.f32 0.0, %v2356
    %v2358 = vpop.f32.mrf.mxu0
    %2359 = vdwg.mxu0
    %2362 = vrot.lane.b32.xlu0 %v1952, 8
    %v2363 = vpop.permute.xlu0 %2362
    %2364 = vrot.lane.b32.xlu0 %v1957, 8
    %v2365 = vpop.permute.xlu0 %2364
    %2370 = vrot.lane.b32.xlu0 %v2152, 16
    %v2371 = vpop.permute.xlu0 %2370
    %2372 = vrot.lane.b32.xlu0 %v2157, 16
    %v2373 = vpop.permute.xlu0 %2372
    %2378 = vrot.lane.b32.xlu0 %v2352, 24
    %v2379 = vpop.permute.xlu0 %2378
    %2380 = vrot.lane.b32.xlu0 %v2357, 24
    %v2381 = vpop.permute.xlu0 %2380
    %v2384 = vsel %vm266, %v1752, %v2363
    %v2385 = vsel %vm266, %v1757, %v2365
    %v2386 = vsel %vm350, %v2384, %v2371
    %v2387 = vsel %vm350, %v2385, %v2373
    %v2388 = vsel %vm1088, %v2386, %v2379
    %v2389 = vsel %vm1088, %v2387, %v2381
    %v2390 = vld [vmem:[%s2 + $0x98] sm:$0xff]
    %v2391 = vld [vmem:[%s2 + $0xa0] sm:$0xff]
    %v2392 = vld [vmem:[%s2 + $0xa8] sm:$0xff]
    %v2393 = vld [vmem:[%s2 + $0xb0] sm:$0xff]
    %v2394 = vld [vmem:[%s4 + $0x13] ss:$0 sm:$0xff]
    %v2396 = vsel %vm140, %v2388, 0
    %v2399 = vsel %vm140, %v2389, 0
    %2401 = vmatprep.subr.mxu0 0.0
    %2402 = vmatpush1.msra.mxu0 0.0
    %2403 = vmatprep.subr.mxu0 0.0
    %2404 = vmatpush1.msra.mxu0 0.0
    %2405 = vmatprep.subr.mxu0 0.0
    %2406 = vmatpush1.msra.mxu0 0.0
    %2407 = vmatprep.subr.mxu0 0.0
    %2408 = vmatpush1.msra.mxu0 0.0
    %2409 = vmatprep.subr.mxu0 0.0
    %2410 = vmatpush1.msra.mxu0 0.0
    %2411 = vmatprep.subr.mxu0 0.0
    %2412 = vmatpush1.msra.mxu0 0.0
    %2413 = vmatprep.subr.mxu0 0.0
    %2414 = vmatpush1.msra.mxu0 0.0
    %2415 = vmatprep.subr.mxu0 0.0
    %2416 = vmatpush1.msra.mxu0 0.0
    %2417 = vmatprep.subr.mxu0 0.0
    %2418 = vmatpush1.msra.mxu0 0.0
    %2419 = vmatprep.subr.mxu0 0.0
    %2420 = vmatpush1.msra.mxu0 0.0
    %2421 = vmatprep.subr.mxu0 0.0
    %2422 = vmatpush1.msra.mxu0 0.0
    %2423 = vmatprep.subr.mxu0 0.0
    %2424 = vmatpush1.msra.mxu0 0.0
    %2425 = vmatprep.subr.mxu0 0.0
    %2426 = vmatpush1.msra.mxu0 %v2393
    %2427 = vmatprep.subr.mxu0 0.0
    %2428 = vmatpush1.msra.mxu0 %v2392
    %2429 = vmatprep.subr.mxu0 0.0
    %2430 = vmatpush1.msra.mxu0 %v2391
    %2431 = vmatprep.subr.mxu0 0.0
    %2432 = vmatpush1.msra.mxu0 %v2390
    %2433 = vmatprep.subr.mxu0 0.0
    %2434 = vmatpush2.msra.mxu0 0.0
    %2435 = vmatprep.subr.mxu0 0.0
    %2436 = vmatpush2.msra.mxu0 0.0
    %2437 = vmatprep.subr.mxu0 0.0
    %2438 = vmatpush2.msra.mxu0 0.0
    %2439 = vmatprep.subr.mxu0 0.0
    %2440 = vmatpush2.msra.mxu0 0.0
    %2441 = vmatprep.subr.mxu0 0.0
    %2442 = vmatpush2.msra.mxu0 0.0
    %2443 = vmatprep.subr.mxu0 0.0
    %2444 = vmatpush2.msra.mxu0 0.0
    %2445 = vmatprep.subr.mxu0 0.0
    %2446 = vmatpush2.msra.mxu0 0.0
    %2447 = vmatprep.subr.mxu0 0.0
    %2448 = vmatpush2.msra.mxu0 0.0
    %2449 = vmatprep.subr.mxu0 0.0
    %2450 = vmatpush2.msra.mxu0 0.0
    %2451 = vmatprep.subr.mxu0 0.0
    %2452 = vmatpush2.msra.mxu0 0.0
    %2453 = vmatprep.subr.mxu0 0.0
    %2454 = vmatpush2.msra.mxu0 0.0
    %2455 = vmatprep.subr.mxu0 0.0
    %2456 = vmatpush2.msra.mxu0 0.0
    %2457 = vmatprep.subr.mxu0 0.0
    %2458 = vmatpush2.msra.mxu0 0.0
    %2459 = vmatprep.subr.mxu0 0.0
    %2460 = vmatpush2.msra.mxu0 0.0
    %2461 = vmatprep.subr.mxu0 0.0
    %2462 = vmatpush2.msra.mxu0 0.0
    %2463 = vmatprep.subr.mxu0 0.0
    %2464 = vmatpush2.msra.mxu0 0.0
    %2465 = vmatprep.mubr.f32.mxu0 0.0
    %2466 = vmatmul.mubr.f32.gmra.mxu0 %v2396
    %v2467 = vpop.f32.mrf.mxu0
    %v2468 = vadd.f32 %v2394, %v2467
    %v2469 = vpop.f32.mrf.mxu0
    %2470 = vmatprep.mubr.f32.mxu0 0.0
    %2471 = vmatmul.mubr.f32.gmra.mxu0 %v2399
    %v2472 = vpop.f32.mrf.mxu0
    %v2473 = vadd.f32 %v2394, %v2472
    %v2474 = vpop.f32.mrf.mxu0
    %2475 = vdwg.mxu0
    %v2476 = vadd.f32 %v1474, %v2468
    %v2477 = vadd.f32 %v1475, %v2473
    %v2478 = vld [vmem:[%s4 + $0x14] ss:$0 sm:$0xff]
    %v2479 = vld [vmem:[%s4 + $0x15] ss:$0 sm:$0xff]
    %v2480 = vsel %vm140, %v2476, 0.0
    %2481 = vadd.xlane.f32.xlu0 %v2480
    %v2482 = vpop.xlane.xlu0 %2481
    %v2483 = vsel %vm140, %v2477, 0.0
    %2484 = vadd.xlane.f32.xlu0 %v2483
    %v2485 = vpop.xlane.xlu0 %2484
    %v2486 = vmul.f32 %v2482, %v147
    %v2487 = vmul.f32 %v2485, %v147
    %v2488 = vsub.f32 %v2476, %v2486
    %v2489 = vsub.f32 %v2477, %v2487
    %v2490 = vmul.f32 %v2488, %v2488
    %v2491 = vmul.f32 %v2489, %v2489
    %v2492 = vsel %vm140, %v2490, 0.0
    %2493 = vadd.xlane.f32.xlu0 %v2492
    %v2494 = vpop.xlane.xlu0 %2493
    %v2495 = vsel %vm140, %v2491, 0.0
    %2496 = vadd.xlane.f32.xlu0 %v2495
    %v2497 = vpop.xlane.xlu0 %2496
    %v2498 = vmul.f32 %v2494, %v147
    %v2499 = vmul.f32 %v2497, %v147
    %v2500 = vadd.f32 %v2498, 1e-12
    %v2501 = vadd.f32 %v2499, 1e-12
    %v2502 = vrsqrt.pop %v2500
    %v2503 = vrsqrt.pop %v2501
    %v2504 = vmul.f32 %v2488, %v2502
    %v2505 = vmul.f32 %v2489, %v2503
    %v2506 = vmul.f32 %v2504, %v2478
    %v2507 = vmul.f32 %v2505, %v2478
    %v2508 = vadd.f32 %v2506, %v2479
    %v2509 = vadd.f32 %v2507, %v2479
    %v2510 = vld [vmem:[%s3 + $0x60] sm:$0xff]
    %v2511 = vld [vmem:[%s3 + $0x68] sm:$0xff]
    %v2512 = vld [vmem:[%s3 + $0x70] sm:$0xff]
    %v2513 = vld [vmem:[%s3 + $0x78] sm:$0xff]
    %v2514 = vld [vmem:[%s4 + $0x16] ss:$0 sm:$0xff]
    %v2516 = vsel %vm140, %v2508, 0
    %v2519 = vsel %vm140, %v2509, 0
    %2521 = vmatprep.subr.mxu0 0.0
    %2522 = vmatpush1.msra.mxu0 0.0
    %2523 = vmatprep.subr.mxu0 0.0
    %2524 = vmatpush1.msra.mxu0 0.0
    %2525 = vmatprep.subr.mxu0 0.0
    %2526 = vmatpush1.msra.mxu0 0.0
    %2527 = vmatprep.subr.mxu0 0.0
    %2528 = vmatpush1.msra.mxu0 0.0
    %2529 = vmatprep.subr.mxu0 0.0
    %2530 = vmatpush1.msra.mxu0 0.0
    %2531 = vmatprep.subr.mxu0 0.0
    %2532 = vmatpush1.msra.mxu0 0.0
    %2533 = vmatprep.subr.mxu0 0.0
    %2534 = vmatpush1.msra.mxu0 0.0
    %2535 = vmatprep.subr.mxu0 0.0
    %2536 = vmatpush1.msra.mxu0 0.0
    %2537 = vmatprep.subr.mxu0 0.0
    %2538 = vmatpush1.msra.mxu0 0.0
    %2539 = vmatprep.subr.mxu0 0.0
    %2540 = vmatpush1.msra.mxu0 0.0
    %2541 = vmatprep.subr.mxu0 0.0
    %2542 = vmatpush1.msra.mxu0 0.0
    %2543 = vmatprep.subr.mxu0 0.0
    %2544 = vmatpush1.msra.mxu0 0.0
    %2545 = vmatprep.subr.mxu0 0.0
    %2546 = vmatpush1.msra.mxu0 %v2513
    %2547 = vmatprep.subr.mxu0 0.0
    %2548 = vmatpush1.msra.mxu0 %v2512
    %2549 = vmatprep.subr.mxu0 0.0
    %2550 = vmatpush1.msra.mxu0 %v2511
    %2551 = vmatprep.subr.mxu0 0.0
    %2552 = vmatpush1.msra.mxu0 %v2510
    %2553 = vmatprep.subr.mxu0 0.0
    %2554 = vmatpush2.msra.mxu0 0.0
    %2555 = vmatprep.subr.mxu0 0.0
    %2556 = vmatpush2.msra.mxu0 0.0
    %2557 = vmatprep.subr.mxu0 0.0
    %2558 = vmatpush2.msra.mxu0 0.0
    %2559 = vmatprep.subr.mxu0 0.0
    %2560 = vmatpush2.msra.mxu0 0.0
    %2561 = vmatprep.subr.mxu0 0.0
    %2562 = vmatpush2.msra.mxu0 0.0
    %2563 = vmatprep.subr.mxu0 0.0
    %2564 = vmatpush2.msra.mxu0 0.0
    %2565 = vmatprep.subr.mxu0 0.0
    %2566 = vmatpush2.msra.mxu0 0.0
    %2567 = vmatprep.subr.mxu0 0.0
    %2568 = vmatpush2.msra.mxu0 0.0
    %2569 = vmatprep.subr.mxu0 0.0
    %2570 = vmatpush2.msra.mxu0 0.0
    %2571 = vmatprep.subr.mxu0 0.0
    %2572 = vmatpush2.msra.mxu0 0.0
    %2573 = vmatprep.subr.mxu0 0.0
    %2574 = vmatpush2.msra.mxu0 0.0
    %2575 = vmatprep.subr.mxu0 0.0
    %2576 = vmatpush2.msra.mxu0 0.0
    %2577 = vmatprep.subr.mxu0 0.0
    %2578 = vmatpush2.msra.mxu0 0.0
    %2579 = vmatprep.subr.mxu0 0.0
    %2580 = vmatpush2.msra.mxu0 0.0
    %2581 = vmatprep.subr.mxu0 0.0
    %2582 = vmatpush2.msra.mxu0 0.0
    %2583 = vmatprep.subr.mxu0 0.0
    %2584 = vmatpush2.msra.mxu0 0.0
    %2585 = vmatprep.mubr.f32.mxu0 0.0
    %2586 = vmatmul.mubr.f32.gmra.mxu0 %v2516
    %v2587 = vpop.f32.mrf.mxu0
    %v2588 = vadd.f32 %v2514, %v2587
    %v2589 = vpop.f32.mrf.mxu0
    %2590 = vmatprep.mubr.f32.mxu0 0.0
    %2591 = vmatmul.mubr.f32.gmra.mxu0 %v2519
    %v2592 = vpop.f32.mrf.mxu0
    %v2593 = vadd.f32 %v2514, %v2592
    %v2594 = vpop.f32.mrf.mxu0
    %2595 = vdwg.mxu0
    %v2596 = vmul.f32 %v2588, 0.5
    %v2597 = vmul.f32 %v2593, 0.5
    %v2598 = vmul.f32 %v2588, 0.70710677
    %v2599 = vmul.f32 %v2593, 0.70710677
    %vm2600 = vcmp.ge.f32.partialorder %v2598, 0.0
    %vm2601 = vcmp.ge.f32.partialorder %v2599, 0.0
    %v2602 = vsel %vm2600, 1.0, -1.0
    %v2603 = vsel %vm2601, 1.0, -1.0
    %v2604 = vand.u32 2147483647, %v2598
    %v2605 = vand.u32 2147483647, %v2599
    %v2606 = vmul.f32 %v2604, 0.3275911
    %v2607 = vmul.f32 %v2605, 0.3275911
    %v2608 = vadd.f32 %v2606, 1.0
    %v2609 = vadd.f32 %v2607, 1.0
    %v2610 = vrcp.pop %v2608
    %v2611 = vmul.f32 1.0, %v2610
    %v2612 = vrcp.pop %v2609
    %v2613 = vmul.f32 1.0, %v2612
    %v2614 = vmul.f32 %v2611, 1.0614054
    %v2615 = vmul.f32 %v2613, 1.0614054
    %v2616 = vadd.f32 %v2614, -1.4531521
    %v2617 = vadd.f32 %v2615, -1.4531521
    %v2618 = vmul.f32 %v2616, %v2611
    %v2619 = vmul.f32 %v2617, %v2613
    %v2620 = vadd.f32 %v2618, 1.4214138
    %v2621 = vadd.f32 %v2619, 1.4214138
    %v2622 = vmul.f32 %v2620, %v2611
    %v2623 = vmul.f32 %v2621, %v2613
    %v2624 = vadd.f32 %v2622, -0.28449672
    %v2625 = vadd.f32 %v2623, -0.28449672
    %v2626 = vmul.f32 %v2624, %v2611
    %v2627 = vmul.f32 %v2625, %v2613
    %v2628 = vadd.f32 %v2626, 0.2548296
    %v2629 = vadd.f32 %v2627, 0.2548296
    %v2630 = vmul.f32 %v2628, %v2611
    %v2631 = vmul.f32 %v2629, %v2613
    %v2632 = vsub.f32 0.0, %v2604
    %v2633 = vsub.f32 0.0, %v2605
    %v2634 = vmul.f32 %v2632, %v2604
    %v2635 = vmul.f32 %v2633, %v2605
    %v2636 = vmul.f32 %v2634, 1.442695
    %v2637 = vpow.pop %v2636
    %v2638 = vmul.f32 %v2635, 1.442695
    %v2639 = vpow.pop %v2638
    %v2640 = vmul.f32 %v2630, %v2637
    %v2641 = vmul.f32 %v2631, %v2639
    %v2642 = vsub.f32 1.0, %v2640
    %v2643 = vsub.f32 1.0, %v2641
    %v2644 = vmul.f32 %v2602, %v2642
    %v2645 = vmul.f32 %v2603, %v2643
    %v2646 = vadd.f32 %v2644, 1.0
    %v2647 = vadd.f32 %v2645, 1.0
    %v2648 = vmul.f32 %v2596, %v2646
    %v2649 = vmul.f32 %v2597, %v2647
    %v2650 = vld [vmem:[%s2 + $0x118] sm:$0xff]
    %v2651 = vld [vmem:[%s2 + $0x120] sm:$0xff]
    %v2652 = vld [vmem:[%s2 + $0x128] sm:$0xff]
    %v2653 = vld [vmem:[%s2 + $0x130] sm:$0xff]
    %v2654 = vld [vmem:[%s2 + $0x138] sm:$0xff]
    %v2655 = vld [vmem:[%s2 + $0x140] sm:$0xff]
    %v2656 = vld [vmem:[%s2 + $0x148] sm:$0xff]
    %v2657 = vld [vmem:[%s2 + $0x150] sm:$0xff]
    %v2658 = vld [vmem:[%s4 + $0x17] ss:$0 sm:$0xff]
    %v2660 = vsel %vm1360, %v2648, 0
    %v2663 = vsel %vm1360, %v2649, 0
    %2665 = vmatprep.subr.mxu0 0.0
    %2666 = vmatpush1.msra.mxu0 0.0
    %2667 = vmatprep.subr.mxu0 0.0
    %2668 = vmatpush1.msra.mxu0 0.0
    %2669 = vmatprep.subr.mxu0 0.0
    %2670 = vmatpush1.msra.mxu0 0.0
    %2671 = vmatprep.subr.mxu0 0.0
    %2672 = vmatpush1.msra.mxu0 0.0
    %2673 = vmatprep.subr.mxu0 0.0
    %2674 = vmatpush1.msra.mxu0 0.0
    %2675 = vmatprep.subr.mxu0 0.0
    %2676 = vmatpush1.msra.mxu0 0.0
    %2677 = vmatprep.subr.mxu0 0.0
    %2678 = vmatpush1.msra.mxu0 0.0
    %2679 = vmatprep.subr.mxu0 0.0
    %2680 = vmatpush1.msra.mxu0 0.0
    %2681 = vmatprep.subr.mxu0 0.0
    %2682 = vmatpush1.msra.mxu0 %v2657
    %2683 = vmatprep.subr.mxu0 0.0
    %2684 = vmatpush1.msra.mxu0 %v2656
    %2685 = vmatprep.subr.mxu0 0.0
    %2686 = vmatpush1.msra.mxu0 %v2655
    %2687 = vmatprep.subr.mxu0 0.0
    %2688 = vmatpush1.msra.mxu0 %v2654
    %2689 = vmatprep.subr.mxu0 0.0
    %2690 = vmatpush1.msra.mxu0 %v2653
    %2691 = vmatprep.subr.mxu0 0.0
    %2692 = vmatpush1.msra.mxu0 %v2652
    %2693 = vmatprep.subr.mxu0 0.0
    %2694 = vmatpush1.msra.mxu0 %v2651
    %2695 = vmatprep.subr.mxu0 0.0
    %2696 = vmatpush1.msra.mxu0 %v2650
    %2697 = vmatprep.subr.mxu0 0.0
    %2698 = vmatpush2.msra.mxu0 0.0
    %2699 = vmatprep.subr.mxu0 0.0
    %2700 = vmatpush2.msra.mxu0 0.0
    %2701 = vmatprep.subr.mxu0 0.0
    %2702 = vmatpush2.msra.mxu0 0.0
    %2703 = vmatprep.subr.mxu0 0.0
    %2704 = vmatpush2.msra.mxu0 0.0
    %2705 = vmatprep.subr.mxu0 0.0
    %2706 = vmatpush2.msra.mxu0 0.0
    %2707 = vmatprep.subr.mxu0 0.0
    %2708 = vmatpush2.msra.mxu0 0.0
    %2709 = vmatprep.subr.mxu0 0.0
    %2710 = vmatpush2.msra.mxu0 0.0
    %2711 = vmatprep.subr.mxu0 0.0
    %2712 = vmatpush2.msra.mxu0 0.0
    %2713 = vmatprep.subr.mxu0 0.0
    %2714 = vmatpush2.msra.mxu0 0.0
    %2715 = vmatprep.subr.mxu0 0.0
    %2716 = vmatpush2.msra.mxu0 0.0
    %2717 = vmatprep.subr.mxu0 0.0
    %2718 = vmatpush2.msra.mxu0 0.0
    %2719 = vmatprep.subr.mxu0 0.0
    %2720 = vmatpush2.msra.mxu0 0.0
    %2721 = vmatprep.subr.mxu0 0.0
    %2722 = vmatpush2.msra.mxu0 0.0
    %2723 = vmatprep.subr.mxu0 0.0
    %2724 = vmatpush2.msra.mxu0 0.0
    %2725 = vmatprep.subr.mxu0 0.0
    %2726 = vmatpush2.msra.mxu0 0.0
    %2727 = vmatprep.subr.mxu0 0.0
    %2728 = vmatpush2.msra.mxu0 0.0
    %2729 = vmatprep.mubr.f32.mxu0 0.0
    %2730 = vmatmul.mubr.f32.gmra.mxu0 %v2660
    %v2731 = vpop.f32.mrf.mxu0
    %v2732 = vadd.f32 %v2658, %v2731
    %v2733 = vpop.f32.mrf.mxu0
    %2734 = vmatprep.mubr.f32.mxu0 0.0
    %2735 = vmatmul.mubr.f32.gmra.mxu0 %v2663
    %v2736 = vpop.f32.mrf.mxu0
    %v2737 = vadd.f32 %v2658, %v2736
    %v2738 = vpop.f32.mrf.mxu0
    %2739 = vdwg.mxu0
    %v2740 = vadd.f32 %v2508, %v2732
    %v2741 = vadd.f32 %v2509, %v2737
    %v2742 = vld [vmem:[%s4 + $0x20] ss:$0 sm:$0xff]
    %v2743 = vld [vmem:[%s4 + $0x21] ss:$0 sm:$0xff]
    %v2744 = vsel %vm140, %v2740, 0.0
    %2745 = vadd.xlane.f32.xlu0 %v2744
    %v2746 = vpop.xlane.xlu0 %2745
    %v2747 = vsel %vm140, %v2741, 0.0
    %2748 = vadd.xlane.f32.xlu0 %v2747
    %v2749 = vpop.xlane.xlu0 %2748
    %v2750 = vmul.f32 %v2746, %v147
    %v2751 = vmul.f32 %v2749, %v147
    %v2752 = vsub.f32 %v2740, %v2750
    %v2753 = vsub.f32 %v2741, %v2751
    %v2754 = vmul.f32 %v2752, %v2752
    %v2755 = vmul.f32 %v2753, %v2753
    %v2756 = vsel %vm140, %v2754, 0.0
    %2757 = vadd.xlane.f32.xlu0 %v2756
    %v2758 = vpop.xlane.xlu0 %2757
    %v2759 = vsel %vm140, %v2755, 0.0
    %2760 = vadd.xlane.f32.xlu0 %v2759
    %v2761 = vpop.xlane.xlu0 %2760
    %v2762 = vmul.f32 %v2758, %v147
    %v2763 = vmul.f32 %v2761, %v147
    %v2764 = vadd.f32 %v2762, 1e-12
    %v2765 = vadd.f32 %v2763, 1e-12
    %v2766 = vrsqrt.pop %v2764
    %v2767 = vrsqrt.pop %v2765
    %v2768 = vmul.f32 %v2752, %v2766
    %v2769 = vmul.f32 %v2753, %v2767
    %v2770 = vmul.f32 %v2768, %v2742
    %v2771 = vmul.f32 %v2769, %v2742
    %v2772 = vadd.f32 %v2770, %v2743
    %v2773 = vadd.f32 %v2771, %v2743
    %v2774 = vlaneseq
    %v2775 = vshrl.u32 %v2774, 7
    %v2776 = vmul.u32 %v2775, 8
    %vm2777 = vcmp.eq.s32.totalorder %v24, %v2776
    %v2778 = vsel %vm2777, 1, 0
    %v2779 = vcvt.s32.f32 %v2778
    %v2781 = vsel %vm350, %v2779, 0
    %2783 = vmatprep.subr.mxu0 0.0
    %2784 = vmatpush1.msra.mxu0 0.0
    %2785 = vmatprep.subr.mxu0 0.0
    %2786 = vmatpush1.msra.mxu0 0.0
    %2787 = vmatprep.subr.mxu0 0.0
    %2788 = vmatpush1.msra.mxu0 0.0
    %2789 = vmatprep.subr.mxu0 0.0
    %2790 = vmatpush1.msra.mxu0 0.0
    %2791 = vmatprep.subr.mxu0 0.0
    %2792 = vmatpush1.msra.mxu0 0.0
    %2793 = vmatprep.subr.mxu0 0.0
    %2794 = vmatpush1.msra.mxu0 0.0
    %2795 = vmatprep.subr.mxu0 0.0
    %2796 = vmatpush1.msra.mxu0 0.0
    %2797 = vmatprep.subr.mxu0 0.0
    %2798 = vmatpush1.msra.mxu0 0.0
    %2799 = vmatprep.subr.mxu0 0.0
    %2800 = vmatpush1.msra.mxu0 0.0
    %2801 = vmatprep.subr.mxu0 0.0
    %2802 = vmatpush1.msra.mxu0 0.0
    %2803 = vmatprep.subr.mxu0 0.0
    %2804 = vmatpush1.msra.mxu0 0.0
    %2805 = vmatprep.subr.mxu0 0.0
    %2806 = vmatpush1.msra.mxu0 0.0
    %2807 = vmatprep.subr.mxu0 0.0
    %2808 = vmatpush1.msra.mxu0 0.0
    %2809 = vmatprep.subr.mxu0 0.0
    %2810 = vmatpush1.msra.mxu0 0.0
    %2811 = vmatprep.subr.mxu0 0.0
    %2812 = vmatpush1.msra.mxu0 %v2773
    %2813 = vmatprep.subr.mxu0 0.0
    %2814 = vmatpush1.msra.mxu0 %v2772
    %2815 = vmatprep.subr.mxu0 0.0
    %2816 = vmatpush2.msra.mxu0 0.0
    %2817 = vmatprep.subr.mxu0 0.0
    %2818 = vmatpush2.msra.mxu0 0.0
    %2819 = vmatprep.subr.mxu0 0.0
    %2820 = vmatpush2.msra.mxu0 0.0
    %2821 = vmatprep.subr.mxu0 0.0
    %2822 = vmatpush2.msra.mxu0 0.0
    %2823 = vmatprep.subr.mxu0 0.0
    %2824 = vmatpush2.msra.mxu0 0.0
    %2825 = vmatprep.subr.mxu0 0.0
    %2826 = vmatpush2.msra.mxu0 0.0
    %2827 = vmatprep.subr.mxu0 0.0
    %2828 = vmatpush2.msra.mxu0 0.0
    %2829 = vmatprep.subr.mxu0 0.0
    %2830 = vmatpush2.msra.mxu0 0.0
    %2831 = vmatprep.subr.mxu0 0.0
    %2832 = vmatpush2.msra.mxu0 0.0
    %2833 = vmatprep.subr.mxu0 0.0
    %2834 = vmatpush2.msra.mxu0 0.0
    %2835 = vmatprep.subr.mxu0 0.0
    %2836 = vmatpush2.msra.mxu0 0.0
    %2837 = vmatprep.subr.mxu0 0.0
    %2838 = vmatpush2.msra.mxu0 0.0
    %2839 = vmatprep.subr.mxu0 0.0
    %2840 = vmatpush2.msra.mxu0 0.0
    %2841 = vmatprep.subr.mxu0 0.0
    %2842 = vmatpush2.msra.mxu0 0.0
    %2843 = vmatprep.subr.mxu0 0.0
    %2844 = vmatpush2.msra.mxu0 0.0
    %2845 = vmatprep.subr.mxu0 0.0
    %2846 = vmatpush2.msra.mxu0 0.0
    %2847 = vmatprep.mubr.f32.mxu0 0.0
    %2848 = vmatmul.mubr.f32.gmra.mxu0 %v2781
    %v2849 = vpop.f32.mrf.mxu0
    %v2850 = vadd.f32 0.0, %v2849
    %v2851 = vpop.f32.mrf.mxu0
    %2852 = vdwg.mxu0
    %v2853 = vld [vmem:[%s2 + $0xb8] sm:$0xff]
    %v2854 = vld [vmem:[%s2 + $0xc0] sm:$0xff]
    %v2855 = vld [vmem:[%s2 + $0xc8] sm:$0xff]
    %v2856 = vld [vmem:[%s2 + $0xd0] sm:$0xff]
    %v2857 = vld [vmem:[%s4 + $0x22] ss:$0 sm:$0xff]
    %v2859 = vsel %vm140, %v2850, 0
    %2861 = vmatprep.subr.mxu0 0.0
    %2862 = vmatpush1.msra.mxu0 0.0
    %2863 = vmatprep.subr.mxu0 0.0
    %2864 = vmatpush1.msra.mxu0 0.0
    %2865 = vmatprep.subr.mxu0 0.0
    %2866 = vmatpush1.msra.mxu0 0.0
    %2867 = vmatprep.subr.mxu0 0.0
    %2868 = vmatpush1.msra.mxu0 0.0
    %2869 = vmatprep.subr.mxu0 0.0
    %2870 = vmatpush1.msra.mxu0 0.0
    %2871 = vmatprep.subr.mxu0 0.0
    %2872 = vmatpush1.msra.mxu0 0.0
    %2873 = vmatprep.subr.mxu0 0.0
    %2874 = vmatpush1.msra.mxu0 0.0
    %2875 = vmatprep.subr.mxu0 0.0
    %2876 = vmatpush1.msra.mxu0 0.0
    %2877 = vmatprep.subr.mxu0 0.0
    %2878 = vmatpush1.msra.mxu0 0.0
    %2879 = vmatprep.subr.mxu0 0.0
    %2880 = vmatpush1.msra.mxu0 0.0
    %2881 = vmatprep.subr.mxu0 0.0
    %2882 = vmatpush1.msra.mxu0 0.0
    %2883 = vmatprep.subr.mxu0 0.0
    %2884 = vmatpush1.msra.mxu0 0.0
    %2885 = vmatprep.subr.mxu0 0.0
    %2886 = vmatpush1.msra.mxu0 %v2856
    %2887 = vmatprep.subr.mxu0 0.0
    %2888 = vmatpush1.msra.mxu0 %v2855
    %2889 = vmatprep.subr.mxu0 0.0
    %2890 = vmatpush1.msra.mxu0 %v2854
    %2891 = vmatprep.subr.mxu0 0.0
    %2892 = vmatpush1.msra.mxu0 %v2853
    %2893 = vmatprep.subr.mxu0 0.0
    %2894 = vmatpush2.msra.mxu0 0.0
    %2895 = vmatprep.subr.mxu0 0.0
    %2896 = vmatpush2.msra.mxu0 0.0
    %2897 = vmatprep.subr.mxu0 0.0
    %2898 = vmatpush2.msra.mxu0 0.0
    %2899 = vmatprep.subr.mxu0 0.0
    %2900 = vmatpush2.msra.mxu0 0.0
    %2901 = vmatprep.subr.mxu0 0.0
    %2902 = vmatpush2.msra.mxu0 0.0
    %2903 = vmatprep.subr.mxu0 0.0
    %2904 = vmatpush2.msra.mxu0 0.0
    %2905 = vmatprep.subr.mxu0 0.0
    %2906 = vmatpush2.msra.mxu0 0.0
    %2907 = vmatprep.subr.mxu0 0.0
    %2908 = vmatpush2.msra.mxu0 0.0
    %2909 = vmatprep.subr.mxu0 0.0
    %2910 = vmatpush2.msra.mxu0 0.0
    %2911 = vmatprep.subr.mxu0 0.0
    %2912 = vmatpush2.msra.mxu0 0.0
    %2913 = vmatprep.subr.mxu0 0.0
    %2914 = vmatpush2.msra.mxu0 0.0
    %2915 = vmatprep.subr.mxu0 0.0
    %2916 = vmatpush2.msra.mxu0 0.0
    %2917 = vmatprep.subr.mxu0 0.0
    %2918 = vmatpush2.msra.mxu0 0.0
    %2919 = vmatprep.subr.mxu0 0.0
    %2920 = vmatpush2.msra.mxu0 0.0
    %2921 = vmatprep.subr.mxu0 0.0
    %2922 = vmatpush2.msra.mxu0 0.0
    %2923 = vmatprep.subr.mxu0 0.0
    %2924 = vmatpush2.msra.mxu0 0.0
    %2925 = vmatprep.mubr.f32.mxu0 0.0
    %2926 = vmatmul.mubr.f32.gmra.mxu0 %v2859
    %v2927 = vpop.f32.mrf.mxu0
    %v2928 = vadd.f32 %v2857, %v2927
    %v2929 = vpop.f32.mrf.mxu0
    %2930 = vdwg.mxu0
    %v2931 = vtanh.pop %v2928
    %v2932 = vld [vmem:[%s4 + $0x30] sm:$0xff]
    %v2933 = vld [vmem:[%s4 + $0x38] sm:$0xff]
    %v2934 = vld [vmem:[%s4 + $0x40] sm:$0xff]
    %v2935 = vld [vmem:[%s4 + $0x48] sm:$0xff]
    %v2936 = vld [vmem:[%s4 + $0x50] sm:$0xff]
    %v2937 = vld [vmem:[%s4 + $0x58] sm:$0xff]
    %v2938 = vld [vmem:[%s4 + $0x60] sm:$0xff]
    %v2939 = vld [vmem:[%s4 + $0x68] sm:$0xff]
    %s2940 = scalar_lea.vmem %s4, 35
    %v2941 = vld [vmem:[%s2940] ss:$8 sm:$0x3]
    %v2943 = vlaneseq
    %v2944 = vshrl.u32 %v2943, 7
    %v2945 = vsub.s32 0, %v2944
    %v2946 = vrot.slane %v2941, %v2945
    %v2947 = vlaneseq
    %v2948 = vshrl.u32 %v2947, 7
    %v2949 = vsub.s32 1, %v2948
    %v2950 = vrot.slane %v2941, %v2949
    %v2954 = vsel %vm140, %v2931, 0
    %2956 = vmatprep.subr.mxu0 0.0
    %2957 = vmatpush1.msra.mxu0 0.0
    %2958 = vmatprep.subr.mxu0 0.0
    %2959 = vmatpush1.msra.mxu0 0.0
    %2960 = vmatprep.subr.mxu0 0.0
    %2961 = vmatpush1.msra.mxu0 0.0
    %2962 = vmatprep.subr.mxu0 0.0
    %2963 = vmatpush1.msra.mxu0 0.0
    %2964 = vmatprep.subr.mxu0 0.0
    %2965 = vmatpush1.msra.mxu0 0.0
    %2966 = vmatprep.subr.mxu0 0.0
    %2967 = vmatpush1.msra.mxu0 0.0
    %2968 = vmatprep.subr.mxu0 0.0
    %2969 = vmatpush1.msra.mxu0 0.0
    %2970 = vmatprep.subr.mxu0 0.0
    %2971 = vmatpush1.msra.mxu0 0.0
    %2972 = vmatprep.subr.mxu0 0.0
    %2973 = vmatpush1.msra.mxu0 0.0
    %2974 = vmatprep.subr.mxu0 0.0
    %2975 = vmatpush1.msra.mxu0 0.0
    %2976 = vmatprep.subr.mxu0 0.0
    %2977 = vmatpush1.msra.mxu0 0.0
    %2978 = vmatprep.subr.mxu0 0.0
    %2979 = vmatpush1.msra.mxu0 0.0
    %2980 = vmatprep.subr.mxu0 %v2939
    %2981 = vmatpush1.msra.mxu0 %v2938
    %2982 = vmatprep.subr.mxu0 %v2937
    %2983 = vmatpush1.msra.mxu0 %v2936
    %2984 = vmatprep.subr.mxu0 %v2935
    %2985 = vmatpush1.msra.mxu0 %v2934
    %2986 = vmatprep.subr.mxu0 %v2933
    %2987 = vmatpush1.msra.mxu0 %v2932
    %2988 = vmatprep.subr.mxu0 0.0
    %2989 = vmatpush2.msra.mxu0 0.0
    %2990 = vmatprep.subr.mxu0 0.0
    %2991 = vmatpush2.msra.mxu0 0.0
    %2992 = vmatprep.subr.mxu0 0.0
    %2993 = vmatpush2.msra.mxu0 0.0
    %2994 = vmatprep.subr.mxu0 0.0
    %2995 = vmatpush2.msra.mxu0 0.0
    %2996 = vmatprep.subr.mxu0 0.0
    %2997 = vmatpush2.msra.mxu0 0.0
    %2998 = vmatprep.subr.mxu0 0.0
    %2999 = vmatpush2.msra.mxu0 0.0
    %3000 = vmatprep.subr.mxu0 0.0
    %3001 = vmatpush2.msra.mxu0 0.0
    %3002 = vmatprep.subr.mxu0 0.0
    %3003 = vmatpush2.msra.mxu0 0.0
    %3004 = vmatprep.subr.mxu0 0.0
    %3005 = vmatpush2.msra.mxu0 0.0
    %3006 = vmatprep.subr.mxu0 0.0
    %3007 = vmatpush2.msra.mxu0 0.0
    %3008 = vmatprep.subr.mxu0 0.0
    %3009 = vmatpush2.msra.mxu0 0.0
    %3010 = vmatprep.subr.mxu0 0.0
    %3011 = vmatpush2.msra.mxu0 0.0
    %3012 = vmatprep.subr.mxu0 0.0
    %3013 = vmatpush2.msra.mxu0 0.0
    %3014 = vmatprep.subr.mxu0 0.0
    %3015 = vmatpush2.msra.mxu0 0.0
    %3016 = vmatprep.subr.mxu0 0.0
    %3017 = vmatpush2.msra.mxu0 0.0
    %3018 = vmatprep.subr.mxu0 0.0
    %3019 = vmatpush2.msra.mxu0 0.0
    %3020 = vmatprep.mubr.f32.mxu0 0.0
    %3021 = vmatmul.mubr.f32.gmra.mxu0 %v2954
    %v3022 = vpop.f32.mrf.mxu0
    %v3023 = vadd.f32 %v2946, %v3022
    %v3024 = vpop.f32.mrf.mxu0
    %v3025 = vadd.f32 %v2950, %v3024
    %3026 = vdwg.mxu0
    %v3027 = vld [vmem:[%s2 + $0x158] sm:$0xff]
    %v3028 = vld [vmem:[%s2 + $0x160] sm:$0xff]
    %v3029 = vld [vmem:[%s2 + $0x168] sm:$0xff]
    %v3030 = vld [vmem:[%s2 + $0x170] sm:$0xff]
    %v3031 = vld [vmem:[%s2 + $0x178] sm:$0xff]
    %v3032 = vld [vmem:[%s2 + $0x180] sm:$0xff]
    %v3033 = vld [vmem:[%s2 + $0x188] sm:$0xff]
    %v3034 = vld [vmem:[%s2 + $0x190] sm:$0xff]
    %v3035 = vld [vmem:[%s2 + $0x198] sm:$0xff]
    %v3036 = vld [vmem:[%s2 + $0x1a0] sm:$0xff]
    %v3037 = vld [vmem:[%s2 + $0x1a8] sm:$0xff]
    %v3038 = vld [vmem:[%s2 + $0x1b0] sm:$0xff]
    %v3039 = vld [vmem:[%s2 + $0x1b8] sm:$0xff]
    %v3040 = vld [vmem:[%s2 + $0x1c0] sm:$0xff]
    %v3041 = vld [vmem:[%s2 + $0x1c8] sm:$0xff]
    %v3042 = vld [vmem:[%s2 + $0x1d0] sm:$0xff]
    %v3043 = vld [vmem:[%s2 + $0x1d8] sm:$0xff]
    %v3044 = vld [vmem:[%s2 + $0x1e0] sm:$0xff]
    %v3045 = vld [vmem:[%s2 + $0x1e8] sm:$0xff]
    %v3046 = vld [vmem:[%s2 + $0x1f0] sm:$0xff]
    %v3047 = vld [vmem:[%s2 + $0x1f8] sm:$0xff]
    %v3048 = vld [vmem:[%s2 + $0x200] sm:$0xff]
    %v3049 = vld [vmem:[%s2 + $0x208] sm:$0xff]
    %v3050 = vld [vmem:[%s2 + $0x210] sm:$0xff]
    %v3051 = vld [vmem:[%s2 + $0x218] sm:$0xff]
    %v3052 = vld [vmem:[%s2 + $0x220] sm:$0xff]
    %v3053 = vld [vmem:[%s2 + $0x228] sm:$0xff]
    %v3054 = vld [vmem:[%s2 + $0x230] sm:$0xff]
    %v3055 = vld [vmem:[%s2 + $0x238] sm:$0xff]
    %v3056 = vld [vmem:[%s2 + $0x240] sm:$0xff]
    %v3057 = vld [vmem:[%s2 + $0x248] sm:$0xff]
    %v3058 = vld [vmem:[%s2 + $0x250] sm:$0xff]
    %v3059 = vld [vmem:[%s4 + $0x24] ss:$0 sm:$0xff]
    %3060 = vmatprep.subr.mxu0 0.0
    %3061 = vmatpush1.msra.mxu0 %v3042
    %3062 = vmatprep.subr.mxu0 0.0
    %3063 = vmatpush1.msra.mxu0 %v3041
    %3064 = vmatprep.subr.mxu0 0.0
    %3065 = vmatpush1.msra.mxu0 %v3040
    %3066 = vmatprep.subr.mxu0 0.0
    %3067 = vmatpush1.msra.mxu0 %v3039
    %3068 = vmatprep.subr.mxu0 0.0
    %3069 = vmatpush1.msra.mxu0 %v3038
    %3070 = vmatprep.subr.mxu0 0.0
    %3071 = vmatpush1.msra.mxu0 %v3037
    %3072 = vmatprep.subr.mxu0 0.0
    %3073 = vmatpush1.msra.mxu0 %v3036
    %3074 = vmatprep.subr.mxu0 0.0
    %3075 = vmatpush1.msra.mxu0 %v3035
    %3076 = vmatprep.subr.mxu0 0.0
    %3077 = vmatpush1.msra.mxu0 %v3034
    %3078 = vmatprep.subr.mxu0 0.0
    %3079 = vmatpush1.msra.mxu0 %v3033
    %3080 = vmatprep.subr.mxu0 0.0
    %3081 = vmatpush1.msra.mxu0 %v3032
    %3082 = vmatprep.subr.mxu0 0.0
    %3083 = vmatpush1.msra.mxu0 %v3031
    %3084 = vmatprep.subr.mxu0 0.0
    %3085 = vmatpush1.msra.mxu0 %v3030
    %3086 = vmatprep.subr.mxu0 0.0
    %3087 = vmatpush1.msra.mxu0 %v3029
    %3088 = vmatprep.subr.mxu0 0.0
    %3089 = vmatpush1.msra.mxu0 %v3028
    %3090 = vmatprep.subr.mxu0 0.0
    %3091 = vmatpush1.msra.mxu0 %v3027
    %3092 = vmatprep.subr.mxu0 0.0
    %3093 = vmatpush2.msra.mxu0 %v3058
    %3094 = vmatprep.subr.mxu0 0.0
    %3095 = vmatpush2.msra.mxu0 %v3057
    %3096 = vmatprep.subr.mxu0 0.0
    %3097 = vmatpush2.msra.mxu0 %v3056
    %3098 = vmatprep.subr.mxu0 0.0
    %3099 = vmatpush2.msra.mxu0 %v3055
    %3100 = vmatprep.subr.mxu0 0.0
    %3101 = vmatpush2.msra.mxu0 %v3054
    %3102 = vmatprep.subr.mxu0 0.0
    %3103 = vmatpush2.msra.mxu0 %v3053
    %3104 = vmatprep.subr.mxu0 0.0
    %3105 = vmatpush2.msra.mxu0 %v3052
    %3106 = vmatprep.subr.mxu0 0.0
    %3107 = vmatpush2.msra.mxu0 %v3051
    %3108 = vmatprep.subr.mxu0 0.0
    %3109 = vmatpush2.msra.mxu0 %v3050
    %3110 = vmatprep.subr.mxu0 0.0
    %3111 = vmatpush2.msra.mxu0 %v3049
    %3112 = vmatprep.subr.mxu0 0.0
    %3113 = vmatpush2.msra.mxu0 %v3048
    %3114 = vmatprep.subr.mxu0 0.0
    %3115 = vmatpush2.msra.mxu0 %v3047
    %3116 = vmatprep.subr.mxu0 0.0
    %3117 = vmatpush2.msra.mxu0 %v3046
    %3118 = vmatprep.subr.mxu0 0.0
    %3119 = vmatpush2.msra.mxu0 %v3045
    %3120 = vmatprep.subr.mxu0 0.0
    %3121 = vmatpush2.msra.mxu0 %v3044
    %3122 = vmatprep.subr.mxu0 0.0
    %3123 = vmatpush2.msra.mxu0 %v3043
    %3124 = vmatprep.mubr.f32.mxu0 %v3025
    %3125 = vmatmul.mubr.f32.gmra.mxu0 %v3023
    %v3126 = vpop.f32.mrf.mxu0
    %v3127 = vadd.f32 %v3059, %v3126
    %v3128 = vpop.f32.mrf.mxu0
    %3129 = vdwg.mxu0
    %vm3130 = vcmask 17408
    %3131 = vst.msk [vmem:[#allocation2] sm:$0x3] %vm3130, %v3127
    // Predicated region
    $region22: #{forward.1} parent=1 // pred_check
      _
    $region23: #{forward.1} parent=1 // pred_check_branch
      %3133 = sbr.rel (0) target = $region25
    $region24: #{forward.1} parent=1 // pred_region
      %s3135 = ssub.s32 32, 32
      %3136 = vsyncadd [#allocation3], %s3135
      %s3138 = sshll.u32 [#allocation2], 4
      %s3139 = int_to_ptr.vmem [resolvable:$true] %s3138
      %3141 = dma.vmem_to_hbm [thread:$0]  %s3139, 32, %s5, [#allocation3]
    $region25: #{forward.1} parent=1 // pred_fallthru
      _
    // Predicated region
    $region26: #{forward.1} parent=1 // pred_check
      _
    $region27: #{forward.1} parent=1 // pred_check_branch
      %3143 = sbr.rel (0) target = $region29
    $region28: #{forward.1} parent=1 // pred_region
      %3144 = dma.done [#allocation3], 32
    $region29: #{forward.1} parent=1 // pred_fallthru
      _
    %3145 = vsyncpa [#allocation3], 1

</llo_original>
